<compile_context>
chip_gen: v7x
topology: tpu7x:2x2x1
jax: 0.10.0
libtpu: 0.0.40
codegen_flags: <defaults>
</compile_context>

<pallas_src>
import functools

import jax
import jax.numpy as jnp
from jax import lax
from jax.experimental import pallas as pl
from jax.experimental.pallas import tpu as pltpu

LRELU_SLOPE = 0.2
BN_EPS = 1e-5
OUTW = 128  # lane width of the fused head's output row (caps batch at 128)


# ----------------------------------------------------------------------------
# pallas_call plumbing helpers
# ----------------------------------------------------------------------------
def _full_spec(shape):
    # grid=(1,): block == full array, so no (8,128) divisibility constraints.
    return pl.BlockSpec(shape, lambda *_: (0,) * len(shape))


def _cparams():
    return pltpu.CompilerParams(
        dimension_semantics=("arbitrary",),
        vmem_limit_bytes=32 * 1024 * 1024,
    )


# ----------------------------------------------------------------------------
# In-kernel building blocks
# ----------------------------------------------------------------------------
def _conv_taps(w_ref, x_ref, L, Ws):
    """4x4 stride-2 conv as four accumulated per-tap matmuls.

    w_ref: (4, Cout, 4*Cin) bf16 tap-packed weights.
    x_ref: (4*Cin, N*Hs*Ws) bf16 space-to-depth flat padded input.
    Returns f32 (Cout, L); column p = n*Hs*Ws + ho*Ws + wo holds output pixel
    (n, ho, wo); columns with wo == Ws-1 or ho >= Ho are junk (masked later).
    """
    z = None
    for t in range(4):
        dh, dw = divmod(t, 2)
        start = dh * Ws + dw                      # static, contiguous slice
        acc = jnp.dot(w_ref[t], x_ref[:, start:start + L],
                      preferred_element_type=jnp.float32)
        z = acc if z is None else z + acc
    return z


def _conv_bias_lrelu_kernel(w_ref, x_ref, b_ref, o_ref, *, L, Ws):
    """out = LeakyReLU(conv(x) + b)."""
    z = _conv_taps(w_ref, x_ref, L, Ws) + b_ref[...]
    o_ref[...] = jnp.where(z > 0, z, LRELU_SLOPE * z).astype(o_ref.dtype)


def _conv_bn_lrelu_kernel(w_ref, x_ref, m_ref, g_ref, b_ref, o_ref,
                          *, L, Ws, count):
    """out = LeakyReLU(BN(conv(x))); one-pass masked batch statistics."""
    z = _conv_taps(w_ref, x_ref, L, Ws)
    m = m_ref[...]                                   # (1, L) validity mask
    mean = jnp.sum(z * m, axis=1, keepdims=True) / count
    ex2 = jnp.sum(z * z * m, axis=1, keepdims=True) / count
    var = ex2 - mean * mean                          # biased, like torch
    y = (z - mean) * lax.rsqrt(var + BN_EPS) * g_ref[...] + b_ref[...]
    o_ref[...] = jnp.where(y > 0, y, LRELU_SLOPE * y).astype(o_ref.dtype)


def _conv_bn_lrelu_head_kernel(w_ref, x_ref, m_ref, g_ref, b_ref, w5_ref,
                               b5_ref, o_ref, y_sc, *, L, Hs, Ws, Ho, Wo,
                               count, N):
    """Layer-4 conv+BN+LeakyReLU fused with the final Conv(->1)+Sigmoid."""
    z = _conv_taps(w_ref, x_ref, L, Ws)
    m = m_ref[...]
    mean = jnp.sum(z * m, axis=1, keepdims=True) / count
    ex2 = jnp.sum(z * z * m, axis=1, keepdims=True) / count
    var = ex2 - mean * mean
    y = (z - mean) * lax.rsqrt(var + BN_EPS) * g_ref[...] + b_ref[...]
    y_sc[...] = jnp.where(y > 0, y, LRELU_SLOPE * y)     # (C4, L) f32 scratch

    # Final Conv2d(8f -> 1, 4, 2, 0): the 4x4 kernel exactly covers the HoxWo
    # map, so each sample reduces to one dot with w5 over its valid columns.
    col = lax.broadcasted_iota(jnp.int32, (1, OUTW), 1)
    logits = jnp.zeros((1, OUTW), jnp.float32)
    for n in range(N):                                   # small static batch
        base = n * Hs * Ws
        acc = jnp.zeros((y_sc.shape[0], Wo), jnp.float32)
        for r in range(Ho):
            s = base + r * Ws
            acc = acc + y_sc[:, s:s + Wo] * w5_ref[:, r * Wo:(r + 1) * Wo]
        tot = jnp.sum(jnp.sum(acc, axis=1, keepdims=True), axis=0,
                      keepdims=True)                     # (1, 1)
        logit = tot + b5_ref[...]
        logits = logits + jnp.where(col == n, logit, 0.0)
    o_ref[...] = jax.nn.sigmoid(logits)


# ----------------------------------------------------------------------------
# Wrapper-side layout glue (cheap 1x-byte relayouts, all bf16)
# ----------------------------------------------------------------------------
def _space_to_depth_flat(a, pad=1):
    """(C, N, H, W) -> (4C, N*Hs*Ws) phase-split flat layout of padded input."""
    C, N, H, W = a.shape
    ap = jnp.pad(a, ((0, 0), (0, 0), (pad, pad), (pad, pad)))
    Hs, Ws = (H + 2 * pad) // 2, (W + 2 * pad) // 2
    b = ap.reshape(C, N, Hs, 2, Ws, 2)
    b = jnp.transpose(b, (3, 5, 0, 1, 2, 4))     # (rp, cp, C, N, Hs, Ws)
    return b.reshape(4 * C, N * Hs * Ws), Hs, Ws


def _pack_taps(w):
    """(Cout, Cin, 4, 4) -> (4, Cout, 4*Cin) bf16, (rp, cp, c) channel order."""
    Cout, Cin = w.shape[:2]
    taps = []
    for dh in range(2):
        for dw in range(2):
            sub = w[:, :, 2 * dh:2 * dh + 2, 2 * dw:2 * dw + 2]
            taps.append(jnp.transpose(sub, (0, 2, 3, 1)).reshape(Cout, 4 * Cin))
    return jnp.stack(taps, axis=0).astype(jnp.bfloat16)


def _make_valid_mask(L, Hs, Ws, Ho, Wo):
    """f32 (1, L) mask of valid output columns (constant-folded under jit)."""
    q = jnp.arange(L, dtype=jnp.int32) % (Hs * Ws)
    valid = ((q // Ws) < Ho) & ((q % Ws) < Wo)
    return valid.astype(jnp.float32).reshape(1, L)


def _unflatten(y, N, Hs, Ws, Ho, Wo):
    """(Cout, L) kernel output -> (Cout, N, Ho, Wo) channel-major activation."""
    Cout, L = y.shape
    y = jnp.pad(y, ((0, 0), (0, N * Hs * Ws - L)))
    return y.reshape(Cout, N, Hs, Ws)[:, :, :Ho, :Wo]


# ----------------------------------------------------------------------------
# Layer wrappers
# ----------------------------------------------------------------------------
def conv_bias_lrelu(a, w, b):
    C, N, H, W = a.shape
    Cout = w.shape[0]
    Ho, Wo = H // 2, W // 2
    xf, Hs, Ws = _space_to_depth_flat(a)
    L = N * Hs * Ws - Ws - 1
    wt = _pack_taps(w)
    bm = b.reshape(Cout, 1).astype(jnp.float32)
    kern = functools.partial(_conv_bias_lrelu_kernel, L=L, Ws=Ws)
    out = pl.pallas_call(
        kern,
        grid=(1,),
        in_specs=[_full_spec(wt.shape), _full_spec(xf.shape),
                  _full_spec(bm.shape)],
        out_specs=_full_spec((Cout, L)),
        out_shape=jax.ShapeDtypeStruct((Cout, L), jnp.bfloat16),
        compiler_params=_cparams(),
    )(wt, xf, bm)
    return _unflatten(out, N, Hs, Ws, Ho, Wo)


def conv_bn_lrelu(a, w, gamma, beta):
    C, N, H, W = a.shape
    Cout = w.shape[0]
    Ho, Wo = H // 2, W // 2
    xf, Hs, Ws = _space_to_depth_flat(a)
    L = N * Hs * Ws - Ws - 1
    wt = _pack_taps(w)
    gm = gamma.reshape(Cout, 1).astype(jnp.float32)
    bm = beta.reshape(Cout, 1).astype(jnp.float32)
    mask = _make_valid_mask(L, Hs, Ws, Ho, Wo)
    kern = functools.partial(_conv_bn_lrelu_kernel, L=L, Ws=Ws,
                             count=float(N * Ho * Wo))
    out = pl.pallas_call(
        kern,
        grid=(1,),
        in_specs=[_full_spec(wt.shape), _full_spec(xf.shape),
                  _full_spec(mask.shape), _full_spec(gm.shape),
                  _full_spec(bm.shape)],
        out_specs=_full_spec((Cout, L)),
        out_shape=jax.ShapeDtypeStruct((Cout, L), jnp.bfloat16),
        compiler_params=_cparams(),
    )(wt, xf, mask, gm, bm)
    return _unflatten(out, N, Hs, Ws, Ho, Wo)


def conv_bn_lrelu_sigmoid_head(a, w, gamma, beta, w5, b5):
    """_block(4f->8f) fused with the final Conv2d(8f->1, 4, 2, 0) + Sigmoid."""
    C, N, H, W = a.shape
    Cout = w.shape[0]
    Ho, Wo = H // 2, W // 2
    assert (Ho, Wo) == (w5.shape[2], w5.shape[3]) and w5.shape[0] == 1, \
        "final conv must exactly cover the last feature map (64x64 input)"
    assert N <= OUTW, "fused head currently supports batch <= 128"
    xf, Hs, Ws = _space_to_depth_flat(a)
    L = N * Hs * Ws - Ws - 1
    wt = _pack_taps(w)
    gm = gamma.reshape(Cout, 1).astype(jnp.float32)
    bm = beta.reshape(Cout, 1).astype(jnp.float32)
    mask = _make_valid_mask(L, Hs, Ws, Ho, Wo)
    w5m = w5.reshape(Cout, Ho * Wo).astype(jnp.float32)
    b5m = b5.reshape(1, 1).astype(jnp.float32)
    kern = functools.partial(_conv_bn_lrelu_head_kernel, L=L, Hs=Hs, Ws=Ws,
                             Ho=Ho, Wo=Wo, count=float(N * Ho * Wo), N=N)
    out = pl.pallas_call(
        kern,
        grid=(1,),
        in_specs=[_full_spec(wt.shape), _full_spec(xf.shape),
                  _full_spec(mask.shape), _full_spec(gm.shape),
                  _full_spec(bm.shape), _full_spec(w5m.shape),
                  _full_spec(b5m.shape)],
        out_specs=_full_spec((1, OUTW)),
        out_shape=jax.ShapeDtypeStruct((1, OUTW), jnp.float32),
        scratch_shapes=[pltpu.VMEM((Cout, L), jnp.float32)],
        compiler_params=_cparams(),
    )(wt, xf, mask, gm, bm, w5m, b5m)
    return out[0, :N].reshape(N, 1)


# ----------------------------------------------------------------------------
# Parameter init (deterministic, synthetic) and full forward
# ----------------------------------------------------------------------------
def init_discriminator_params(key, channels_img, features_disc):
    f = features_disc
    ks = jax.random.split(key, 13)

    def conv_w(k, cin, cout, ksz):
        return 0.02 * jax.random.normal(k, (cout, cin, ksz, ksz), jnp.float32)

    return {
        "w1": conv_w(ks[0], channels_img, f, 4),
        "b1": 0.02 * jax.random.normal(ks[1], (f,), jnp.float32),
        "w2": conv_w(ks[2], f, 2 * f, 4),
        "g2": 1.0 + 0.1 * jax.random.normal(ks[3], (2 * f,), jnp.float32),
        "be2": 0.1 * jax.random.normal(ks[4], (2 * f,), jnp.float32),
        "w3": conv_w(ks[5], 2 * f, 4 * f, 4),
        "g3": 1.0 + 0.1 * jax.random.normal(ks[6], (4 * f,), jnp.float32),
        "be3": 0.1 * jax.random.normal(ks[7], (4 * f,), jnp.float32),
        "w4": conv_w(ks[8], 4 * f, 8 * f, 4),
        "g4": 1.0 + 0.1 * jax.random.normal(ks[9], (8 * f,), jnp.float32),
        "be4": 0.1 * jax.random.normal(ks[10], (8 * f,), jnp.float32),
        "w5": conv_w(ks[11], 8 * f, 1, 4),
        "b5": 0.02 * jax.random.normal(ks[12], (1,), jnp.float32),
    }


def discriminator_forward(params, x):
    # module boundary: NCHW -> internal channel-major (C, N, H, W) bf16, once.
    # (bf16 activations / f32 in-kernel math: expect looser tolerances vs the
    #  all-f32 PyTorch reference; BN renormalization absorbs most of it.)
    a = jnp.transpose(x, (1, 0, 2, 3)).astype(jnp.bfloat16)
    # Conv(c->f, 4,2,1) + LeakyReLU
    a = conv_bias_lrelu(a, params["w1"], params["b1"])
    # two _block()s: Conv(bias=False) + BN(batch stats) + LeakyReLU
    a = conv_bn_lrelu(a, params["w2"], params["g2"], params["be2"])
    a = conv_bn_lrelu(a, params["w3"], params["g3"], params["be3"])
    # third _block() fused with Conv(8f->1, 4,2,0) + Sigmoid
    out = conv_bn_lrelu_sigmoid_head(a, params["w4"], params["g4"],
                                     params["be4"], params["w5"], params["b5"])
    # matches torch's .reshape(-1, 1)
    return out


if __name__ == "__main__":
    key = jax.random.PRNGKey(0)
    kp, kx = jax.random.split(key)

    # DCGAN discriminator requires 64x64 spatial input to end at 1x1.
    N, C, H, W = 2, 3, 64, 64
    features_disc = 8

    params = init_discriminator_params(kp, C, features_disc)
    x = jax.random.normal(kx, (N, C, H, W), jnp.float32)

    y = jax.jit(discriminator_forward)(params, x)
    y = jax.block_until_ready(y)

    assert y.shape == (N, 1), y.shape
    assert bool(jnp.all(jnp.isfinite(y)))
    assert bool(jnp.all((y >= 0.0) & (y <= 1.0)))  # sigmoid output
    print("KERNEL_OK")
</pallas_src>

<mosaic_0001>
module attributes {stable_mosaic.version = 11 : i64} {
  func.func @_conv_bias_lrelu_kernel(%arg0: i32, %arg1: memref<4x8x12xbf16, #tpu.memory_space<vmem>>, %arg2: memref<12x2178xbf16, #tpu.memory_space<vmem>>, %arg3: memref<8x1xf32, #tpu.memory_space<vmem>>, %arg4: memref<8x2144xbf16, #tpu.memory_space<vmem>>) attributes {dimension_semantics = [#tpu.dimension_semantics<arbitrary>], iteration_bounds = array<i64: 1>, scalar_prefetch = 0 : i64, scratch_operands = 0 : i64, tpu.core_type = #tpu.core_type<tc>, window_params = [{pipeline_mode = #tpu.pipeline_mode<synchronous>, transform_indices = @transform_0, window_bounds = array<i64: 4, 8, 12>}, {pipeline_mode = #tpu.pipeline_mode<synchronous>, transform_indices = @transform_1, window_bounds = array<i64: 12, 2178>}, {pipeline_mode = #tpu.pipeline_mode<synchronous>, transform_indices = @transform_2, window_bounds = array<i64: 8, 1>}, {pipeline_mode = #tpu.pipeline_mode<synchronous>, transform_indices = @transform_3, window_bounds = array<i64: 8, 2144>}]} {
    %c0 = arith.constant 0 : index
    %c0_0 = arith.constant 0 : index
    %c0_1 = arith.constant 0 : index
    %0 = vector.load %arg1[%c0, %c0_0, %c0_1] : memref<4x8x12xbf16, #tpu.memory_space<vmem>>, vector<1x8x12xbf16>
    %1 = vector.shape_cast %0 : vector<1x8x12xbf16> to vector<8x12xbf16>
    %c0_2 = arith.constant 0 : index
    %c0_3 = arith.constant 0 : index
    %2 = vector.load %arg2[%c0_2, %c0_3] : memref<12x2178xbf16, #tpu.memory_space<vmem>>, vector<12x2144xbf16>
    %cst = arith.constant dense<0.000000e+00> : vector<8x2144xf32>
    %3 = tpu.matmul %1, %2, %cst {dimension_numbers = #tpu.dot_dimension_numbers<[1], [0], [0], [1], [0, 0, 1, 1], [], []>} : vector<8x12xbf16>, vector<12x2144xbf16>, vector<8x2144xf32> -> vector<8x2144xf32>
    %c1 = arith.constant 1 : index
    %c0_4 = arith.constant 0 : index
    %c0_5 = arith.constant 0 : index
    %4 = vector.load %arg1[%c1, %c0_4, %c0_5] : memref<4x8x12xbf16, #tpu.memory_space<vmem>>, vector<1x8x12xbf16>
    %5 = vector.shape_cast %4 : vector<1x8x12xbf16> to vector<8x12xbf16>
    %c0_6 = arith.constant 0 : index
    %c1_7 = arith.constant 1 : index
    %6 = vector.load %arg2[%c0_6, %c1_7] : memref<12x2178xbf16, #tpu.memory_space<vmem>>, vector<12x2144xbf16>
    %cst_8 = arith.constant dense<0.000000e+00> : vector<8x2144xf32>
    %7 = tpu.matmul %5, %6, %cst_8 {dimension_numbers = #tpu.dot_dimension_numbers<[1], [0], [0], [1], [0, 0, 1, 1], [], []>} : vector<8x12xbf16>, vector<12x2144xbf16>, vector<8x2144xf32> -> vector<8x2144xf32>
    %8 = arith.addf %3, %7 : vector<8x2144xf32>
    %c2 = arith.constant 2 : index
    %c0_9 = arith.constant 0 : index
    %c0_10 = arith.constant 0 : index
    %9 = vector.load %arg1[%c2, %c0_9, %c0_10] : memref<4x8x12xbf16, #tpu.memory_space<vmem>>, vector<1x8x12xbf16>
    %10 = vector.shape_cast %9 : vector<1x8x12xbf16> to vector<8x12xbf16>
    %c0_11 = arith.constant 0 : index
    %c33 = arith.constant 33 : index
    %11 = vector.load %arg2[%c0_11, %c33] : memref<12x2178xbf16, #tpu.memory_space<vmem>>, vector<12x2144xbf16>
    %cst_12 = arith.constant dense<0.000000e+00> : vector<8x2144xf32>
    %12 = tpu.matmul %10, %11, %cst_12 {dimension_numbers = #tpu.dot_dimension_numbers<[1], [0], [0], [1], [0, 0, 1, 1], [], []>} : vector<8x12xbf16>, vector<12x2144xbf16>, vector<8x2144xf32> -> vector<8x2144xf32>
    %13 = arith.addf %8, %12 : vector<8x2144xf32>
    %c3 = arith.constant 3 : index
    %c0_13 = arith.constant 0 : index
    %c0_14 = arith.constant 0 : index
    %14 = vector.load %arg1[%c3, %c0_13, %c0_14] : memref<4x8x12xbf16, #tpu.memory_space<vmem>>, vector<1x8x12xbf16>
    %15 = vector.shape_cast %14 : vector<1x8x12xbf16> to vector<8x12xbf16>
    %c0_15 = arith.constant 0 : index
    %c34 = arith.constant 34 : index
    %16 = vector.load %arg2[%c0_15, %c34] : memref<12x2178xbf16, #tpu.memory_space<vmem>>, vector<12x2144xbf16>
    %cst_16 = arith.constant dense<0.000000e+00> : vector<8x2144xf32>
    %17 = tpu.matmul %15, %16, %cst_16 {dimension_numbers = #tpu.dot_dimension_numbers<[1], [0], [0], [1], [0, 0, 1, 1], [], []>} : vector<8x12xbf16>, vector<12x2144xbf16>, vector<8x2144xf32> -> vector<8x2144xf32>
    %18 = arith.addf %13, %17 : vector<8x2144xf32>
    %c0_17 = arith.constant 0 : index
    %c0_18 = arith.constant 0 : index
    %19 = vector.load %arg3[%c0_17, %c0_18] : memref<8x1xf32, #tpu.memory_space<vmem>>, vector<8x1xf32>
    %20 = vector.broadcast %19 : vector<8x1xf32> to vector<8x2144xf32>
    %21 = arith.addf %18, %20 : vector<8x2144xf32>
    %cst_19 = arith.constant 0.000000e+00 : f32
    %22 = vector.broadcast %cst_19 : f32 to vector<8x2144xf32>
    %23 = arith.cmpf ogt, %21, %22 : vector<8x2144xf32>
    %cst_20 = arith.constant 2.000000e-01 : f32
    %24 = vector.broadcast %cst_20 : f32 to vector<8x2144xf32>
    %25 = arith.mulf %24, %21 : vector<8x2144xf32>
    %26 = arith.select %23, %21, %25 : vector<8x2144xi1>, vector<8x2144xf32>
    %27 = arith.truncf %26 : vector<8x2144xf32> to vector<8x2144xbf16>
    %c0_21 = arith.constant 0 : index
    %c0_22 = arith.constant 0 : index
    %28 = vector.load %arg4[%c0_21, %c0_22] : memref<8x2144xbf16, #tpu.memory_space<vmem>>, vector<8x2144xbf16>
    tpu.vector_store %arg4[%c0_21, %c0_22], %27 {strides = array<i32>} : memref<8x2144xbf16, #tpu.memory_space<vmem>>, vector<8x2144xbf16>,
    return
  }
  func.func @transform_0(%arg0: i32) -> (i32, i32, i32) {
    %c0_i32 = arith.constant 0 : i32
    %c0_i32_0 = arith.constant 0 : i32
    %c0_i32_1 = arith.constant 0 : i32
    %c0_i32_2 = arith.constant 0 : i32
    return %c0_i32, %c0_i32_0, %c0_i32_1 : i32, i32, i32
  }
  func.func @transform_1(%arg0: i32) -> (i32, i32) {
    %c0_i32 = arith.constant 0 : i32
    %c0_i32_0 = arith.constant 0 : i32
    %c0_i32_1 = arith.constant 0 : i32
    return %c0_i32, %c0_i32_0 : i32, i32
  }
  func.func @transform_2(%arg0: i32) -> (i32, i32) {
    %c0_i32 = arith.constant 0 : i32
    %c0_i32_0 = arith.constant 0 : i32
    %c0_i32_1 = arith.constant 0 : i32
    return %c0_i32, %c0_i32_0 : i32, i32
  }
  func.func @transform_3(%arg0: i32) -> (i32, i32) {
    %c0_i32 = arith.constant 0 : i32
    %c0_i32_0 = arith.constant 0 : i32
    %c0_i32_1 = arith.constant 0 : i32
    return %c0_i32, %c0_i32_0 : i32, i32
  }
}

module attributes {stable_mosaic.version = 11 : i64} {
  func.func @_conv_bn_lrelu_kernel(%arg0: i32, %arg1: memref<4x16x32xbf16, #tpu.memory_space<vmem>>, %arg2: memref<32x578xbf16, #tpu.memory_space<vmem>>, %arg3: memref<1x560xf32, #tpu.memory_space<vmem>>, %arg4: memref<16x1xf32, #tpu.memory_space<vmem>>, %arg5: memref<16x1xf32, #tpu.memory_space<vmem>>, %arg6: memref<16x560xbf16, #tpu.memory_space<vmem>>) attributes {dimension_semantics = [#tpu.dimension_semantics<arbitrary>], iteration_bounds = array<i64: 1>, scalar_prefetch = 0 : i64, scratch_operands = 0 : i64, tpu.core_type = #tpu.core_type<tc>, window_params = [{pipeline_mode = #tpu.pipeline_mode<synchronous>, transform_indices = @transform_0, window_bounds = array<i64: 4, 16, 32>}, {pipeline_mode = #tpu.pipeline_mode<synchronous>, transform_indices = @transform_1, window_bounds = array<i64: 32, 578>}, {pipeline_mode = #tpu.pipeline_mode<synchronous>, transform_indices = @transform_2, window_bounds = array<i64: 1, 560>}, {pipeline_mode = #tpu.pipeline_mode<synchronous>, transform_indices = @transform_3, window_bounds = array<i64: 16, 1>}, {pipeline_mode = #tpu.pipeline_mode<synchronous>, transform_indices = @transform_4, window_bounds = array<i64: 16, 1>}, {pipeline_mode = #tpu.pipeline_mode<synchronous>, transform_indices = @transform_5, window_bounds = array<i64: 16, 560>}]} {
    %c0 = arith.constant 0 : index
    %c0_0 = arith.constant 0 : index
    %c0_1 = arith.constant 0 : index
    %0 = vector.load %arg1[%c0, %c0_0, %c0_1] : memref<4x16x32xbf16, #tpu.memory_space<vmem>>, vector<1x16x32xbf16>
    %1 = vector.shape_cast %0 : vector<1x16x32xbf16> to vector<16x32xbf16>
    %c0_2 = arith.constant 0 : index
    %c0_3 = arith.constant 0 : index
    %2 = vector.load %arg2[%c0_2, %c0_3] : memref<32x578xbf16, #tpu.memory_space<vmem>>, vector<32x560xbf16>
    %cst = arith.constant dense<0.000000e+00> : vector<16x560xf32>
    %3 = tpu.matmul %1, %2, %cst {dimension_numbers = #tpu.dot_dimension_numbers<[1], [0], [0], [1], [0, 0, 1, 1], [], []>} : vector<16x32xbf16>, vector<32x560xbf16>, vector<16x560xf32> -> vector<16x560xf32>
    %c1 = arith.constant 1 : index
    %c0_4 = arith.constant 0 : index
    %c0_5 = arith.constant 0 : index
    %4 = vector.load %arg1[%c1, %c0_4, %c0_5] : memref<4x16x32xbf16, #tpu.memory_space<vmem>>, vector<1x16x32xbf16>
    %5 = vector.shape_cast %4 : vector<1x16x32xbf16> to vector<16x32xbf16>
    %c0_6 = arith.constant 0 : index
    %c1_7 = arith.constant 1 : index
    %6 = vector.load %arg2[%c0_6, %c1_7] : memref<32x578xbf16, #tpu.memory_space<vmem>>, vector<32x560xbf16>
    %cst_8 = arith.constant dense<0.000000e+00> : vector<16x560xf32>
    %7 = tpu.matmul %5, %6, %cst_8 {dimension_numbers = #tpu.dot_dimension_numbers<[1], [0], [0], [1], [0, 0, 1, 1], [], []>} : vector<16x32xbf16>, vector<32x560xbf16>, vector<16x560xf32> -> vector<16x560xf32>
    %8 = arith.addf %3, %7 : vector<16x560xf32>
    %c2 = arith.constant 2 : index
    %c0_9 = arith.constant 0 : index
    %c0_10 = arith.constant 0 : index
    %9 = vector.load %arg1[%c2, %c0_9, %c0_10] : memref<4x16x32xbf16, #tpu.memory_space<vmem>>, vector<1x16x32xbf16>
    %10 = vector.shape_cast %9 : vector<1x16x32xbf16> to vector<16x32xbf16>
    %c0_11 = arith.constant 0 : index
    %c17 = arith.constant 17 : index
    %11 = vector.load %arg2[%c0_11, %c17] : memref<32x578xbf16, #tpu.memory_space<vmem>>, vector<32x560xbf16>
    %cst_12 = arith.constant dense<0.000000e+00> : vector<16x560xf32>
    %12 = tpu.matmul %10, %11, %cst_12 {dimension_numbers = #tpu.dot_dimension_numbers<[1], [0], [0], [1], [0, 0, 1, 1], [], []>} : vector<16x32xbf16>, vector<32x560xbf16>, vector<16x560xf32> -> vector<16x560xf32>
    %13 = arith.addf %8, %12 : vector<16x560xf32>
    %c3 = arith.constant 3 : index
    %c0_13 = arith.constant 0 : index
    %c0_14 = arith.constant 0 : index
    %14 = vector.load %arg1[%c3, %c0_13, %c0_14] : memref<4x16x32xbf16, #tpu.memory_space<vmem>>, vector<1x16x32xbf16>
    %15 = vector.shape_cast %14 : vector<1x16x32xbf16> to vector<16x32xbf16>
    %c0_15 = arith.constant 0 : index
    %c18 = arith.constant 18 : index
    %16 = vector.load %arg2[%c0_15, %c18] : memref<32x578xbf16, #tpu.memory_space<vmem>>, vector<32x560xbf16>
    %cst_16 = arith.constant dense<0.000000e+00> : vector<16x560xf32>
    %17 = tpu.matmul %15, %16, %cst_16 {dimension_numbers = #tpu.dot_dimension_numbers<[1], [0], [0], [1], [0, 0, 1, 1], [], []>} : vector<16x32xbf16>, vector<32x560xbf16>, vector<16x560xf32> -> vector<16x560xf32>
    %18 = arith.addf %13, %17 : vector<16x560xf32>
    %c0_17 = arith.constant 0 : index
    %c0_18 = arith.constant 0 : index
    %19 = vector.load %arg3[%c0_17, %c0_18] : memref<1x560xf32, #tpu.memory_space<vmem>>, vector<1x560xf32>
    %20 = vector.broadcast %19 : vector<1x560xf32> to vector<16x560xf32>
    %21 = arith.mulf %18, %20 : vector<16x560xf32>
    %cst_19 = arith.constant dense<0.000000e+00> : vector<16xf32>
    %22 = vector.multi_reduction <add>, %21, %cst_19 [1] : vector<16x560xf32> to vector<16xf32>
    %23 = vector.shape_cast %22 : vector<16xf32> to vector<16x1xf32>
    %cst_20 = arith.constant 5.120000e+02 : f32
    %24 = vector.broadcast %cst_20 : f32 to vector<16x1xf32>
    %25 = arith.divf %23, %24 : vector<16x1xf32>
    %26 = arith.mulf %18, %18 : vector<16x560xf32>
    %27 = vector.broadcast %19 : vector<1x560xf32> to vector<16x560xf32>
    %28 = arith.mulf %26, %27 : vector<16x560xf32>
    %cst_21 = arith.constant dense<0.000000e+00> : vector<16xf32>
    %29 = vector.multi_reduction <add>, %28, %cst_21 [1] : vector<16x560xf32> to vector<16xf32>
    %30 = vector.shape_cast %29 : vector<16xf32> to vector<16x1xf32>
    %cst_22 = arith.constant 5.120000e+02 : f32
    %31 = vector.broadcast %cst_22 : f32 to vector<16x1xf32>
    %32 = arith.divf %30, %31 : vector<16x1xf32>
    %33 = arith.mulf %25, %25 : vector<16x1xf32>
    %34 = arith.subf %32, %33 : vector<16x1xf32>
    %35 = vector.broadcast %25 : vector<16x1xf32> to vector<16x560xf32>
    %36 = arith.subf %18, %35 : vector<16x560xf32>
    %cst_23 = arith.constant 9.99999974E-6 : f32
    %37 = vector.broadcast %cst_23 : f32 to vector<16x1xf32>
    %38 = arith.addf %34, %37 : vector<16x1xf32>
    %39 = math.rsqrt %38 : vector<16x1xf32>
    %40 = vector.broadcast %39 : vector<16x1xf32> to vector<16x560xf32>
    %41 = arith.mulf %36, %40 : vector<16x560xf32>
    %c0_24 = arith.constant 0 : index
    %c0_25 = arith.constant 0 : index
    %42 = vector.load %arg4[%c0_24, %c0_25] : memref<16x1xf32, #tpu.memory_space<vmem>>, vector<16x1xf32>
    %43 = vector.broadcast %42 : vector<16x1xf32> to vector<16x560xf32>
    %44 = arith.mulf %41, %43 : vector<16x560xf32>
    %c0_26 = arith.constant 0 : index
    %c0_27 = arith.constant 0 : index
    %45 = vector.load %arg5[%c0_26, %c0_27] : memref<16x1xf32, #tpu.memory_space<vmem>>, vector<16x1xf32>
    %46 = vector.broadcast %45 : vector<16x1xf32> to vector<16x560xf32>
    %47 = arith.addf %44, %46 : vector<16x560xf32>
    %cst_28 = arith.constant 0.000000e+00 : f32
    %48 = vector.broadcast %cst_28 : f32 to vector<16x560xf32>
    %49 = arith.cmpf ogt, %47, %48 : vector<16x560xf32>
    %cst_29 = arith.constant 2.000000e-01 : f32
    %50 = vector.broadcast %cst_29 : f32 to vector<16x560xf32>
    %51 = arith.mulf %50, %47 : vector<16x560xf32>
    %52 = arith.select %49, %47, %51 : vector<16x560xi1>, vector<16x560xf32>
    %53 = arith.truncf %52 : vector<16x560xf32> to vector<16x560xbf16>
    %c0_30 = arith.constant 0 : index
    %c0_31 = arith.constant 0 : index
    %54 = vector.load %arg6[%c0_30, %c0_31] : memref<16x560xbf16, #tpu.memory_space<vmem>>, vector<16x560xbf16>
    tpu.vector_store %arg6[%c0_30, %c0_31], %53 {strides = array<i32>} : memref<16x560xbf16, #tpu.memory_space<vmem>>, vector<16x560xbf16>,
    return
  }
  func.func @transform_0(%arg0: i32) -> (i32, i32, i32) {
    %c0_i32 = arith.constant 0 : i32
    %c0_i32_0 = arith.constant 0 : i32
    %c0_i32_1 = arith.constant 0 : i32
    %c0_i32_2 = arith.constant 0 : i32
    return %c0_i32, %c0_i32_0, %c0_i32_1 : i32, i32, i32
  }
  func.func @transform_1(%arg0: i32) -> (i32, i32) {
    %c0_i32 = arith.constant 0 : i32
    %c0_i32_0 = arith.constant 0 : i32
    %c0_i32_1 = arith.constant 0 : i32
    return %c0_i32, %c0_i32_0 : i32, i32
  }
  func.func @transform_2(%arg0: i32) -> (i32, i32) {
    %c0_i32 = arith.constant 0 : i32
    %c0_i32_0 = arith.constant 0 : i32
    %c0_i32_1 = arith.constant 0 : i32
    return %c0_i32, %c0_i32_0 : i32, i32
  }
  func.func @transform_3(%arg0: i32) -> (i32, i32) {
    %c0_i32 = arith.constant 0 : i32
    %c0_i32_0 = arith.constant 0 : i32
    %c0_i32_1 = arith.constant 0 : i32
    return %c0_i32, %c0_i32_0 : i32, i32
  }
  func.func @transform_4(%arg0: i32) -> (i32, i32) {
    %c0_i32 = arith.constant 0 : i32
    %c0_i32_0 = arith.constant 0 : i32
    %c0_i32_1 = arith.constant 0 : i32
    return %c0_i32, %c0_i32_0 : i32, i32
  }
  func.func @transform_5(%arg0: i32) -> (i32, i32) {
    %c0_i32 = arith.constant 0 : i32
    %c0_i32_0 = arith.constant 0 : i32
    %c0_i32_1 = arith.constant 0 : i32
    return %c0_i32, %c0_i32_0 : i32, i32
  }
}

module attributes {stable_mosaic.version = 11 : i64} {
  func.func @_conv_bn_lrelu_kernel(%arg0: i32, %arg1: memref<4x32x64xbf16, #tpu.memory_space<vmem>>, %arg2: memref<64x162xbf16, #tpu.memory_space<vmem>>, %arg3: memref<1x152xf32, #tpu.memory_space<vmem>>, %arg4: memref<32x1xf32, #tpu.memory_space<vmem>>, %arg5: memref<32x1xf32, #tpu.memory_space<vmem>>, %arg6: memref<32x152xbf16, #tpu.memory_space<vmem>>) attributes {dimension_semantics = [#tpu.dimension_semantics<arbitrary>], iteration_bounds = array<i64: 1>, scalar_prefetch = 0 : i64, scratch_operands = 0 : i64, tpu.core_type = #tpu.core_type<tc>, window_params = [{pipeline_mode = #tpu.pipeline_mode<synchronous>, transform_indices = @transform_0, window_bounds = array<i64: 4, 32, 64>}, {pipeline_mode = #tpu.pipeline_mode<synchronous>, transform_indices = @transform_1, window_bounds = array<i64: 64, 162>}, {pipeline_mode = #tpu.pipeline_mode<synchronous>, transform_indices = @transform_2, window_bounds = array<i64: 1, 152>}, {pipeline_mode = #tpu.pipeline_mode<synchronous>, transform_indices = @transform_3, window_bounds = array<i64: 32, 1>}, {pipeline_mode = #tpu.pipeline_mode<synchronous>, transform_indices = @transform_4, window_bounds = array<i64: 32, 1>}, {pipeline_mode = #tpu.pipeline_mode<synchronous>, transform_indices = @transform_5, window_bounds = array<i64: 32, 152>}]} {
    %c0 = arith.constant 0 : index
    %c0_0 = arith.constant 0 : index
    %c0_1 = arith.constant 0 : index
    %0 = vector.load %arg1[%c0, %c0_0, %c0_1] : memref<4x32x64xbf16, #tpu.memory_space<vmem>>, vector<1x32x64xbf16>
    %1 = vector.shape_cast %0 : vector<1x32x64xbf16> to vector<32x64xbf16>
    %c0_2 = arith.constant 0 : index
    %c0_3 = arith.constant 0 : index
    %2 = vector.load %arg2[%c0_2, %c0_3] : memref<64x162xbf16, #tpu.memory_space<vmem>>, vector<64x152xbf16>
    %cst = arith.constant dense<0.000000e+00> : vector<32x152xf32>
    %3 = tpu.matmul %1, %2, %cst {dimension_numbers = #tpu.dot_dimension_numbers<[1], [0], [0], [1], [0, 0, 1, 1], [], []>} : vector<32x64xbf16>, vector<64x152xbf16>, vector<32x152xf32> -> vector<32x152xf32>
    %c1 = arith.constant 1 : index
    %c0_4 = arith.constant 0 : index
    %c0_5 = arith.constant 0 : index
    %4 = vector.load %arg1[%c1, %c0_4, %c0_5] : memref<4x32x64xbf16, #tpu.memory_space<vmem>>, vector<1x32x64xbf16>
    %5 = vector.shape_cast %4 : vector<1x32x64xbf16> to vector<32x64xbf16>
    %c0_6 = arith.constant 0 : index
    %c1_7 = arith.constant 1 : index
    %6 = vector.load %arg2[%c0_6, %c1_7] : memref<64x162xbf16, #tpu.memory_space<vmem>>, vector<64x152xbf16>
    %cst_8 = arith.constant dense<0.000000e+00> : vector<32x152xf32>
    %7 = tpu.matmul %5, %6, %cst_8 {dimension_numbers = #tpu.dot_dimension_numbers<[1], [0], [0], [1], [0, 0, 1, 1], [], []>} : vector<32x64xbf16>, vector<64x152xbf16>, vector<32x152xf32> -> vector<32x152xf32>
    %8 = arith.addf %3, %7 : vector<32x152xf32>
    %c2 = arith.constant 2 : index
    %c0_9 = arith.constant 0 : index
    %c0_10 = arith.constant 0 : index
    %9 = vector.load %arg1[%c2, %c0_9, %c0_10] : memref<4x32x64xbf16, #tpu.memory_space<vmem>>, vector<1x32x64xbf16>
    %10 = vector.shape_cast %9 : vector<1x32x64xbf16> to vector<32x64xbf16>
    %c0_11 = arith.constant 0 : index
    %c9 = arith.constant 9 : index
    %11 = vector.load %arg2[%c0_11, %c9] : memref<64x162xbf16, #tpu.memory_space<vmem>>, vector<64x152xbf16>
    %cst_12 = arith.constant dense<0.000000e+00> : vector<32x152xf32>
    %12 = tpu.matmul %10, %11, %cst_12 {dimension_numbers = #tpu.dot_dimension_numbers<[1], [0], [0], [1], [0, 0, 1, 1], [], []>} : vector<32x64xbf16>, vector<64x152xbf16>, vector<32x152xf32> -> vector<32x152xf32>
    %13 = arith.addf %8, %12 : vector<32x152xf32>
    %c3 = arith.constant 3 : index
    %c0_13 = arith.constant 0 : index
    %c0_14 = arith.constant 0 : index
    %14 = vector.load %arg1[%c3, %c0_13, %c0_14] : memref<4x32x64xbf16, #tpu.memory_space<vmem>>, vector<1x32x64xbf16>
    %15 = vector.shape_cast %14 : vector<1x32x64xbf16> to vector<32x64xbf16>
    %c0_15 = arith.constant 0 : index
    %c10 = arith.constant 10 : index
    %16 = vector.load %arg2[%c0_15, %c10] : memref<64x162xbf16, #tpu.memory_space<vmem>>, vector<64x152xbf16>
    %cst_16 = arith.constant dense<0.000000e+00> : vector<32x152xf32>
    %17 = tpu.matmul %15, %16, %cst_16 {dimension_numbers = #tpu.dot_dimension_numbers<[1], [0], [0], [1], [0, 0, 1, 1], [], []>} : vector<32x64xbf16>, vector<64x152xbf16>, vector<32x152xf32> -> vector<32x152xf32>
    %18 = arith.addf %13, %17 : vector<32x152xf32>
    %c0_17 = arith.constant 0 : index
    %c0_18 = arith.constant 0 : index
    %19 = vector.load %arg3[%c0_17, %c0_18] : memref<1x152xf32, #tpu.memory_space<vmem>>, vector<1x152xf32>
    %20 = vector.broadcast %19 : vector<1x152xf32> to vector<32x152xf32>
    %21 = arith.mulf %18, %20 : vector<32x152xf32>
    %cst_19 = arith.constant dense<0.000000e+00> : vector<32xf32>
    %22 = vector.multi_reduction <add>, %21, %cst_19 [1] : vector<32x152xf32> to vector<32xf32>
    %23 = vector.shape_cast %22 : vector<32xf32> to vector<32x1xf32>
    %cst_20 = arith.constant 1.280000e+02 : f32
    %24 = vector.broadcast %cst_20 : f32 to vector<32x1xf32>
    %25 = arith.divf %23, %24 : vector<32x1xf32>
    %26 = arith.mulf %18, %18 : vector<32x152xf32>
    %27 = vector.broadcast %19 : vector<1x152xf32> to vector<32x152xf32>
    %28 = arith.mulf %26, %27 : vector<32x152xf32>
    %cst_21 = arith.constant dense<0.000000e+00> : vector<32xf32>
    %29 = vector.multi_reduction <add>, %28, %cst_21 [1] : vector<32x152xf32> to vector<32xf32>
    %30 = vector.shape_cast %29 : vector<32xf32> to vector<32x1xf32>
    %cst_22 = arith.constant 1.280000e+02 : f32
    %31 = vector.broadcast %cst_22 : f32 to vector<32x1xf32>
    %32 = arith.divf %30, %31 : vector<32x1xf32>
    %33 = arith.mulf %25, %25 : vector<32x1xf32>
    %34 = arith.subf %32, %33 : vector<32x1xf32>
    %35 = vector.broadcast %25 : vector<32x1xf32> to vector<32x152xf32>
    %36 = arith.subf %18, %35 : vector<32x152xf32>
    %cst_23 = arith.constant 9.99999974E-6 : f32
    %37 = vector.broadcast %cst_23 : f32 to vector<32x1xf32>
    %38 = arith.addf %34, %37 : vector<32x1xf32>
    %39 = math.rsqrt %38 : vector<32x1xf32>
    %40 = vector.broadcast %39 : vector<32x1xf32> to vector<32x152xf32>
    %41 = arith.mulf %36, %40 : vector<32x152xf32>
    %c0_24 = arith.constant 0 : index
    %c0_25 = arith.constant 0 : index
    %42 = vector.load %arg4[%c0_24, %c0_25] : memref<32x1xf32, #tpu.memory_space<vmem>>, vector<32x1xf32>
    %43 = vector.broadcast %42 : vector<32x1xf32> to vector<32x152xf32>
    %44 = arith.mulf %41, %43 : vector<32x152xf32>
    %c0_26 = arith.constant 0 : index
    %c0_27 = arith.constant 0 : index
    %45 = vector.load %arg5[%c0_26, %c0_27] : memref<32x1xf32, #tpu.memory_space<vmem>>, vector<32x1xf32>
    %46 = vector.broadcast %45 : vector<32x1xf32> to vector<32x152xf32>
    %47 = arith.addf %44, %46 : vector<32x152xf32>
    %cst_28 = arith.constant 0.000000e+00 : f32
    %48 = vector.broadcast %cst_28 : f32 to vector<32x152xf32>
    %49 = arith.cmpf ogt, %47, %48 : vector<32x152xf32>
    %cst_29 = arith.constant 2.000000e-01 : f32
    %50 = vector.broadcast %cst_29 : f32 to vector<32x152xf32>
    %51 = arith.mulf %50, %47 : vector<32x152xf32>
    %52 = arith.select %49, %47, %51 : vector<32x152xi1>, vector<32x152xf32>
    %53 = arith.truncf %52 : vector<32x152xf32> to vector<32x152xbf16>
    %c0_30 = arith.constant 0 : index
    %c0_31 = arith.constant 0 : index
    %54 = vector.load %arg6[%c0_30, %c0_31] : memref<32x152xbf16, #tpu.memory_space<vmem>>, vector<32x152xbf16>
    tpu.vector_store %arg6[%c0_30, %c0_31], %53 {strides = array<i32>} : memref<32x152xbf16, #tpu.memory_space<vmem>>, vector<32x152xbf16>,
    return
  }
  func.func @transform_0(%arg0: i32) -> (i32, i32, i32) {
    %c0_i32 = arith.constant 0 : i32
    %c0_i32_0 = arith.constant 0 : i32
    %c0_i32_1 = arith.constant 0 : i32
    %c0_i32_2 = arith.constant 0 : i32
    return %c0_i32, %c0_i32_0, %c0_i32_1 : i32, i32, i32
  }
  func.func @transform_1(%arg0: i32) -> (i32, i32) {
    %c0_i32 = arith.constant 0 : i32
    %c0_i32_0 = arith.constant 0 : i32
    %c0_i32_1 = arith.constant 0 : i32
    return %c0_i32, %c0_i32_0 : i32, i32
  }
  func.func @transform_2(%arg0: i32) -> (i32, i32) {
    %c0_i32 = arith.constant 0 : i32
    %c0_i32_0 = arith.constant 0 : i32
    %c0_i32_1 = arith.constant 0 : i32
    return %c0_i32, %c0_i32_0 : i32, i32
  }
  func.func @transform_3(%arg0: i32) -> (i32, i32) {
    %c0_i32 = arith.constant 0 : i32
    %c0_i32_0 = arith.constant 0 : i32
    %c0_i32_1 = arith.constant 0 : i32
    return %c0_i32, %c0_i32_0 : i32, i32
  }
  func.func @transform_4(%arg0: i32) -> (i32, i32) {
    %c0_i32 = arith.constant 0 : i32
    %c0_i32_0 = arith.constant 0 : i32
    %c0_i32_1 = arith.constant 0 : i32
    return %c0_i32, %c0_i32_0 : i32, i32
  }
  func.func @transform_5(%arg0: i32) -> (i32, i32) {
    %c0_i32 = arith.constant 0 : i32
    %c0_i32_0 = arith.constant 0 : i32
    %c0_i32_1 = arith.constant 0 : i32
    return %c0_i32, %c0_i32_0 : i32, i32
  }
}

module attributes {stable_mosaic.version = 11 : i64} {
  func.func @_conv_bn_lrelu_head_kernel(%arg0: i32, %arg1: memref<4x64x128xbf16, #tpu.memory_space<vmem>>, %arg2: memref<128x50xbf16, #tpu.memory_space<vmem>>, %arg3: memref<1x44xf32, #tpu.memory_space<vmem>>, %arg4: memref<64x1xf32, #tpu.memory_space<vmem>>, %arg5: memref<64x1xf32, #tpu.memory_space<vmem>>, %arg6: memref<64x16xf32, #tpu.memory_space<vmem>>, %arg7: memref<1x1xf32, #tpu.memory_space<vmem>>, %arg8: memref<1x128xf32, #tpu.memory_space<vmem>>, %arg9: memref<64x44xf32, #tpu.memory_space<vmem>>) attributes {dimension_semantics = [#tpu.dimension_semantics<arbitrary>], iteration_bounds = array<i64: 1>, scalar_prefetch = 0 : i64, scratch_operands = 1 : i64, tpu.core_type = #tpu.core_type<tc>, window_params = [{pipeline_mode = #tpu.pipeline_mode<synchronous>, transform_indices = @transform_0, window_bounds = array<i64: 4, 64, 128>}, {pipeline_mode = #tpu.pipeline_mode<synchronous>, transform_indices = @transform_1, window_bounds = array<i64: 128, 50>}, {pipeline_mode = #tpu.pipeline_mode<synchronous>, transform_indices = @transform_2, window_bounds = array<i64: 1, 44>}, {pipeline_mode = #tpu.pipeline_mode<synchronous>, transform_indices = @transform_3, window_bounds = array<i64: 64, 1>}, {pipeline_mode = #tpu.pipeline_mode<synchronous>, transform_indices = @transform_4, window_bounds = array<i64: 64, 1>}, {pipeline_mode = #tpu.pipeline_mode<synchronous>, transform_indices = @transform_5, window_bounds = array<i64: 64, 16>}, {pipeline_mode = #tpu.pipeline_mode<synchronous>, transform_indices = @transform_6, window_bounds = array<i64: 1, 1>}, {pipeline_mode = #tpu.pipeline_mode<synchronous>, transform_indices = @transform_7, window_bounds = array<i64: 1, 128>}]} {
    %c0 = arith.constant 0 : index
    %c0_0 = arith.constant 0 : index
    %c0_1 = arith.constant 0 : index
    %0 = vector.load %arg1[%c0, %c0_0, %c0_1] : memref<4x64x128xbf16, #tpu.memory_space<vmem>>, vector<1x64x128xbf16>
    %1 = vector.shape_cast %0 : vector<1x64x128xbf16> to vector<64x128xbf16>
    %c0_2 = arith.constant 0 : index
    %c0_3 = arith.constant 0 : index
    %2 = vector.load %arg2[%c0_2, %c0_3] : memref<128x50xbf16, #tpu.memory_space<vmem>>, vector<128x44xbf16>
    %cst = arith.constant dense<0.000000e+00> : vector<64x44xf32>
    %3 = tpu.matmul %1, %2, %cst {dimension_numbers = #tpu.dot_dimension_numbers<[1], [0], [0], [1], [0, 0, 1, 1], [], []>} : vector<64x128xbf16>, vector<128x44xbf16>, vector<64x44xf32> -> vector<64x44xf32>
    %c1 = arith.constant 1 : index
    %c0_4 = arith.constant 0 : index
    %c0_5 = arith.constant 0 : index
    %4 = vector.load %arg1[%c1, %c0_4, %c0_5] : memref<4x64x128xbf16, #tpu.memory_space<vmem>>, vector<1x64x128xbf16>
    %5 = vector.shape_cast %4 : vector<1x64x128xbf16> to vector<64x128xbf16>
    %c0_6 = arith.constant 0 : index
    %c1_7 = arith.constant 1 : index
    %6 = vector.load %arg2[%c0_6, %c1_7] : memref<128x50xbf16, #tpu.memory_space<vmem>>, vector<128x44xbf16>
    %cst_8 = arith.constant dense<0.000000e+00> : vector<64x44xf32>
    %7 = tpu.matmul %5, %6, %cst_8 {dimension_numbers = #tpu.dot_dimension_numbers<[1], [0], [0], [1], [0, 0, 1, 1], [], []>} : vector<64x128xbf16>, vector<128x44xbf16>, vector<64x44xf32> -> vector<64x44xf32>
    %8 = arith.addf %3, %7 : vector<64x44xf32>
    %c2 = arith.constant 2 : index
    %c0_9 = arith.constant 0 : index
    %c0_10 = arith.constant 0 : index
    %9 = vector.load %arg1[%c2, %c0_9, %c0_10] : memref<4x64x128xbf16, #tpu.memory_space<vmem>>, vector<1x64x128xbf16>
    %10 = vector.shape_cast %9 : vector<1x64x128xbf16> to vector<64x128xbf16>
    %c0_11 = arith.constant 0 : index
    %c5 = arith.constant 5 : index
    %11 = vector.load %arg2[%c0_11, %c5] : memref<128x50xbf16, #tpu.memory_space<vmem>>, vector<128x44xbf16>
    %cst_12 = arith.constant dense<0.000000e+00> : vector<64x44xf32>
    %12 = tpu.matmul %10, %11, %cst_12 {dimension_numbers = #tpu.dot_dimension_numbers<[1], [0], [0], [1], [0, 0, 1, 1], [], []>} : vector<64x128xbf16>, vector<128x44xbf16>, vector<64x44xf32> -> vector<64x44xf32>
    %13 = arith.addf %8, %12 : vector<64x44xf32>
    %c3 = arith.constant 3 : index
    %c0_13 = arith.constant 0 : index
    %c0_14 = arith.constant 0 : index
    %14 = vector.load %arg1[%c3, %c0_13, %c0_14] : memref<4x64x128xbf16, #tpu.memory_space<vmem>>, vector<1x64x128xbf16>
    %15 = vector.shape_cast %14 : vector<1x64x128xbf16> to vector<64x128xbf16>
    %c0_15 = arith.constant 0 : index
    %c6 = arith.constant 6 : index
    %16 = vector.load %arg2[%c0_15, %c6] : memref<128x50xbf16, #tpu.memory_space<vmem>>, vector<128x44xbf16>
    %cst_16 = arith.constant dense<0.000000e+00> : vector<64x44xf32>
    %17 = tpu.matmul %15, %16, %cst_16 {dimension_numbers = #tpu.dot_dimension_numbers<[1], [0], [0], [1], [0, 0, 1, 1], [], []>} : vector<64x128xbf16>, vector<128x44xbf16>, vector<64x44xf32> -> vector<64x44xf32>
    %18 = arith.addf %13, %17 : vector<64x44xf32>
    %c0_17 = arith.constant 0 : index
    %c0_18 = arith.constant 0 : index
    %19 = vector.load %arg3[%c0_17, %c0_18] : memref<1x44xf32, #tpu.memory_space<vmem>>, vector<1x44xf32>
    %20 = vector.broadcast %19 : vector<1x44xf32> to vector<64x44xf32>
    %21 = arith.mulf %18, %20 : vector<64x44xf32>
    %cst_19 = arith.constant dense<0.000000e+00> : vector<64xf32>
    %22 = vector.multi_reduction <add>, %21, %cst_19 [1] : vector<64x44xf32> to vector<64xf32>
    %23 = vector.shape_cast %22 : vector<64xf32> to vector<64x1xf32>
    %cst_20 = arith.constant 3.200000e+01 : f32
    %24 = vector.broadcast %cst_20 : f32 to vector<64x1xf32>
    %25 = arith.divf %23, %24 : vector<64x1xf32>
    %26 = arith.mulf %18, %18 : vector<64x44xf32>
    %27 = vector.broadcast %19 : vector<1x44xf32> to vector<64x44xf32>
    %28 = arith.mulf %26, %27 : vector<64x44xf32>
    %cst_21 = arith.constant dense<0.000000e+00> : vector<64xf32>
    %29 = vector.multi_reduction <add>, %28, %cst_21 [1] : vector<64x44xf32> to vector<64xf32>
    %30 = vector.shape_cast %29 : vector<64xf32> to vector<64x1xf32>
    %cst_22 = arith.constant 3.200000e+01 : f32
    %31 = vector.broadcast %cst_22 : f32 to vector<64x1xf32>
    %32 = arith.divf %30, %31 : vector<64x1xf32>
    %33 = arith.mulf %25, %25 : vector<64x1xf32>
    %34 = arith.subf %32, %33 : vector<64x1xf32>
    %35 = vector.broadcast %25 : vector<64x1xf32> to vector<64x44xf32>
    %36 = arith.subf %18, %35 : vector<64x44xf32>
    %cst_23 = arith.constant 9.99999974E-6 : f32
    %37 = vector.broadcast %cst_23 : f32 to vector<64x1xf32>
    %38 = arith.addf %34, %37 : vector<64x1xf32>
    %39 = math.rsqrt %38 : vector<64x1xf32>
    %40 = vector.broadcast %39 : vector<64x1xf32> to vector<64x44xf32>
    %41 = arith.mulf %36, %40 : vector<64x44xf32>
    %c0_24 = arith.constant 0 : index
    %c0_25 = arith.constant 0 : index
    %42 = vector.load %arg4[%c0_24, %c0_25] : memref<64x1xf32, #tpu.memory_space<vmem>>, vector<64x1xf32>
    %43 = vector.broadcast %42 : vector<64x1xf32> to vector<64x44xf32>
    %44 = arith.mulf %41, %43 : vector<64x44xf32>
    %c0_26 = arith.constant 0 : index
    %c0_27 = arith.constant 0 : index
    %45 = vector.load %arg5[%c0_26, %c0_27] : memref<64x1xf32, #tpu.memory_space<vmem>>, vector<64x1xf32>
    %46 = vector.broadcast %45 : vector<64x1xf32> to vector<64x44xf32>
    %47 = arith.addf %44, %46 : vector<64x44xf32>
    %cst_28 = arith.constant 0.000000e+00 : f32
    %48 = vector.broadcast %cst_28 : f32 to vector<64x44xf32>
    %49 = arith.cmpf ogt, %47, %48 : vector<64x44xf32>
    %cst_29 = arith.constant 2.000000e-01 : f32
    %50 = vector.broadcast %cst_29 : f32 to vector<64x44xf32>
    %51 = arith.mulf %50, %47 : vector<64x44xf32>
    %52 = arith.select %49, %47, %51 : vector<64x44xi1>, vector<64x44xf32>
    %c0_30 = arith.constant 0 : index
    %c0_31 = arith.constant 0 : index
    %53 = vector.load %arg9[%c0_30, %c0_31] : memref<64x44xf32, #tpu.memory_space<vmem>>, vector<64x44xf32>
    tpu.vector_store %arg9[%c0_30, %c0_31], %52 {strides = array<i32>} : memref<64x44xf32, #tpu.memory_space<vmem>>, vector<64x44xf32>,
    %54 = tpu.iota {dimensions = array<i32: 1>} : vector<1x128xi32>
    %cst_32 = arith.constant 0.000000e+00 : f32
    %55 = vector.broadcast %cst_32 : f32 to vector<1x128xf32>
    %cst_33 = arith.constant 0.000000e+00 : f32
    %56 = vector.broadcast %cst_33 : f32 to vector<64x4xf32>
    %c0_34 = arith.constant 0 : index
    %c0_35 = arith.constant 0 : index
    %57 = vector.load %arg9[%c0_34, %c0_35] : memref<64x44xf32, #tpu.memory_space<vmem>>, vector<64x4xf32>
    %c0_36 = arith.constant 0 : index
    %c0_37 = arith.constant 0 : index
    %58 = vector.load %arg6[%c0_36, %c0_37] : memref<64x16xf32, #tpu.memory_space<vmem>>, vector<64x4xf32>
    %59 = arith.mulf %57, %58 : vector<64x4xf32>
    %60 = arith.addf %56, %59 : vector<64x4xf32>
    %c0_38 = arith.constant 0 : index
    %c5_39 = arith.constant 5 : index
    %61 = vector.load %arg9[%c0_38, %c5_39] : memref<64x44xf32, #tpu.memory_space<vmem>>, vector<64x4xf32>
    %c0_40 = arith.constant 0 : index
    %c4 = arith.constant 4 : index
    %62 = vector.load %arg6[%c0_40, %c4] : memref<64x16xf32, #tpu.memory_space<vmem>>, vector<64x4xf32>
    %63 = arith.mulf %61, %62 : vector<64x4xf32>
    %64 = arith.addf %60, %63 : vector<64x4xf32>
    %c0_41 = arith.constant 0 : index
    %c10 = arith.constant 10 : index
    %65 = vector.load %arg9[%c0_41, %c10] : memref<64x44xf32, #tpu.memory_space<vmem>>, vector<64x4xf32>
    %c0_42 = arith.constant 0 : index
    %c8 = arith.constant 8 : index
    %66 = vector.load %arg6[%c0_42, %c8] : memref<64x16xf32, #tpu.memory_space<vmem>>, vector<64x4xf32>
    %67 = arith.mulf %65, %66 : vector<64x4xf32>
    %68 = arith.addf %64, %67 : vector<64x4xf32>
    %c0_43 = arith.constant 0 : index
    %c15 = arith.constant 15 : index
    %69 = vector.load %arg9[%c0_43, %c15] : memref<64x44xf32, #tpu.memory_space<vmem>>, vector<64x4xf32>
    %c0_44 = arith.constant 0 : index
    %c12 = arith.constant 12 : index
    %70 = vector.load %arg6[%c0_44, %c12] : memref<64x16xf32, #tpu.memory_space<vmem>>, vector<64x4xf32>
    %71 = arith.mulf %69, %70 : vector<64x4xf32>
    %72 = arith.addf %68, %71 : vector<64x4xf32>
    %cst_45 = arith.constant dense<0.000000e+00> : vector<64xf32>
    %73 = vector.multi_reduction <add>, %72, %cst_45 [1] : vector<64x4xf32> to vector<64xf32>
    %74 = vector.shape_cast %73 : vector<64xf32> to vector<64x1xf32>
    %cst_46 = arith.constant dense<0.000000e+00> : vector<1xf32>
    %75 = vector.multi_reduction <add>, %74, %cst_46 [0] : vector<64x1xf32> to vector<1xf32>
    %76 = vector.shape_cast %75 : vector<1xf32> to vector<1x1xf32>
    %c0_47 = arith.constant 0 : index
    %c0_48 = arith.constant 0 : index
    %77 = vector.load %arg7[%c0_47, %c0_48] : memref<1x1xf32, #tpu.memory_space<vmem>>, vector<1x1xf32>
    %78 = arith.addf %76, %77 : vector<1x1xf32>
    %c0_i32 = arith.constant 0 : i32
    %79 = vector.broadcast %c0_i32 : i32 to vector<1x128xi32>
    %80 = arith.cmpi eq, %54, %79 : vector<1x128xi32>
    %cst_49 = arith.constant 0.000000e+00 : f32
    %81 = vector.shape_cast %78 : vector<1x1xf32> to vector<1x1xf32>
    %82 = vector.broadcast %81 : vector<1x1xf32> to vector<1x128xf32>
    %83 = vector.broadcast %cst_49 : f32 to vector<1x128xf32>
    %84 = arith.select %80, %82, %83 : vector<1x128xi1>, vector<1x128xf32>
    %85 = arith.addf %55, %84 : vector<1x128xf32>
    %cst_50 = arith.constant 0.000000e+00 : f32
    %86 = vector.broadcast %cst_50 : f32 to vector<64x4xf32>
    %c0_51 = arith.constant 0 : index
    %c25 = arith.constant 25 : index
    %87 = vector.load %arg9[%c0_51, %c25] : memref<64x44xf32, #tpu.memory_space<vmem>>, vector<64x4xf32>
    %c0_52 = arith.constant 0 : index
    %c0_53 = arith.constant 0 : index
    %88 = vector.load %arg6[%c0_52, %c0_53] : memref<64x16xf32, #tpu.memory_space<vmem>>, vector<64x4xf32>
    %89 = arith.mulf %87, %88 : vector<64x4xf32>
    %90 = arith.addf %86, %89 : vector<64x4xf32>
    %c0_54 = arith.constant 0 : index
    %c30 = arith.constant 30 : index
    %91 = vector.load %arg9[%c0_54, %c30] : memref<64x44xf32, #tpu.memory_space<vmem>>, vector<64x4xf32>
    %c0_55 = arith.constant 0 : index
    %c4_56 = arith.constant 4 : index
    %92 = vector.load %arg6[%c0_55, %c4_56] : memref<64x16xf32, #tpu.memory_space<vmem>>, vector<64x4xf32>
    %93 = arith.mulf %91, %92 : vector<64x4xf32>
    %94 = arith.addf %90, %93 : vector<64x4xf32>
    %c0_57 = arith.constant 0 : index
    %c35 = arith.constant 35 : index
    %95 = vector.load %arg9[%c0_57, %c35] : memref<64x44xf32, #tpu.memory_space<vmem>>, vector<64x4xf32>
    %c0_58 = arith.constant 0 : index
    %c8_59 = arith.constant 8 : index
    %96 = vector.load %arg6[%c0_58, %c8_59] : memref<64x16xf32, #tpu.memory_space<vmem>>, vector<64x4xf32>
    %97 = arith.mulf %95, %96 : vector<64x4xf32>
    %98 = arith.addf %94, %97 : vector<64x4xf32>
    %c0_60 = arith.constant 0 : index
    %c40 = arith.constant 40 : index
    %99 = vector.load %arg9[%c0_60, %c40] : memref<64x44xf32, #tpu.memory_space<vmem>>, vector<64x4xf32>
    %c0_61 = arith.constant 0 : index
    %c12_62 = arith.constant 12 : index
    %100 = vector.load %arg6[%c0_61, %c12_62] : memref<64x16xf32, #tpu.memory_space<vmem>>, vector<64x4xf32>
    %101 = arith.mulf %99, %100 : vector<64x4xf32>
    %102 = arith.addf %98, %101 : vector<64x4xf32>
    %cst_63 = arith.constant dense<0.000000e+00> : vector<64xf32>
    %103 = vector.multi_reduction <add>, %102, %cst_63 [1] : vector<64x4xf32> to vector<64xf32>
    %104 = vector.shape_cast %103 : vector<64xf32> to vector<64x1xf32>
    %cst_64 = arith.constant dense<0.000000e+00> : vector<1xf32>
    %105 = vector.multi_reduction <add>, %104, %cst_64 [0] : vector<64x1xf32> to vector<1xf32>
    %106 = vector.shape_cast %105 : vector<1xf32> to vector<1x1xf32>
    %c0_65 = arith.constant 0 : index
    %c0_66 = arith.constant 0 : index
    %107 = vector.load %arg7[%c0_65, %c0_66] : memref<1x1xf32, #tpu.memory_space<vmem>>, vector<1x1xf32>
    %108 = arith.addf %106, %107 : vector<1x1xf32>
    %c1_i32 = arith.constant 1 : i32
    %109 = vector.broadcast %c1_i32 : i32 to vector<1x128xi32>
    %110 = arith.cmpi eq, %54, %109 : vector<1x128xi32>
    %cst_67 = arith.constant 0.000000e+00 : f32
    %111 = vector.shape_cast %108 : vector<1x1xf32> to vector<1x1xf32>
    %112 = vector.broadcast %111 : vector<1x1xf32> to vector<1x128xf32>
    %113 = vector.broadcast %cst_67 : f32 to vector<1x128xf32>
    %114 = arith.select %110, %112, %113 : vector<1x128xi1>, vector<1x128xf32>
    %115 = arith.addf %85, %114 : vector<1x128xf32>
    %116 = arith.negf %115 : vector<1x128xf32>
    %117 = math.exp %116 : vector<1x128xf32>
    %cst_68 = arith.constant 1.000000e+00 : f32
    %118 = vector.broadcast %cst_68 : f32 to vector<1x128xf32>
    %119 = arith.addf %118, %117 : vector<1x128xf32>
    %120 = arith.divf %118, %119 : vector<1x128xf32>
    %c0_69 = arith.constant 0 : index
    %c0_70 = arith.constant 0 : index
    %121 = vector.load %arg8[%c0_69, %c0_70] : memref<1x128xf32, #tpu.memory_space<vmem>>, vector<1x128xf32>
    tpu.vector_store %arg8[%c0_69, %c0_70], %120 {strides = array<i32>} : memref<1x128xf32, #tpu.memory_space<vmem>>, vector<1x128xf32>,
    return
  }
  func.func @transform_0(%arg0: i32) -> (i32, i32, i32) {
    %c0_i32 = arith.constant 0 : i32
    %c0_i32_0 = arith.constant 0 : i32
    %c0_i32_1 = arith.constant 0 : i32
    %c0_i32_2 = arith.constant 0 : i32
    return %c0_i32, %c0_i32_0, %c0_i32_1 : i32, i32, i32
  }
  func.func @transform_1(%arg0: i32) -> (i32, i32) {
    %c0_i32 = arith.constant 0 : i32
    %c0_i32_0 = arith.constant 0 : i32
    %c0_i32_1 = arith.constant 0 : i32
    return %c0_i32, %c0_i32_0 : i32, i32
  }
  func.func @transform_2(%arg0: i32) -> (i32, i32) {
    %c0_i32 = arith.constant 0 : i32
    %c0_i32_0 = arith.constant 0 : i32
    %c0_i32_1 = arith.constant 0 : i32
    return %c0_i32, %c0_i32_0 : i32, i32
  }
  func.func @transform_3(%arg0: i32) -> (i32, i32) {
    %c0_i32 = arith.constant 0 : i32
    %c0_i32_0 = arith.constant 0 : i32
    %c0_i32_1 = arith.constant 0 : i32
    return %c0_i32, %c0_i32_0 : i32, i32
  }
  func.func @transform_4(%arg0: i32) -> (i32, i32) {
    %c0_i32 = arith.constant 0 : i32
    %c0_i32_0 = arith.constant 0 : i32
    %c0_i32_1 = arith.constant 0 : i32
    return %c0_i32, %c0_i32_0 : i32, i32
  }
  func.func @transform_5(%arg0: i32) -> (i32, i32) {
    %c0_i32 = arith.constant 0 : i32
    %c0_i32_0 = arith.constant 0 : i32
    %c0_i32_1 = arith.constant 0 : i32
    return %c0_i32, %c0_i32_0 : i32, i32
  }
  func.func @transform_6(%arg0: i32) -> (i32, i32) {
    %c0_i32 = arith.constant 0 : i32
    %c0_i32_0 = arith.constant 0 : i32
    %c0_i32_1 = arith.constant 0 : i32
    return %c0_i32, %c0_i32_0 : i32, i32
  }
  func.func @transform_7(%arg0: i32) -> (i32, i32) {
    %c0_i32 = arith.constant 0 : i32
    %c0_i32_0 = arith.constant 0 : i32
    %c0_i32_1 = arith.constant 0 : i32
    return %c0_i32, %c0_i32_0 : i32, i32
  }
}

</mosaic_0001>

<llo_original>
// kernel: discriminator_forward.4
$region0: #{discriminator_forward.4}
  #allocation0 [shape = 'u32[]', space=smem, size = 0x4, offset = 0x4, fixed_abs, tag = 'smem constant byte address 0x4 - core index']
  #allocation1 [shape = 'u32[144,128]{1,0:T(1,128)}', space=vmem, size = 0x12000, scoped, tag = 'internal scratch']
  %s0 = inlined_call_operand.vmem [shape: bf16[4,8,12], index: 0, kind: input, shape index: {}]
  %s1 = inlined_call_operand.vmem [shape: bf16[12,2178], index: 1, kind: input, shape index: {}]
  %s2 = inlined_call_operand.vmem [shape: f32[8,1], index: 2, kind: input, shape index: {}]
  %s3 = inlined_call_operand.vmem [shape: bf16[8,2144], index: 3, kind: output, shape index: {}]
  %s4 = sld [smem:[#allocation0]]
  $region22: #{discriminator_forward.4} parent=0
    _
  %s6 = ssub.s32 1, %s4
  %s7 = scalar_select 0, %s6, %s4
  // Predicated region
  $region2: #{discriminator_forward.4} parent=0 // pred_check
    _
  $region3: #{discriminator_forward.4} parent=0 // pred_check_branch
    %9 = sbr.rel (0) target = $region5
  $region4: #{discriminator_forward.4} parent=0 // pred_region
    _
  $region5: #{discriminator_forward.4} parent=0 // pred_fallthru
    _
  // Predicated region
  $region6: #{discriminator_forward.4} parent=0 // pred_check
    _
  $region7: #{discriminator_forward.4} parent=0 // pred_check_branch
    %11 = sbr.rel (0) target = $region9
  $region8: #{discriminator_forward.4} parent=0 // pred_region
    _
  $region9: #{discriminator_forward.4} parent=0 // pred_fallthru
    _
  // Predicated region
  $region10: #{discriminator_forward.4} parent=0 // pred_check
    _
  $region11: #{discriminator_forward.4} parent=0 // pred_check_branch
    %13 = sbr.rel (0) target = $region13
  $region12: #{discriminator_forward.4} parent=0 // pred_region
    _
  $region13: #{discriminator_forward.4} parent=0 // pred_fallthru
    _
  %v15 = vld [vmem:[%s0] sm:$0xf]
  %v16 = vld [vmem:[%s1] sm:$0xff]
  %v17 = vld [vmem:[%s1 + $0x8] sm:$0xff]
  %v18 = vld [vmem:[%s1 + $0x10] sm:$0xff]
  %v19 = vld [vmem:[%s1 + $0x18] sm:$0xff]
  %v20 = vld [vmem:[%s1 + $0x20] sm:$0xff]
  %v21 = vld [vmem:[%s1 + $0x28] sm:$0xff]
  %v22 = vld [vmem:[%s1 + $0x30] sm:$0xff]
  %v23 = vld [vmem:[%s1 + $0x38] sm:$0xff]
  %v24 = vld [vmem:[%s1 + $0x40] sm:$0xf]
  %v25 = vld [vmem:[%s1 + $0x48] sm:$0x33]
  %v26 = vld [vmem:[%s1 + $0x50] sm:$0x33]
  %v27 = vld [vmem:[%s1 + $0x58] sm:$0x33]
  %v28 = vld [vmem:[%s1 + $0x60] sm:$0x33]
  %v29 = vld [vmem:[%s1 + $0x68] sm:$0x33]
  %v30 = vld [vmem:[%s1 + $0x70] sm:$0x33]
  %v31 = vld [vmem:[%s1 + $0x78] sm:$0x33]
  %v32 = vld [vmem:[%s1 + $0x80] sm:$0x33]
  %v33 = vld [vmem:[%s1 + $0x88] sm:$0x3]
  %s34 = scalar_lea.vmem %s0, 4
  %v35 = vld [vmem:[%s34] sm:$0xf]
  %v54 = vunpack.c.l.b16 %v16
  %v55 = vunpack.c.h.b16 %v16
  %v56 = vunpack.c.l.b16 %v17
  %v57 = vunpack.c.h.b16 %v17
  %v58 = vunpack.c.l.b16 %v18
  %v59 = vunpack.c.h.b16 %v18
  %v60 = vunpack.c.l.b16 %v19
  %v61 = vunpack.c.h.b16 %v19
  %v62 = vunpack.c.l.b16 %v20
  %v63 = vunpack.c.h.b16 %v20
  %v64 = vunpack.c.l.b16 %v21
  %v65 = vunpack.c.h.b16 %v21
  %v66 = vunpack.c.l.b16 %v22
  %v67 = vunpack.c.h.b16 %v22
  %v68 = vunpack.c.l.b16 %v23
  %v69 = vunpack.c.h.b16 %v23
  %v70 = vunpack.c.l.b16 %v24
  %v71 = vunpack.c.l.b16 %v25
  %v72 = vunpack.c.h.b16 %v25
  %v73 = vunpack.c.l.b16 %v26
  %v74 = vunpack.c.h.b16 %v26
  %v75 = vunpack.c.l.b16 %v27
  %v76 = vunpack.c.h.b16 %v27
  %v77 = vunpack.c.l.b16 %v28
  %v78 = vunpack.c.h.b16 %v28
  %v79 = vunpack.c.l.b16 %v29
  %v80 = vunpack.c.h.b16 %v29
  %v81 = vunpack.c.l.b16 %v30
  %v82 = vunpack.c.h.b16 %v30
  %v83 = vunpack.c.l.b16 %v31
  %v84 = vunpack.c.h.b16 %v31
  %v85 = vunpack.c.l.b16 %v32
  %v86 = vunpack.c.h.b16 %v32
  %v87 = vunpack.c.l.b16 %v33
  %v88 = vpack.c.b16 %v71, %v54
  %v89 = vpack.c.b16 %v72, %v55
  %v90 = vpack.c.b16 %v73, %v56
  %v91 = vpack.c.b16 %v74, %v57
  %v92 = vpack.c.b16 %v75, %v58
  %v93 = vpack.c.b16 %v76, %v59
  %v94 = vpack.c.b16 %v77, %v60
  %v95 = vpack.c.b16 %v78, %v61
  %v96 = vpack.c.b16 %v79, %v62
  %v97 = vpack.c.b16 %v80, %v63
  %v98 = vpack.c.b16 %v81, %v64
  %v99 = vpack.c.b16 %v82, %v65
  %v100 = vpack.c.b16 %v83, %v66
  %v101 = vpack.c.b16 %v84, %v67
  %v102 = vpack.c.b16 %v85, %v68
  %v103 = vpack.c.b16 %v86, %v69
  %v104 = vpack.c.b16 %v87, %v70
  %105 = vrot.lane.b32.xlu0 %v88, 127
  %v106 = vpop.permute.xlu0 %105
  %107 = vrot.lane.b32.xlu0 %v89, 127
  %v108 = vpop.permute.xlu0 %107
  %109 = vrot.lane.b32.xlu0 %v90, 127
  %v110 = vpop.permute.xlu0 %109
  %111 = vrot.lane.b32.xlu0 %v91, 127
  %v112 = vpop.permute.xlu0 %111
  %113 = vrot.lane.b32.xlu0 %v92, 127
  %v114 = vpop.permute.xlu0 %113
  %115 = vrot.lane.b32.xlu0 %v93, 127
  %v116 = vpop.permute.xlu0 %115
  %117 = vrot.lane.b32.xlu0 %v94, 127
  %v118 = vpop.permute.xlu0 %117
  %119 = vrot.lane.b32.xlu0 %v95, 127
  %v120 = vpop.permute.xlu0 %119
  %121 = vrot.lane.b32.xlu0 %v96, 127
  %v122 = vpop.permute.xlu0 %121
  %123 = vrot.lane.b32.xlu0 %v97, 127
  %v124 = vpop.permute.xlu0 %123
  %125 = vrot.lane.b32.xlu0 %v98, 127
  %v126 = vpop.permute.xlu0 %125
  %127 = vrot.lane.b32.xlu0 %v99, 127
  %v128 = vpop.permute.xlu0 %127
  %129 = vrot.lane.b32.xlu0 %v100, 127
  %v130 = vpop.permute.xlu0 %129
  %131 = vrot.lane.b32.xlu0 %v101, 127
  %v132 = vpop.permute.xlu0 %131
  %133 = vrot.lane.b32.xlu0 %v102, 127
  %v134 = vpop.permute.xlu0 %133
  %135 = vrot.lane.b32.xlu0 %v103, 127
  %v136 = vpop.permute.xlu0 %135
  %137 = vrot.lane.b32.xlu0 %v104, 127
  %v138 = vpop.permute.xlu0 %137
  %vm139 = vcmask 1039360
  %v140 = vsel %vm139, %v106, %v108
  %v141 = vsel %vm139, %v108, %v110
  %v142 = vsel %vm139, %v110, %v112
  %v143 = vsel %vm139, %v112, %v114
  %v144 = vsel %vm139, %v114, %v116
  %v145 = vsel %vm139, %v116, %v118
  %v146 = vsel %vm139, %v118, %v120
  %v147 = vsel %vm139, %v120, %v122
  %v148 = vsel %vm139, %v122, %v124
  %v149 = vsel %vm139, %v124, %v126
  %v150 = vsel %vm139, %v126, %v128
  %v151 = vsel %vm139, %v128, %v130
  %v152 = vsel %vm139, %v130, %v132
  %v153 = vsel %vm139, %v132, %v134
  %v154 = vsel %vm139, %v134, %v136
  %v155 = vsel %vm139, %v136, %v138
  %vm156 = vcmask 97280
  %v158 = vsel %vm156, %v35, 0
  %vm160 = vcmask 1045504
  %v162 = vsel %vm160, %v140, 0
  %v165 = vsel %vm160, %v141, 0
  %v168 = vsel %vm160, %v142, 0
  %v171 = vsel %vm160, %v143, 0
  %v174 = vsel %vm160, %v144, 0
  %v177 = vsel %vm160, %v145, 0
  %v180 = vsel %vm160, %v146, 0
  %v183 = vsel %vm160, %v147, 0
  %v186 = vsel %vm160, %v148, 0
  %v189 = vsel %vm160, %v149, 0
  %v192 = vsel %vm160, %v150, 0
  %v195 = vsel %vm160, %v151, 0
  %v198 = vsel %vm160, %v152, 0
  %v201 = vsel %vm160, %v153, 0
  %v204 = vsel %vm160, %v154, 0
  %v207 = vsel %vm160, %v155, 0
  %v210 = vsel %vm160, %v138, 0
  %212 = vmatprep.subr.bf16.mxu0 %v165
  %213 = vmatpush1.bf16.msra.mxu0 %v162
  %214 = vmatprep.subr.bf16.mxu0 0
  %215 = vmatpush1.bf16.msra.mxu0 0
  %216 = vmatprep.subr.bf16.mxu0 0
  %217 = vmatpush1.bf16.msra.mxu0 0
  %218 = vmatprep.subr.bf16.mxu0 0
  %219 = vmatpush1.bf16.msra.mxu0 0
  %220 = vmatprep.subr.bf16.mxu0 0
  %221 = vmatpush1.bf16.msra.mxu0 0
  %222 = vmatprep.subr.bf16.mxu0 0
  %223 = vmatpush1.bf16.msra.mxu0 0
  %224 = vmatprep.subr.bf16.mxu0 0
  %225 = vmatpush1.bf16.msra.mxu0 0
  %226 = vmatprep.subr.bf16.mxu0 0
  %227 = vmatpush1.bf16.msra.mxu0 0
  %228 = vmatprep.subr.bf16.mxu0 0
  %229 = vmatpush1.bf16.msra.mxu0 0
  %230 = vmatprep.subr.bf16.mxu0 0
  %231 = vmatpush1.bf16.msra.mxu0 0
  %232 = vmatprep.subr.bf16.mxu0 0
  %233 = vmatpush1.bf16.msra.mxu0 0
  %234 = vmatprep.subr.bf16.mxu0 0
  %235 = vmatpush1.bf16.msra.mxu0 0
  %236 = vmatprep.subr.bf16.mxu0 0
  %237 = vmatpush1.bf16.msra.mxu0 0
  %238 = vmatprep.subr.bf16.mxu0 0
  %239 = vmatpush1.bf16.msra.mxu0 0
  %240 = vmatprep.subr.bf16.mxu0 0
  %241 = vmatpush1.bf16.msra.mxu0 0
  %242 = vmatprep.subr.bf16.mxu0 0
  %243 = vmatpush1.bf16.msra.mxu0 0
  %244 = vmatprep.mubr.bf16.mxu0 0
  %245 = vmatmul.mubr.bf16.gmra.mrb[0].mxu0 %v158
  %v246 = vpop.f32.mrb[0].mxu0
  %v247 = vadd.f32 0.0, %v246
  %v248 = vpop.f32.mrb[0].mxu0
  %v249 = vadd.f32 0.0, %v248
  %v250 = vpop.f32.mrb[0].mxu0
  %v251 = vpop.f32.mrb[0].mxu0
  %252 = vdwg.mxu0
  %253 = vmatprep.subr.bf16.mxu0 %v171
  %254 = vmatpush1.bf16.msra.mxu0 %v168
  %255 = vmatprep.subr.bf16.mxu0 0
  %256 = vmatpush1.bf16.msra.mxu0 0
  %257 = vmatprep.subr.bf16.mxu0 0
  %258 = vmatpush1.bf16.msra.mxu0 0
  %259 = vmatprep.subr.bf16.mxu0 0
  %260 = vmatpush1.bf16.msra.mxu0 0
  %261 = vmatprep.subr.bf16.mxu0 0
  %262 = vmatpush1.bf16.msra.mxu0 0
  %263 = vmatprep.subr.bf16.mxu0 0
  %264 = vmatpush1.bf16.msra.mxu0 0
  %265 = vmatprep.subr.bf16.mxu0 0
  %266 = vmatpush1.bf16.msra.mxu0 0
  %267 = vmatprep.subr.bf16.mxu0 0
  %268 = vmatpush1.bf16.msra.mxu0 0
  %269 = vmatprep.subr.bf16.mxu0 0
  %270 = vmatpush1.bf16.msra.mxu0 0
  %271 = vmatprep.subr.bf16.mxu0 0
  %272 = vmatpush1.bf16.msra.mxu0 0
  %273 = vmatprep.subr.bf16.mxu0 0
  %274 = vmatpush1.bf16.msra.mxu0 0
  %275 = vmatprep.subr.bf16.mxu0 0
  %276 = vmatpush1.bf16.msra.mxu0 0
  %277 = vmatprep.subr.bf16.mxu0 0
  %278 = vmatpush1.bf16.msra.mxu0 0
  %279 = vmatprep.subr.bf16.mxu0 0
  %280 = vmatpush1.bf16.msra.mxu0 0
  %281 = vmatprep.subr.bf16.mxu0 0
  %282 = vmatpush1.bf16.msra.mxu0 0
  %283 = vmatprep.subr.bf16.mxu0 0
  %284 = vmatpush1.bf16.msra.mxu0 0
  %285 = vmatprep.mubr.bf16.mxu0 0
  %286 = vmatmul.mubr.bf16.gmra.mrb[0].mxu0 %v158
  %v287 = vpop.f32.mrb[0].mxu0
  %v288 = vadd.f32 0.0, %v287
  %v289 = vpop.f32.mrb[0].mxu0
  %v290 = vadd.f32 0.0, %v289
  %v291 = vpop.f32.mrb[0].mxu0
  %v292 = vpop.f32.mrb[0].mxu0
  %293 = vdwg.mxu0
  %294 = vmatprep.subr.bf16.mxu0 %v177
  %295 = vmatpush1.bf16.msra.mxu0 %v174
  %296 = vmatprep.subr.bf16.mxu0 0
  %297 = vmatpush1.bf16.msra.mxu0 0
  %298 = vmatprep.subr.bf16.mxu0 0
  %299 = vmatpush1.bf16.msra.mxu0 0
  %300 = vmatprep.subr.bf16.mxu0 0
  %301 = vmatpush1.bf16.msra.mxu0 0
  %302 = vmatprep.subr.bf16.mxu0 0
  %303 = vmatpush1.bf16.msra.mxu0 0
  %304 = vmatprep.subr.bf16.mxu0 0
  %305 = vmatpush1.bf16.msra.mxu0 0
  %306 = vmatprep.subr.bf16.mxu0 0
  %307 = vmatpush1.bf16.msra.mxu0 0
  %308 = vmatprep.subr.bf16.mxu0 0
  %309 = vmatpush1.bf16.msra.mxu0 0
  %310 = vmatprep.subr.bf16.mxu0 0
  %311 = vmatpush1.bf16.msra.mxu0 0
  %312 = vmatprep.subr.bf16.mxu0 0
  %313 = vmatpush1.bf16.msra.mxu0 0
  %314 = vmatprep.subr.bf16.mxu0 0
  %315 = vmatpush1.bf16.msra.mxu0 0
  %316 = vmatprep.subr.bf16.mxu0 0
  %317 = vmatpush1.bf16.msra.mxu0 0
  %318 = vmatprep.subr.bf16.mxu0 0
  %319 = vmatpush1.bf16.msra.mxu0 0
  %320 = vmatprep.subr.bf16.mxu0 0
  %321 = vmatpush1.bf16.msra.mxu0 0
  %322 = vmatprep.subr.bf16.mxu0 0
  %323 = vmatpush1.bf16.msra.mxu0 0
  %324 = vmatprep.subr.bf16.mxu0 0
  %325 = vmatpush1.bf16.msra.mxu0 0
  %326 = vmatprep.mubr.bf16.mxu0 0
  %327 = vmatmul.mubr.bf16.gmra.mrb[0].mxu0 %v158
  %v328 = vpop.f32.mrb[0].mxu0
  %v329 = vadd.f32 0.0, %v328
  %v330 = vpop.f32.mrb[0].mxu0
  %v331 = vadd.f32 0.0, %v330
  %v332 = vpop.f32.mrb[0].mxu0
  %v333 = vpop.f32.mrb[0].mxu0
  %334 = vdwg.mxu0
  %335 = vmatprep.subr.bf16.mxu0 %v183
  %336 = vmatpush1.bf16.msra.mxu0 %v180
  %337 = vmatprep.subr.bf16.mxu0 0
  %338 = vmatpush1.bf16.msra.mxu0 0
  %339 = vmatprep.subr.bf16.mxu0 0
  %340 = vmatpush1.bf16.msra.mxu0 0
  %341 = vmatprep.subr.bf16.mxu0 0
  %342 = vmatpush1.bf16.msra.mxu0 0
  %343 = vmatprep.subr.bf16.mxu0 0
  %344 = vmatpush1.bf16.msra.mxu0 0
  %345 = vmatprep.subr.bf16.mxu0 0
  %346 = vmatpush1.bf16.msra.mxu0 0
  %347 = vmatprep.subr.bf16.mxu0 0
  %348 = vmatpush1.bf16.msra.mxu0 0
  %349 = vmatprep.subr.bf16.mxu0 0
  %350 = vmatpush1.bf16.msra.mxu0 0
  %351 = vmatprep.subr.bf16.mxu0 0
  %352 = vmatpush1.bf16.msra.mxu0 0
  %353 = vmatprep.subr.bf16.mxu0 0
  %354 = vmatpush1.bf16.msra.mxu0 0
  %355 = vmatprep.subr.bf16.mxu0 0
  %356 = vmatpush1.bf16.msra.mxu0 0
  %357 = vmatprep.subr.bf16.mxu0 0
  %358 = vmatpush1.bf16.msra.mxu0 0
  %359 = vmatprep.subr.bf16.mxu0 0
  %360 = vmatpush1.bf16.msra.mxu0 0
  %361 = vmatprep.subr.bf16.mxu0 0
  %362 = vmatpush1.bf16.msra.mxu0 0
  %363 = vmatprep.subr.bf16.mxu0 0
  %364 = vmatpush1.bf16.msra.mxu0 0
  %365 = vmatprep.subr.bf16.mxu0 0
  %366 = vmatpush1.bf16.msra.mxu0 0
  %367 = vmatprep.mubr.bf16.mxu0 0
  %368 = vmatmul.mubr.bf16.gmra.mrb[0].mxu0 %v158
  %v369 = vpop.f32.mrb[0].mxu0
  %v370 = vadd.f32 0.0, %v369
  %v371 = vpop.f32.mrb[0].mxu0
  %v372 = vadd.f32 0.0, %v371
  %v373 = vpop.f32.mrb[0].mxu0
  %v374 = vpop.f32.mrb[0].mxu0
  %375 = vdwg.mxu0
  %376 = vmatprep.subr.bf16.mxu0 %v189
  %377 = vmatpush1.bf16.msra.mxu0 %v186
  %378 = vmatprep.subr.bf16.mxu0 0
  %379 = vmatpush1.bf16.msra.mxu0 0
  %380 = vmatprep.subr.bf16.mxu0 0
  %381 = vmatpush1.bf16.msra.mxu0 0
  %382 = vmatprep.subr.bf16.mxu0 0
  %383 = vmatpush1.bf16.msra.mxu0 0
  %384 = vmatprep.subr.bf16.mxu0 0
  %385 = vmatpush1.bf16.msra.mxu0 0
  %386 = vmatprep.subr.bf16.mxu0 0
  %387 = vmatpush1.bf16.msra.mxu0 0
  %388 = vmatprep.subr.bf16.mxu0 0
  %389 = vmatpush1.bf16.msra.mxu0 0
  %390 = vmatprep.subr.bf16.mxu0 0
  %391 = vmatpush1.bf16.msra.mxu0 0
  %392 = vmatprep.subr.bf16.mxu0 0
  %393 = vmatpush1.bf16.msra.mxu0 0
  %394 = vmatprep.subr.bf16.mxu0 0
  %395 = vmatpush1.bf16.msra.mxu0 0
  %396 = vmatprep.subr.bf16.mxu0 0
  %397 = vmatpush1.bf16.msra.mxu0 0
  %398 = vmatprep.subr.bf16.mxu0 0
  %399 = vmatpush1.bf16.msra.mxu0 0
  %400 = vmatprep.subr.bf16.mxu0 0
  %401 = vmatpush1.bf16.msra.mxu0 0
  %402 = vmatprep.subr.bf16.mxu0 0
  %403 = vmatpush1.bf16.msra.mxu0 0
  %404 = vmatprep.subr.bf16.mxu0 0
  %405 = vmatpush1.bf16.msra.mxu0 0
  %406 = vmatprep.subr.bf16.mxu0 0
  %407 = vmatpush1.bf16.msra.mxu0 0
  %408 = vmatprep.mubr.bf16.mxu0 0
  %409 = vmatmul.mubr.bf16.gmra.mrb[0].mxu0 %v158
  %v410 = vpop.f32.mrb[0].mxu0
  %v411 = vadd.f32 0.0, %v410
  %v412 = vpop.f32.mrb[0].mxu0
  %v413 = vadd.f32 0.0, %v412
  %v414 = vpop.f32.mrb[0].mxu0
  %v415 = vpop.f32.mrb[0].mxu0
  %416 = vdwg.mxu0
  %417 = vmatprep.subr.bf16.mxu0 %v195
  %418 = vmatpush1.bf16.msra.mxu0 %v192
  %419 = vmatprep.subr.bf16.mxu0 0
  %420 = vmatpush1.bf16.msra.mxu0 0
  %421 = vmatprep.subr.bf16.mxu0 0
  %422 = vmatpush1.bf16.msra.mxu0 0
  %423 = vmatprep.subr.bf16.mxu0 0
  %424 = vmatpush1.bf16.msra.mxu0 0
  %425 = vmatprep.subr.bf16.mxu0 0
  %426 = vmatpush1.bf16.msra.mxu0 0
  %427 = vmatprep.subr.bf16.mxu0 0
  %428 = vmatpush1.bf16.msra.mxu0 0
  %429 = vmatprep.subr.bf16.mxu0 0
  %430 = vmatpush1.bf16.msra.mxu0 0
  %431 = vmatprep.subr.bf16.mxu0 0
  %432 = vmatpush1.bf16.msra.mxu0 0
  %433 = vmatprep.subr.bf16.mxu0 0
  %434 = vmatpush1.bf16.msra.mxu0 0
  %435 = vmatprep.subr.bf16.mxu0 0
  %436 = vmatpush1.bf16.msra.mxu0 0
  %437 = vmatprep.subr.bf16.mxu0 0
  %438 = vmatpush1.bf16.msra.mxu0 0
  %439 = vmatprep.subr.bf16.mxu0 0
  %440 = vmatpush1.bf16.msra.mxu0 0
  %441 = vmatprep.subr.bf16.mxu0 0
  %442 = vmatpush1.bf16.msra.mxu0 0
  %443 = vmatprep.subr.bf16.mxu0 0
  %444 = vmatpush1.bf16.msra.mxu0 0
  %445 = vmatprep.subr.bf16.mxu0 0
  %446 = vmatpush1.bf16.msra.mxu0 0
  %447 = vmatprep.subr.bf16.mxu0 0
  %448 = vmatpush1.bf16.msra.mxu0 0
  %449 = vmatprep.mubr.bf16.mxu0 0
  %450 = vmatmul.mubr.bf16.gmra.mrb[0].mxu0 %v158
  %v451 = vpop.f32.mrb[0].mxu0
  %v452 = vadd.f32 0.0, %v451
  %v453 = vpop.f32.mrb[0].mxu0
  %v454 = vadd.f32 0.0, %v453
  %v455 = vpop.f32.mrb[0].mxu0
  %v456 = vpop.f32.mrb[0].mxu0
  %457 = vdwg.mxu0
  %458 = vmatprep.subr.bf16.mxu0 %v201
  %459 = vmatpush1.bf16.msra.mxu0 %v198
  %460 = vmatprep.subr.bf16.mxu0 0
  %461 = vmatpush1.bf16.msra.mxu0 0
  %462 = vmatprep.subr.bf16.mxu0 0
  %463 = vmatpush1.bf16.msra.mxu0 0
  %464 = vmatprep.subr.bf16.mxu0 0
  %465 = vmatpush1.bf16.msra.mxu0 0
  %466 = vmatprep.subr.bf16.mxu0 0
  %467 = vmatpush1.bf16.msra.mxu0 0
  %468 = vmatprep.subr.bf16.mxu0 0
  %469 = vmatpush1.bf16.msra.mxu0 0
  %470 = vmatprep.subr.bf16.mxu0 0
  %471 = vmatpush1.bf16.msra.mxu0 0
  %472 = vmatprep.subr.bf16.mxu0 0
  %473 = vmatpush1.bf16.msra.mxu0 0
  %474 = vmatprep.subr.bf16.mxu0 0
  %475 = vmatpush1.bf16.msra.mxu0 0
  %476 = vmatprep.subr.bf16.mxu0 0
  %477 = vmatpush1.bf16.msra.mxu0 0
  %478 = vmatprep.subr.bf16.mxu0 0
  %479 = vmatpush1.bf16.msra.mxu0 0
  %480 = vmatprep.subr.bf16.mxu0 0
  %481 = vmatpush1.bf16.msra.mxu0 0
  %482 = vmatprep.subr.bf16.mxu0 0
  %483 = vmatpush1.bf16.msra.mxu0 0
  %484 = vmatprep.subr.bf16.mxu0 0
  %485 = vmatpush1.bf16.msra.mxu0 0
  %486 = vmatprep.subr.bf16.mxu0 0
  %487 = vmatpush1.bf16.msra.mxu0 0
  %488 = vmatprep.subr.bf16.mxu0 0
  %489 = vmatpush1.bf16.msra.mxu0 0
  %490 = vmatprep.mubr.bf16.mxu0 0
  %491 = vmatmul.mubr.bf16.gmra.mrb[0].mxu0 %v158
  %v492 = vpop.f32.mrb[0].mxu0
  %v493 = vadd.f32 0.0, %v492
  %v494 = vpop.f32.mrb[0].mxu0
  %v495 = vadd.f32 0.0, %v494
  %v496 = vpop.f32.mrb[0].mxu0
  %v497 = vpop.f32.mrb[0].mxu0
  %498 = vdwg.mxu0
  %499 = vmatprep.subr.bf16.mxu0 %v207
  %500 = vmatpush1.bf16.msra.mxu0 %v204
  %501 = vmatprep.subr.bf16.mxu0 0
  %502 = vmatpush1.bf16.msra.mxu0 0
  %503 = vmatprep.subr.bf16.mxu0 0
  %504 = vmatpush1.bf16.msra.mxu0 0
  %505 = vmatprep.subr.bf16.mxu0 0
  %506 = vmatpush1.bf16.msra.mxu0 0
  %507 = vmatprep.subr.bf16.mxu0 0
  %508 = vmatpush1.bf16.msra.mxu0 0
  %509 = vmatprep.subr.bf16.mxu0 0
  %510 = vmatpush1.bf16.msra.mxu0 0
  %511 = vmatprep.subr.bf16.mxu0 0
  %512 = vmatpush1.bf16.msra.mxu0 0
  %513 = vmatprep.subr.bf16.mxu0 0
  %514 = vmatpush1.bf16.msra.mxu0 0
  %515 = vmatprep.subr.bf16.mxu0 0
  %516 = vmatpush1.bf16.msra.mxu0 0
  %517 = vmatprep.subr.bf16.mxu0 0
  %518 = vmatpush1.bf16.msra.mxu0 0
  %519 = vmatprep.subr.bf16.mxu0 0
  %520 = vmatpush1.bf16.msra.mxu0 0
  %521 = vmatprep.subr.bf16.mxu0 0
  %522 = vmatpush1.bf16.msra.mxu0 0
  %523 = vmatprep.subr.bf16.mxu0 0
  %524 = vmatpush1.bf16.msra.mxu0 0
  %525 = vmatprep.subr.bf16.mxu0 0
  %526 = vmatpush1.bf16.msra.mxu0 0
  %527 = vmatprep.subr.bf16.mxu0 0
  %528 = vmatpush1.bf16.msra.mxu0 0
  %529 = vmatprep.subr.bf16.mxu0 0
  %530 = vmatpush1.bf16.msra.mxu0 0
  %531 = vmatprep.mubr.bf16.mxu0 0
  %532 = vmatmul.mubr.bf16.gmra.mrb[0].mxu0 %v158
  %v533 = vpop.f32.mrb[0].mxu0
  %v534 = vadd.f32 0.0, %v533
  %v535 = vpop.f32.mrb[0].mxu0
  %v536 = vadd.f32 0.0, %v535
  %v537 = vpop.f32.mrb[0].mxu0
  %v538 = vpop.f32.mrb[0].mxu0
  %539 = vdwg.mxu0
  %540 = vmatprep.subr.bf16.mxu0 0
  %541 = vmatpush1.bf16.msra.mxu0 %v210
  %542 = vmatprep.subr.bf16.mxu0 0
  %543 = vmatpush1.bf16.msra.mxu0 0
  %544 = vmatprep.subr.bf16.mxu0 0
  %545 = vmatpush1.bf16.msra.mxu0 0
  %546 = vmatprep.subr.bf16.mxu0 0
  %547 = vmatpush1.bf16.msra.mxu0 0
  %548 = vmatprep.subr.bf16.mxu0 0
  %549 = vmatpush1.bf16.msra.mxu0 0
  %550 = vmatprep.subr.bf16.mxu0 0
  %551 = vmatpush1.bf16.msra.mxu0 0
  %552 = vmatprep.subr.bf16.mxu0 0
  %553 = vmatpush1.bf16.msra.mxu0 0
  %554 = vmatprep.subr.bf16.mxu0 0
  %555 = vmatpush1.bf16.msra.mxu0 0
  %556 = vmatprep.subr.bf16.mxu0 0
  %557 = vmatpush1.bf16.msra.mxu0 0
  %558 = vmatprep.subr.bf16.mxu0 0
  %559 = vmatpush1.bf16.msra.mxu0 0
  %560 = vmatprep.subr.bf16.mxu0 0
  %561 = vmatpush1.bf16.msra.mxu0 0
  %562 = vmatprep.subr.bf16.mxu0 0
  %563 = vmatpush1.bf16.msra.mxu0 0
  %564 = vmatprep.subr.bf16.mxu0 0
  %565 = vmatpush1.bf16.msra.mxu0 0
  %566 = vmatprep.subr.bf16.mxu0 0
  %567 = vmatpush1.bf16.msra.mxu0 0
  %568 = vmatprep.subr.bf16.mxu0 0
  %569 = vmatpush1.bf16.msra.mxu0 0
  %570 = vmatprep.subr.bf16.mxu0 0
  %571 = vmatpush1.bf16.msra.mxu0 0
  %572 = vmatprep.mubr.bf16.mxu0 0
  %573 = vmatmul.mubr.bf16.gmra.mrb[0].mxu0 %v158
  %v574 = vpop.f32.mrb[0].mxu0
  %v575 = vadd.f32 0.0, %v574
  %v576 = vpop.f32.mrb[0].mxu0
  %v577 = vpop.f32.mrb[0].mxu0
  %v578 = vpop.f32.mrb[0].mxu0
  %579 = vdwg.mxu0
  %v581 = vsel %vm156, %v15, 0
  %v584 = vsel %vm160, %v88, 0
  %v587 = vsel %vm160, %v89, 0
  %v590 = vsel %vm160, %v90, 0
  %v593 = vsel %vm160, %v91, 0
  %v596 = vsel %vm160, %v92, 0
  %v599 = vsel %vm160, %v93, 0
  %v602 = vsel %vm160, %v94, 0
  %v605 = vsel %vm160, %v95, 0
  %v608 = vsel %vm160, %v96, 0
  %v611 = vsel %vm160, %v97, 0
  %v614 = vsel %vm160, %v98, 0
  %v617 = vsel %vm160, %v99, 0
  %v620 = vsel %vm160, %v100, 0
  %v623 = vsel %vm160, %v101, 0
  %v626 = vsel %vm160, %v102, 0
  %v629 = vsel %vm160, %v103, 0
  %v632 = vsel %vm160, %v104, 0
  %634 = vmatprep.subr.bf16.mxu0 %v587
  %635 = vmatpush1.bf16.msra.mxu0 %v584
  %636 = vmatprep.subr.bf16.mxu0 0
  %637 = vmatpush1.bf16.msra.mxu0 0
  %638 = vmatprep.subr.bf16.mxu0 0
  %639 = vmatpush1.bf16.msra.mxu0 0
  %640 = vmatprep.subr.bf16.mxu0 0
  %641 = vmatpush1.bf16.msra.mxu0 0
  %642 = vmatprep.subr.bf16.mxu0 0
  %643 = vmatpush1.bf16.msra.mxu0 0
  %644 = vmatprep.subr.bf16.mxu0 0
  %645 = vmatpush1.bf16.msra.mxu0 0
  %646 = vmatprep.subr.bf16.mxu0 0
  %647 = vmatpush1.bf16.msra.mxu0 0
  %648 = vmatprep.subr.bf16.mxu0 0
  %649 = vmatpush1.bf16.msra.mxu0 0
  %650 = vmatprep.subr.bf16.mxu0 0
  %651 = vmatpush1.bf16.msra.mxu0 0
  %652 = vmatprep.subr.bf16.mxu0 0
  %653 = vmatpush1.bf16.msra.mxu0 0
  %654 = vmatprep.subr.bf16.mxu0 0
  %655 = vmatpush1.bf16.msra.mxu0 0
  %656 = vmatprep.subr.bf16.mxu0 0
  %657 = vmatpush1.bf16.msra.mxu0 0
  %658 = vmatprep.subr.bf16.mxu0 0
  %659 = vmatpush1.bf16.msra.mxu0 0
  %660 = vmatprep.subr.bf16.mxu0 0
  %661 = vmatpush1.bf16.msra.mxu0 0
  %662 = vmatprep.subr.bf16.mxu0 0
  %663 = vmatpush1.bf16.msra.mxu0 0
  %664 = vmatprep.subr.bf16.mxu0 0
  %665 = vmatpush1.bf16.msra.mxu0 0
  %666 = vmatprep.mubr.bf16.mxu0 0
  %667 = vmatmul.mubr.bf16.gmra.mrb[0].mxu0 %v581
  %v668 = vpop.f32.mrb[0].mxu0
  %v669 = vadd.f32 %v247, %v668
  %v670 = vpop.f32.mrb[0].mxu0
  %v671 = vadd.f32 %v249, %v670
  %v672 = vpop.f32.mrb[0].mxu0
  %v673 = vpop.f32.mrb[0].mxu0
  %674 = vdwg.mxu0
  %675 = vmatprep.subr.bf16.mxu0 %v593
  %676 = vmatpush1.bf16.msra.mxu0 %v590
  %677 = vmatprep.subr.bf16.mxu0 0
  %678 = vmatpush1.bf16.msra.mxu0 0
  %679 = vmatprep.subr.bf16.mxu0 0
  %680 = vmatpush1.bf16.msra.mxu0 0
  %681 = vmatprep.subr.bf16.mxu0 0
  %682 = vmatpush1.bf16.msra.mxu0 0
  %683 = vmatprep.subr.bf16.mxu0 0
  %684 = vmatpush1.bf16.msra.mxu0 0
  %685 = vmatprep.subr.bf16.mxu0 0
  %686 = vmatpush1.bf16.msra.mxu0 0
  %687 = vmatprep.subr.bf16.mxu0 0
  %688 = vmatpush1.bf16.msra.mxu0 0
  %689 = vmatprep.subr.bf16.mxu0 0
  %690 = vmatpush1.bf16.msra.mxu0 0
  %691 = vmatprep.subr.bf16.mxu0 0
  %692 = vmatpush1.bf16.msra.mxu0 0
  %693 = vmatprep.subr.bf16.mxu0 0
  %694 = vmatpush1.bf16.msra.mxu0 0
  %695 = vmatprep.subr.bf16.mxu0 0
  %696 = vmatpush1.bf16.msra.mxu0 0
  %697 = vmatprep.subr.bf16.mxu0 0
  %698 = vmatpush1.bf16.msra.mxu0 0
  %699 = vmatprep.subr.bf16.mxu0 0
  %700 = vmatpush1.bf16.msra.mxu0 0
  %701 = vmatprep.subr.bf16.mxu0 0
  %702 = vmatpush1.bf16.msra.mxu0 0
  %703 = vmatprep.subr.bf16.mxu0 0
  %704 = vmatpush1.bf16.msra.mxu0 0
  %705 = vmatprep.subr.bf16.mxu0 0
  %706 = vmatpush1.bf16.msra.mxu0 0
  %707 = vmatprep.mubr.bf16.mxu0 0
  %708 = vmatmul.mubr.bf16.gmra.mrb[0].mxu0 %v581
  %v709 = vpop.f32.mrb[0].mxu0
  %v710 = vadd.f32 %v288, %v709
  %v711 = vpop.f32.mrb[0].mxu0
  %v712 = vadd.f32 %v290, %v711
  %v713 = vpop.f32.mrb[0].mxu0
  %v714 = vpop.f32.mrb[0].mxu0
  %715 = vdwg.mxu0
  %716 = vmatprep.subr.bf16.mxu0 %v599
  %717 = vmatpush1.bf16.msra.mxu0 %v596
  %718 = vmatprep.subr.bf16.mxu0 0
  %719 = vmatpush1.bf16.msra.mxu0 0
  %720 = vmatprep.subr.bf16.mxu0 0
  %721 = vmatpush1.bf16.msra.mxu0 0
  %722 = vmatprep.subr.bf16.mxu0 0
  %723 = vmatpush1.bf16.msra.mxu0 0
  %724 = vmatprep.subr.bf16.mxu0 0
  %725 = vmatpush1.bf16.msra.mxu0 0
  %726 = vmatprep.subr.bf16.mxu0 0
  %727 = vmatpush1.bf16.msra.mxu0 0
  %728 = vmatprep.subr.bf16.mxu0 0
  %729 = vmatpush1.bf16.msra.mxu0 0
  %730 = vmatprep.subr.bf16.mxu0 0
  %731 = vmatpush1.bf16.msra.mxu0 0
  %732 = vmatprep.subr.bf16.mxu0 0
  %733 = vmatpush1.bf16.msra.mxu0 0
  %734 = vmatprep.subr.bf16.mxu0 0
  %735 = vmatpush1.bf16.msra.mxu0 0
  %736 = vmatprep.subr.bf16.mxu0 0
  %737 = vmatpush1.bf16.msra.mxu0 0
  %738 = vmatprep.subr.bf16.mxu0 0
  %739 = vmatpush1.bf16.msra.mxu0 0
  %740 = vmatprep.subr.bf16.mxu0 0
  %741 = vmatpush1.bf16.msra.mxu0 0
  %742 = vmatprep.subr.bf16.mxu0 0
  %743 = vmatpush1.bf16.msra.mxu0 0
  %744 = vmatprep.subr.bf16.mxu0 0
  %745 = vmatpush1.bf16.msra.mxu0 0
  %746 = vmatprep.subr.bf16.mxu0 0
  %747 = vmatpush1.bf16.msra.mxu0 0
  %748 = vmatprep.mubr.bf16.mxu0 0
  %749 = vmatmul.mubr.bf16.gmra.mrb[0].mxu0 %v581
  %v750 = vpop.f32.mrb[0].mxu0
  %v751 = vadd.f32 %v329, %v750
  %v752 = vpop.f32.mrb[0].mxu0
  %v753 = vadd.f32 %v331, %v752
  %v754 = vpop.f32.mrb[0].mxu0
  %v755 = vpop.f32.mrb[0].mxu0
  %756 = vdwg.mxu0
  %757 = vmatprep.subr.bf16.mxu0 %v605
  %758 = vmatpush1.bf16.msra.mxu0 %v602
  %759 = vmatprep.subr.bf16.mxu0 0
  %760 = vmatpush1.bf16.msra.mxu0 0
  %761 = vmatprep.subr.bf16.mxu0 0
  %762 = vmatpush1.bf16.msra.mxu0 0
  %763 = vmatprep.subr.bf16.mxu0 0
  %764 = vmatpush1.bf16.msra.mxu0 0
  %765 = vmatprep.subr.bf16.mxu0 0
  %766 = vmatpush1.bf16.msra.mxu0 0
  %767 = vmatprep.subr.bf16.mxu0 0
  %768 = vmatpush1.bf16.msra.mxu0 0
  %769 = vmatprep.subr.bf16.mxu0 0
  %770 = vmatpush1.bf16.msra.mxu0 0
  %771 = vmatprep.subr.bf16.mxu0 0
  %772 = vmatpush1.bf16.msra.mxu0 0
  %773 = vmatprep.subr.bf16.mxu0 0
  %774 = vmatpush1.bf16.msra.mxu0 0
  %775 = vmatprep.subr.bf16.mxu0 0
  %776 = vmatpush1.bf16.msra.mxu0 0
  %777 = vmatprep.subr.bf16.mxu0 0
  %778 = vmatpush1.bf16.msra.mxu0 0
  %779 = vmatprep.subr.bf16.mxu0 0
  %780 = vmatpush1.bf16.msra.mxu0 0
  %781 = vmatprep.subr.bf16.mxu0 0
  %782 = vmatpush1.bf16.msra.mxu0 0
  %783 = vmatprep.subr.bf16.mxu0 0
  %784 = vmatpush1.bf16.msra.mxu0 0
  %785 = vmatprep.subr.bf16.mxu0 0
  %786 = vmatpush1.bf16.msra.mxu0 0
  %787 = vmatprep.subr.bf16.mxu0 0
  %788 = vmatpush1.bf16.msra.mxu0 0
  %789 = vmatprep.mubr.bf16.mxu0 0
  %790 = vmatmul.mubr.bf16.gmra.mrb[0].mxu0 %v581
  %v791 = vpop.f32.mrb[0].mxu0
  %v792 = vadd.f32 %v370, %v791
  %v793 = vpop.f32.mrb[0].mxu0
  %v794 = vadd.f32 %v372, %v793
  %v795 = vpop.f32.mrb[0].mxu0
  %v796 = vpop.f32.mrb[0].mxu0
  %797 = vdwg.mxu0
  %798 = vmatprep.subr.bf16.mxu0 %v611
  %799 = vmatpush1.bf16.msra.mxu0 %v608
  %800 = vmatprep.subr.bf16.mxu0 0
  %801 = vmatpush1.bf16.msra.mxu0 0
  %802 = vmatprep.subr.bf16.mxu0 0
  %803 = vmatpush1.bf16.msra.mxu0 0
  %804 = vmatprep.subr.bf16.mxu0 0
  %805 = vmatpush1.bf16.msra.mxu0 0
  %806 = vmatprep.subr.bf16.mxu0 0
  %807 = vmatpush1.bf16.msra.mxu0 0
  %808 = vmatprep.subr.bf16.mxu0 0
  %809 = vmatpush1.bf16.msra.mxu0 0
  %810 = vmatprep.subr.bf16.mxu0 0
  %811 = vmatpush1.bf16.msra.mxu0 0
  %812 = vmatprep.subr.bf16.mxu0 0
  %813 = vmatpush1.bf16.msra.mxu0 0
  %814 = vmatprep.subr.bf16.mxu0 0
  %815 = vmatpush1.bf16.msra.mxu0 0
  %816 = vmatprep.subr.bf16.mxu0 0
  %817 = vmatpush1.bf16.msra.mxu0 0
  %818 = vmatprep.subr.bf16.mxu0 0
  %819 = vmatpush1.bf16.msra.mxu0 0
  %820 = vmatprep.subr.bf16.mxu0 0
  %821 = vmatpush1.bf16.msra.mxu0 0
  %822 = vmatprep.subr.bf16.mxu0 0
  %823 = vmatpush1.bf16.msra.mxu0 0
  %824 = vmatprep.subr.bf16.mxu0 0
  %825 = vmatpush1.bf16.msra.mxu0 0
  %826 = vmatprep.subr.bf16.mxu0 0
  %827 = vmatpush1.bf16.msra.mxu0 0
  %828 = vmatprep.subr.bf16.mxu0 0
  %829 = vmatpush1.bf16.msra.mxu0 0
  %830 = vmatprep.mubr.bf16.mxu0 0
  %831 = vmatmul.mubr.bf16.gmra.mrb[0].mxu0 %v581
  %v832 = vpop.f32.mrb[0].mxu0
  %v833 = vadd.f32 %v411, %v832
  %v834 = vpop.f32.mrb[0].mxu0
  %v835 = vadd.f32 %v413, %v834
  %v836 = vpop.f32.mrb[0].mxu0
  %v837 = vpop.f32.mrb[0].mxu0
  %838 = vdwg.mxu0
  %839 = vmatprep.subr.bf16.mxu0 %v617
  %840 = vmatpush1.bf16.msra.mxu0 %v614
  %841 = vmatprep.subr.bf16.mxu0 0
  %842 = vmatpush1.bf16.msra.mxu0 0
  %843 = vmatprep.subr.bf16.mxu0 0
  %844 = vmatpush1.bf16.msra.mxu0 0
  %845 = vmatprep.subr.bf16.mxu0 0
  %846 = vmatpush1.bf16.msra.mxu0 0
  %847 = vmatprep.subr.bf16.mxu0 0
  %848 = vmatpush1.bf16.msra.mxu0 0
  %849 = vmatprep.subr.bf16.mxu0 0
  %850 = vmatpush1.bf16.msra.mxu0 0
  %851 = vmatprep.subr.bf16.mxu0 0
  %852 = vmatpush1.bf16.msra.mxu0 0
  %853 = vmatprep.subr.bf16.mxu0 0
  %854 = vmatpush1.bf16.msra.mxu0 0
  %855 = vmatprep.subr.bf16.mxu0 0
  %856 = vmatpush1.bf16.msra.mxu0 0
  %857 = vmatprep.subr.bf16.mxu0 0
  %858 = vmatpush1.bf16.msra.mxu0 0
  %859 = vmatprep.subr.bf16.mxu0 0
  %860 = vmatpush1.bf16.msra.mxu0 0
  %861 = vmatprep.subr.bf16.mxu0 0
  %862 = vmatpush1.bf16.msra.mxu0 0
  %863 = vmatprep.subr.bf16.mxu0 0
  %864 = vmatpush1.bf16.msra.mxu0 0
  %865 = vmatprep.subr.bf16.mxu0 0
  %866 = vmatpush1.bf16.msra.mxu0 0
  %867 = vmatprep.subr.bf16.mxu0 0
  %868 = vmatpush1.bf16.msra.mxu0 0
  %869 = vmatprep.subr.bf16.mxu0 0
  %870 = vmatpush1.bf16.msra.mxu0 0
  %871 = vmatprep.mubr.bf16.mxu0 0
  %872 = vmatmul.mubr.bf16.gmra.mrb[0].mxu0 %v581
  %v873 = vpop.f32.mrb[0].mxu0
  %v874 = vadd.f32 %v452, %v873
  %v875 = vpop.f32.mrb[0].mxu0
  %v876 = vadd.f32 %v454, %v875
  %v877 = vpop.f32.mrb[0].mxu0
  %v878 = vpop.f32.mrb[0].mxu0
  %879 = vdwg.mxu0
  %880 = vmatprep.subr.bf16.mxu0 %v623
  %881 = vmatpush1.bf16.msra.mxu0 %v620
  %882 = vmatprep.subr.bf16.mxu0 0
  %883 = vmatpush1.bf16.msra.mxu0 0
  %884 = vmatprep.subr.bf16.mxu0 0
  %885 = vmatpush1.bf16.msra.mxu0 0
  %886 = vmatprep.subr.bf16.mxu0 0
  %887 = vmatpush1.bf16.msra.mxu0 0
  %888 = vmatprep.subr.bf16.mxu0 0
  %889 = vmatpush1.bf16.msra.mxu0 0
  %890 = vmatprep.subr.bf16.mxu0 0
  %891 = vmatpush1.bf16.msra.mxu0 0
  %892 = vmatprep.subr.bf16.mxu0 0
  %893 = vmatpush1.bf16.msra.mxu0 0
  %894 = vmatprep.subr.bf16.mxu0 0
  %895 = vmatpush1.bf16.msra.mxu0 0
  %896 = vmatprep.subr.bf16.mxu0 0
  %897 = vmatpush1.bf16.msra.mxu0 0
  %898 = vmatprep.subr.bf16.mxu0 0
  %899 = vmatpush1.bf16.msra.mxu0 0
  %900 = vmatprep.subr.bf16.mxu0 0
  %901 = vmatpush1.bf16.msra.mxu0 0
  %902 = vmatprep.subr.bf16.mxu0 0
  %903 = vmatpush1.bf16.msra.mxu0 0
  %904 = vmatprep.subr.bf16.mxu0 0
  %905 = vmatpush1.bf16.msra.mxu0 0
  %906 = vmatprep.subr.bf16.mxu0 0
  %907 = vmatpush1.bf16.msra.mxu0 0
  %908 = vmatprep.subr.bf16.mxu0 0
  %909 = vmatpush1.bf16.msra.mxu0 0
  %910 = vmatprep.subr.bf16.mxu0 0
  %911 = vmatpush1.bf16.msra.mxu0 0
  %912 = vmatprep.mubr.bf16.mxu0 0
  %913 = vmatmul.mubr.bf16.gmra.mrb[0].mxu0 %v581
  %v914 = vpop.f32.mrb[0].mxu0
  %v915 = vadd.f32 %v493, %v914
  %v916 = vpop.f32.mrb[0].mxu0
  %v917 = vadd.f32 %v495, %v916
  %v918 = vpop.f32.mrb[0].mxu0
  %v919 = vpop.f32.mrb[0].mxu0
  %920 = vdwg.mxu0
  %921 = vmatprep.subr.bf16.mxu0 %v629
  %922 = vmatpush1.bf16.msra.mxu0 %v626
  %923 = vmatprep.subr.bf16.mxu0 0
  %924 = vmatpush1.bf16.msra.mxu0 0
  %925 = vmatprep.subr.bf16.mxu0 0
  %926 = vmatpush1.bf16.msra.mxu0 0
  %927 = vmatprep.subr.bf16.mxu0 0
  %928 = vmatpush1.bf16.msra.mxu0 0
  %929 = vmatprep.subr.bf16.mxu0 0
  %930 = vmatpush1.bf16.msra.mxu0 0
  %931 = vmatprep.subr.bf16.mxu0 0
  %932 = vmatpush1.bf16.msra.mxu0 0
  %933 = vmatprep.subr.bf16.mxu0 0
  %934 = vmatpush1.bf16.msra.mxu0 0
  %935 = vmatprep.subr.bf16.mxu0 0
  %936 = vmatpush1.bf16.msra.mxu0 0
  %937 = vmatprep.subr.bf16.mxu0 0
  %938 = vmatpush1.bf16.msra.mxu0 0
  %939 = vmatprep.subr.bf16.mxu0 0
  %940 = vmatpush1.bf16.msra.mxu0 0
  %941 = vmatprep.subr.bf16.mxu0 0
  %942 = vmatpush1.bf16.msra.mxu0 0
  %943 = vmatprep.subr.bf16.mxu0 0
  %944 = vmatpush1.bf16.msra.mxu0 0
  %945 = vmatprep.subr.bf16.mxu0 0
  %946 = vmatpush1.bf16.msra.mxu0 0
  %947 = vmatprep.subr.bf16.mxu0 0
  %948 = vmatpush1.bf16.msra.mxu0 0
  %949 = vmatprep.subr.bf16.mxu0 0
  %950 = vmatpush1.bf16.msra.mxu0 0
  %951 = vmatprep.subr.bf16.mxu0 0
  %952 = vmatpush1.bf16.msra.mxu0 0
  %953 = vmatprep.mubr.bf16.mxu0 0
  %954 = vmatmul.mubr.bf16.gmra.mrb[0].mxu0 %v581
  %v955 = vpop.f32.mrb[0].mxu0
  %v956 = vadd.f32 %v534, %v955
  %v957 = vpop.f32.mrb[0].mxu0
  %v958 = vadd.f32 %v536, %v957
  %v959 = vpop.f32.mrb[0].mxu0
  %v960 = vpop.f32.mrb[0].mxu0
  %961 = vdwg.mxu0
  %962 = vmatprep.subr.bf16.mxu0 0
  %963 = vmatpush1.bf16.msra.mxu0 %v632
  %964 = vmatprep.subr.bf16.mxu0 0
  %965 = vmatpush1.bf16.msra.mxu0 0
  %966 = vmatprep.subr.bf16.mxu0 0
  %967 = vmatpush1.bf16.msra.mxu0 0
  %968 = vmatprep.subr.bf16.mxu0 0
  %969 = vmatpush1.bf16.msra.mxu0 0
  %970 = vmatprep.subr.bf16.mxu0 0
  %971 = vmatpush1.bf16.msra.mxu0 0
  %972 = vmatprep.subr.bf16.mxu0 0
  %973 = vmatpush1.bf16.msra.mxu0 0
  %974 = vmatprep.subr.bf16.mxu0 0
  %975 = vmatpush1.bf16.msra.mxu0 0
  %976 = vmatprep.subr.bf16.mxu0 0
  %977 = vmatpush1.bf16.msra.mxu0 0
  %978 = vmatprep.subr.bf16.mxu0 0
  %979 = vmatpush1.bf16.msra.mxu0 0
  %980 = vmatprep.subr.bf16.mxu0 0
  %981 = vmatpush1.bf16.msra.mxu0 0
  %982 = vmatprep.subr.bf16.mxu0 0
  %983 = vmatpush1.bf16.msra.mxu0 0
  %984 = vmatprep.subr.bf16.mxu0 0
  %985 = vmatpush1.bf16.msra.mxu0 0
  %986 = vmatprep.subr.bf16.mxu0 0
  %987 = vmatpush1.bf16.msra.mxu0 0
  %988 = vmatprep.subr.bf16.mxu0 0
  %989 = vmatpush1.bf16.msra.mxu0 0
  %990 = vmatprep.subr.bf16.mxu0 0
  %991 = vmatpush1.bf16.msra.mxu0 0
  %992 = vmatprep.subr.bf16.mxu0 0
  %993 = vmatpush1.bf16.msra.mxu0 0
  %994 = vmatprep.mubr.bf16.mxu0 0
  %995 = vmatmul.mubr.bf16.gmra.mrb[0].mxu0 %v581
  %v996 = vpop.f32.mrb[0].mxu0
  %v997 = vadd.f32 %v575, %v996
  %v998 = vpop.f32.mrb[0].mxu0
  %v999 = vpop.f32.mrb[0].mxu0
  %v1000 = vpop.f32.mrb[0].mxu0
  %1001 = vdwg.mxu0
  %s1002 = scalar_lea.vmem %s0, 8
  %v1003 = vld [vmem:[%s1002] sm:$0xf]
  %v1004 = vld [vmem:[%s1] sm:$0xff]
  %v1005 = vld [vmem:[%s1 + $0x8] sm:$0xff]
  %v1006 = vld [vmem:[%s1 + $0x10] sm:$0xff]
  %v1007 = vld [vmem:[%s1 + $0x18] sm:$0xff]
  %v1008 = vld [vmem:[%s1 + $0x20] sm:$0xff]
  %v1009 = vld [vmem:[%s1 + $0x28] sm:$0xff]
  %v1010 = vld [vmem:[%s1 + $0x30] sm:$0xff]
  %v1011 = vld [vmem:[%s1 + $0x38] sm:$0xff]
  %v1012 = vld [vmem:[%s1 + $0x40] sm:$0xff]
  %v1013 = vld [vmem:[%s1 + $0x48] sm:$0x33]
  %v1014 = vld [vmem:[%s1 + $0x50] sm:$0x33]
  %v1015 = vld [vmem:[%s1 + $0x58] sm:$0x33]
  %v1016 = vld [vmem:[%s1 + $0x60] sm:$0x33]
  %v1017 = vld [vmem:[%s1 + $0x68] sm:$0x33]
  %v1018 = vld [vmem:[%s1 + $0x70] sm:$0x33]
  %v1019 = vld [vmem:[%s1 + $0x78] sm:$0x33]
  %v1020 = vld [vmem:[%s1 + $0x80] sm:$0x33]
  %v1021 = vld [vmem:[%s1 + $0x88] sm:$0x33]
  %v1040 = vunpack.c.l.b16 %v1004
  %v1041 = vunpack.c.h.b16 %v1004
  %v1042 = vunpack.c.l.b16 %v1005
  %v1043 = vunpack.c.h.b16 %v1005
  %v1044 = vunpack.c.l.b16 %v1006
  %v1045 = vunpack.c.h.b16 %v1006
  %v1046 = vunpack.c.l.b16 %v1007
  %v1047 = vunpack.c.h.b16 %v1007
  %v1048 = vunpack.c.l.b16 %v1008
  %v1049 = vunpack.c.h.b16 %v1008
  %v1050 = vunpack.c.l.b16 %v1009
  %v1051 = vunpack.c.h.b16 %v1009
  %v1052 = vunpack.c.l.b16 %v1010
  %v1053 = vunpack.c.h.b16 %v1010
  %v1054 = vunpack.c.l.b16 %v1011
  %v1055 = vunpack.c.h.b16 %v1011
  %v1056 = vunpack.c.l.b16 %v1012
  %v1057 = vunpack.c.h.b16 %v1012
  %v1058 = vunpack.c.l.b16 %v1013
  %v1059 = vunpack.c.h.b16 %v1013
  %v1060 = vunpack.c.l.b16 %v1014
  %v1061 = vunpack.c.h.b16 %v1014
  %v1062 = vunpack.c.l.b16 %v1015
  %v1063 = vunpack.c.h.b16 %v1015
  %v1064 = vunpack.c.l.b16 %v1016
  %v1065 = vunpack.c.h.b16 %v1016
  %v1066 = vunpack.c.l.b16 %v1017
  %v1067 = vunpack.c.h.b16 %v1017
  %v1068 = vunpack.c.l.b16 %v1018
  %v1069 = vunpack.c.h.b16 %v1018
  %v1070 = vunpack.c.l.b16 %v1019
  %v1071 = vunpack.c.h.b16 %v1019
  %v1072 = vunpack.c.l.b16 %v1020
  %v1073 = vunpack.c.h.b16 %v1020
  %v1074 = vunpack.c.l.b16 %v1021
  %v1075 = vunpack.c.h.b16 %v1021
  %v1076 = vpack.c.b16 %v1058, %v1040
  %v1077 = vpack.c.b16 %v1059, %v1041
  %v1078 = vpack.c.b16 %v1060, %v1042
  %v1079 = vpack.c.b16 %v1061, %v1043
  %v1080 = vpack.c.b16 %v1062, %v1044
  %v1081 = vpack.c.b16 %v1063, %v1045
  %v1082 = vpack.c.b16 %v1064, %v1046
  %v1083 = vpack.c.b16 %v1065, %v1047
  %v1084 = vpack.c.b16 %v1066, %v1048
  %v1085 = vpack.c.b16 %v1067, %v1049
  %v1086 = vpack.c.b16 %v1068, %v1050
  %v1087 = vpack.c.b16 %v1069, %v1051
  %v1088 = vpack.c.b16 %v1070, %v1052
  %v1089 = vpack.c.b16 %v1071, %v1053
  %v1090 = vpack.c.b16 %v1072, %v1054
  %v1091 = vpack.c.b16 %v1073, %v1055
  %v1092 = vpack.c.b16 %v1074, %v1056
  %v1093 = vpack.c.b16 %v1075, %v1057
  %1094 = vrot.lane.b32.xlu0 %v1076, 95
  %v1095 = vpop.permute.xlu0 %1094
  %1096 = vrot.lane.b32.xlu0 %v1077, 95
  %v1097 = vpop.permute.xlu0 %1096
  %1098 = vrot.lane.b32.xlu0 %v1078, 95
  %v1099 = vpop.permute.xlu0 %1098
  %1100 = vrot.lane.b32.xlu0 %v1079, 95
  %v1101 = vpop.permute.xlu0 %1100
  %1102 = vrot.lane.b32.xlu0 %v1080, 95
  %v1103 = vpop.permute.xlu0 %1102
  %1104 = vrot.lane.b32.xlu0 %v1081, 95
  %v1105 = vpop.permute.xlu0 %1104
  %1106 = vrot.lane.b32.xlu0 %v1082, 95
  %v1107 = vpop.permute.xlu0 %1106
  %1108 = vrot.lane.b32.xlu0 %v1083, 95
  %v1109 = vpop.permute.xlu0 %1108
  %1110 = vrot.lane.b32.xlu0 %v1084, 95
  %v1111 = vpop.permute.xlu0 %1110
  %1112 = vrot.lane.b32.xlu0 %v1085, 95
  %v1113 = vpop.permute.xlu0 %1112
  %1114 = vrot.lane.b32.xlu0 %v1086, 95
  %v1115 = vpop.permute.xlu0 %1114
  %1116 = vrot.lane.b32.xlu0 %v1087, 95
  %v1117 = vpop.permute.xlu0 %1116
  %1118 = vrot.lane.b32.xlu0 %v1088, 95
  %v1119 = vpop.permute.xlu0 %1118
  %1120 = vrot.lane.b32.xlu0 %v1089, 95
  %v1121 = vpop.permute.xlu0 %1120
  %1122 = vrot.lane.b32.xlu0 %v1090, 95
  %v1123 = vpop.permute.xlu0 %1122
  %1124 = vrot.lane.b32.xlu0 %v1091, 95
  %v1125 = vpop.permute.xlu0 %1124
  %1126 = vrot.lane.b32.xlu0 %v1092, 95
  %v1127 = vpop.permute.xlu0 %1126
  %1128 = vrot.lane.b32.xlu0 %v1093, 95
  %v1129 = vpop.permute.xlu0 %1128
  %vm1130 = vcmask 777216
  %v1131 = vsel %vm1130, %v1095, %v1097
  %v1132 = vsel %vm1130, %v1097, %v1099
  %v1133 = vsel %vm1130, %v1099, %v1101
  %v1134 = vsel %vm1130, %v1101, %v1103
  %v1135 = vsel %vm1130, %v1103, %v1105
  %v1136 = vsel %vm1130, %v1105, %v1107
  %v1137 = vsel %vm1130, %v1107, %v1109
  %v1138 = vsel %vm1130, %v1109, %v1111
  %v1139 = vsel %vm1130, %v1111, %v1113
  %v1140 = vsel %vm1130, %v1113, %v1115
  %v1141 = vsel %vm1130, %v1115, %v1117
  %v1142 = vsel %vm1130, %v1117, %v1119
  %v1143 = vsel %vm1130, %v1119, %v1121
  %v1144 = vsel %vm1130, %v1121, %v1123
  %v1145 = vsel %vm1130, %v1123, %v1125
  %v1146 = vsel %vm1130, %v1125, %v1127
  %v1147 = vsel %vm1130, %v1127, %v1129
  %v1149 = vsel %vm156, %v1003, 0
  %v1152 = vsel %vm160, %v1131, 0
  %v1155 = vsel %vm160, %v1132, 0
  %v1158 = vsel %vm160, %v1133, 0
  %v1161 = vsel %vm160, %v1134, 0
  %v1164 = vsel %vm160, %v1135, 0
  %v1167 = vsel %vm160, %v1136, 0
  %v1170 = vsel %vm160, %v1137, 0
  %v1173 = vsel %vm160, %v1138, 0
  %v1176 = vsel %vm160, %v1139, 0
  %v1179 = vsel %vm160, %v1140, 0
  %v1182 = vsel %vm160, %v1141, 0
  %v1185 = vsel %vm160, %v1142, 0
  %v1188 = vsel %vm160, %v1143, 0
  %v1191 = vsel %vm160, %v1144, 0
  %v1194 = vsel %vm160, %v1145, 0
  %v1197 = vsel %vm160, %v1146, 0
  %v1200 = vsel %vm160, %v1147, 0
  %1202 = vmatprep.subr.bf16.mxu0 %v1155
  %1203 = vmatpush1.bf16.msra.mxu0 %v1152
  %1204 = vmatprep.subr.bf16.mxu0 0
  %1205 = vmatpush1.bf16.msra.mxu0 0
  %1206 = vmatprep.subr.bf16.mxu0 0
  %1207 = vmatpush1.bf16.msra.mxu0 0
  %1208 = vmatprep.subr.bf16.mxu0 0
  %1209 = vmatpush1.bf16.msra.mxu0 0
  %1210 = vmatprep.subr.bf16.mxu0 0
  %1211 = vmatpush1.bf16.msra.mxu0 0
  %1212 = vmatprep.subr.bf16.mxu0 0
  %1213 = vmatpush1.bf16.msra.mxu0 0
  %1214 = vmatprep.subr.bf16.mxu0 0
  %1215 = vmatpush1.bf16.msra.mxu0 0
  %1216 = vmatprep.subr.bf16.mxu0 0
  %1217 = vmatpush1.bf16.msra.mxu0 0
  %1218 = vmatprep.subr.bf16.mxu0 0
  %1219 = vmatpush1.bf16.msra.mxu0 0
  %1220 = vmatprep.subr.bf16.mxu0 0
  %1221 = vmatpush1.bf16.msra.mxu0 0
  %1222 = vmatprep.subr.bf16.mxu0 0
  %1223 = vmatpush1.bf16.msra.mxu0 0
  %1224 = vmatprep.subr.bf16.mxu0 0
  %1225 = vmatpush1.bf16.msra.mxu0 0
  %1226 = vmatprep.subr.bf16.mxu0 0
  %1227 = vmatpush1.bf16.msra.mxu0 0
  %1228 = vmatprep.subr.bf16.mxu0 0
  %1229 = vmatpush1.bf16.msra.mxu0 0
  %1230 = vmatprep.subr.bf16.mxu0 0
  %1231 = vmatpush1.bf16.msra.mxu0 0
  %1232 = vmatprep.subr.bf16.mxu0 0
  %1233 = vmatpush1.bf16.msra.mxu0 0
  %1234 = vmatprep.mubr.bf16.mxu0 0
  %1235 = vmatmul.mubr.bf16.gmra.mrb[0].mxu0 %v1149
  %v1236 = vpop.f32.mrb[0].mxu0
  %v1237 = vadd.f32 0.0, %v1236
  %v1238 = vpop.f32.mrb[0].mxu0
  %v1239 = vadd.f32 0.0, %v1238
  %v1240 = vpop.f32.mrb[0].mxu0
  %v1241 = vpop.f32.mrb[0].mxu0
  %1242 = vdwg.mxu0
  %1243 = vmatprep.subr.bf16.mxu0 %v1161
  %1244 = vmatpush1.bf16.msra.mxu0 %v1158
  %1245 = vmatprep.subr.bf16.mxu0 0
  %1246 = vmatpush1.bf16.msra.mxu0 0
  %1247 = vmatprep.subr.bf16.mxu0 0
  %1248 = vmatpush1.bf16.msra.mxu0 0
  %1249 = vmatprep.subr.bf16.mxu0 0
  %1250 = vmatpush1.bf16.msra.mxu0 0
  %1251 = vmatprep.subr.bf16.mxu0 0
  %1252 = vmatpush1.bf16.msra.mxu0 0
  %1253 = vmatprep.subr.bf16.mxu0 0
  %1254 = vmatpush1.bf16.msra.mxu0 0
  %1255 = vmatprep.subr.bf16.mxu0 0
  %1256 = vmatpush1.bf16.msra.mxu0 0
  %1257 = vmatprep.subr.bf16.mxu0 0
  %1258 = vmatpush1.bf16.msra.mxu0 0
  %1259 = vmatprep.subr.bf16.mxu0 0
  %1260 = vmatpush1.bf16.msra.mxu0 0
  %1261 = vmatprep.subr.bf16.mxu0 0
  %1262 = vmatpush1.bf16.msra.mxu0 0
  %1263 = vmatprep.subr.bf16.mxu0 0
  %1264 = vmatpush1.bf16.msra.mxu0 0
  %1265 = vmatprep.subr.bf16.mxu0 0
  %1266 = vmatpush1.bf16.msra.mxu0 0
  %1267 = vmatprep.subr.bf16.mxu0 0
  %1268 = vmatpush1.bf16.msra.mxu0 0
  %1269 = vmatprep.subr.bf16.mxu0 0
  %1270 = vmatpush1.bf16.msra.mxu0 0
  %1271 = vmatprep.subr.bf16.mxu0 0
  %1272 = vmatpush1.bf16.msra.mxu0 0
  %1273 = vmatprep.subr.bf16.mxu0 0
  %1274 = vmatpush1.bf16.msra.mxu0 0
  %1275 = vmatprep.mubr.bf16.mxu0 0
  %1276 = vmatmul.mubr.bf16.gmra.mrb[0].mxu0 %v1149
  %v1277 = vpop.f32.mrb[0].mxu0
  %v1278 = vadd.f32 0.0, %v1277
  %v1279 = vpop.f32.mrb[0].mxu0
  %v1280 = vadd.f32 0.0, %v1279
  %v1281 = vpop.f32.mrb[0].mxu0
  %v1282 = vpop.f32.mrb[0].mxu0
  %1283 = vdwg.mxu0
  %1284 = vmatprep.subr.bf16.mxu0 %v1167
  %1285 = vmatpush1.bf16.msra.mxu0 %v1164
  %1286 = vmatprep.subr.bf16.mxu0 0
  %1287 = vmatpush1.bf16.msra.mxu0 0
  %1288 = vmatprep.subr.bf16.mxu0 0
  %1289 = vmatpush1.bf16.msra.mxu0 0
  %1290 = vmatprep.subr.bf16.mxu0 0
  %1291 = vmatpush1.bf16.msra.mxu0 0
  %1292 = vmatprep.subr.bf16.mxu0 0
  %1293 = vmatpush1.bf16.msra.mxu0 0
  %1294 = vmatprep.subr.bf16.mxu0 0
  %1295 = vmatpush1.bf16.msra.mxu0 0
  %1296 = vmatprep.subr.bf16.mxu0 0
  %1297 = vmatpush1.bf16.msra.mxu0 0
  %1298 = vmatprep.subr.bf16.mxu0 0
  %1299 = vmatpush1.bf16.msra.mxu0 0
  %1300 = vmatprep.subr.bf16.mxu0 0
  %1301 = vmatpush1.bf16.msra.mxu0 0
  %1302 = vmatprep.subr.bf16.mxu0 0
  %1303 = vmatpush1.bf16.msra.mxu0 0
  %1304 = vmatprep.subr.bf16.mxu0 0
  %1305 = vmatpush1.bf16.msra.mxu0 0
  %1306 = vmatprep.subr.bf16.mxu0 0
  %1307 = vmatpush1.bf16.msra.mxu0 0
  %1308 = vmatprep.subr.bf16.mxu0 0
  %1309 = vmatpush1.bf16.msra.mxu0 0
  %1310 = vmatprep.subr.bf16.mxu0 0
  %1311 = vmatpush1.bf16.msra.mxu0 0
  %1312 = vmatprep.subr.bf16.mxu0 0
  %1313 = vmatpush1.bf16.msra.mxu0 0
  %1314 = vmatprep.subr.bf16.mxu0 0
  %1315 = vmatpush1.bf16.msra.mxu0 0
  %1316 = vmatprep.mubr.bf16.mxu0 0
  %1317 = vmatmul.mubr.bf16.gmra.mrb[0].mxu0 %v1149
  %v1318 = vpop.f32.mrb[0].mxu0
  %v1319 = vadd.f32 0.0, %v1318
  %v1320 = vpop.f32.mrb[0].mxu0
  %v1321 = vadd.f32 0.0, %v1320
  %v1322 = vpop.f32.mrb[0].mxu0
  %v1323 = vpop.f32.mrb[0].mxu0
  %1324 = vdwg.mxu0
  %1325 = vmatprep.subr.bf16.mxu0 %v1173
  %1326 = vmatpush1.bf16.msra.mxu0 %v1170
  %1327 = vmatprep.subr.bf16.mxu0 0
  %1328 = vmatpush1.bf16.msra.mxu0 0
  %1329 = vmatprep.subr.bf16.mxu0 0
  %1330 = vmatpush1.bf16.msra.mxu0 0
  %1331 = vmatprep.subr.bf16.mxu0 0
  %1332 = vmatpush1.bf16.msra.mxu0 0
  %1333 = vmatprep.subr.bf16.mxu0 0
  %1334 = vmatpush1.bf16.msra.mxu0 0
  %1335 = vmatprep.subr.bf16.mxu0 0
  %1336 = vmatpush1.bf16.msra.mxu0 0
  %1337 = vmatprep.subr.bf16.mxu0 0
  %1338 = vmatpush1.bf16.msra.mxu0 0
  %1339 = vmatprep.subr.bf16.mxu0 0
  %1340 = vmatpush1.bf16.msra.mxu0 0
  %1341 = vmatprep.subr.bf16.mxu0 0
  %1342 = vmatpush1.bf16.msra.mxu0 0
  %1343 = vmatprep.subr.bf16.mxu0 0
  %1344 = vmatpush1.bf16.msra.mxu0 0
  %1345 = vmatprep.subr.bf16.mxu0 0
  %1346 = vmatpush1.bf16.msra.mxu0 0
  %1347 = vmatprep.subr.bf16.mxu0 0
  %1348 = vmatpush1.bf16.msra.mxu0 0
  %1349 = vmatprep.subr.bf16.mxu0 0
  %1350 = vmatpush1.bf16.msra.mxu0 0
  %1351 = vmatprep.subr.bf16.mxu0 0
  %1352 = vmatpush1.bf16.msra.mxu0 0
  %1353 = vmatprep.subr.bf16.mxu0 0
  %1354 = vmatpush1.bf16.msra.mxu0 0
  %1355 = vmatprep.subr.bf16.mxu0 0
  %1356 = vmatpush1.bf16.msra.mxu0 0
  %1357 = vmatprep.mubr.bf16.mxu0 0
  %1358 = vmatmul.mubr.bf16.gmra.mrb[0].mxu0 %v1149
  %v1359 = vpop.f32.mrb[0].mxu0
  %v1360 = vadd.f32 0.0, %v1359
  %v1361 = vpop.f32.mrb[0].mxu0
  %v1362 = vadd.f32 0.0, %v1361
  %v1363 = vpop.f32.mrb[0].mxu0
  %v1364 = vpop.f32.mrb[0].mxu0
  %1365 = vdwg.mxu0
  %1366 = vmatprep.subr.bf16.mxu0 %v1179
  %1367 = vmatpush1.bf16.msra.mxu0 %v1176
  %1368 = vmatprep.subr.bf16.mxu0 0
  %1369 = vmatpush1.bf16.msra.mxu0 0
  %1370 = vmatprep.subr.bf16.mxu0 0
  %1371 = vmatpush1.bf16.msra.mxu0 0
  %1372 = vmatprep.subr.bf16.mxu0 0
  %1373 = vmatpush1.bf16.msra.mxu0 0
  %1374 = vmatprep.subr.bf16.mxu0 0
  %1375 = vmatpush1.bf16.msra.mxu0 0
  %1376 = vmatprep.subr.bf16.mxu0 0
  %1377 = vmatpush1.bf16.msra.mxu0 0
  %1378 = vmatprep.subr.bf16.mxu0 0
  %1379 = vmatpush1.bf16.msra.mxu0 0
  %1380 = vmatprep.subr.bf16.mxu0 0
  %1381 = vmatpush1.bf16.msra.mxu0 0
  %1382 = vmatprep.subr.bf16.mxu0 0
  %1383 = vmatpush1.bf16.msra.mxu0 0
  %1384 = vmatprep.subr.bf16.mxu0 0
  %1385 = vmatpush1.bf16.msra.mxu0 0
  %1386 = vmatprep.subr.bf16.mxu0 0
  %1387 = vmatpush1.bf16.msra.mxu0 0
  %1388 = vmatprep.subr.bf16.mxu0 0
  %1389 = vmatpush1.bf16.msra.mxu0 0
  %1390 = vmatprep.subr.bf16.mxu0 0
  %1391 = vmatpush1.bf16.msra.mxu0 0
  %1392 = vmatprep.subr.bf16.mxu0 0
  %1393 = vmatpush1.bf16.msra.mxu0 0
  %1394 = vmatprep.subr.bf16.mxu0 0
  %1395 = vmatpush1.bf16.msra.mxu0 0
  %1396 = vmatprep.subr.bf16.mxu0 0
  %1397 = vmatpush1.bf16.msra.mxu0 0
  %1398 = vmatprep.mubr.bf16.mxu0 0
  %1399 = vmatmul.mubr.bf16.gmra.mrb[0].mxu0 %v1149
  %v1400 = vpop.f32.mrb[0].mxu0
  %v1401 = vadd.f32 0.0, %v1400
  %v1402 = vpop.f32.mrb[0].mxu0
  %v1403 = vadd.f32 0.0, %v1402
  %v1404 = vpop.f32.mrb[0].mxu0
  %v1405 = vpop.f32.mrb[0].mxu0
  %1406 = vdwg.mxu0
  %1407 = vmatprep.subr.bf16.mxu0 %v1185
  %1408 = vmatpush1.bf16.msra.mxu0 %v1182
  %1409 = vmatprep.subr.bf16.mxu0 0
  %1410 = vmatpush1.bf16.msra.mxu0 0
  %1411 = vmatprep.subr.bf16.mxu0 0
  %1412 = vmatpush1.bf16.msra.mxu0 0
  %1413 = vmatprep.subr.bf16.mxu0 0
  %1414 = vmatpush1.bf16.msra.mxu0 0
  %1415 = vmatprep.subr.bf16.mxu0 0
  %1416 = vmatpush1.bf16.msra.mxu0 0
  %1417 = vmatprep.subr.bf16.mxu0 0
  %1418 = vmatpush1.bf16.msra.mxu0 0
  %1419 = vmatprep.subr.bf16.mxu0 0
  %1420 = vmatpush1.bf16.msra.mxu0 0
  %1421 = vmatprep.subr.bf16.mxu0 0
  %1422 = vmatpush1.bf16.msra.mxu0 0
  %1423 = vmatprep.subr.bf16.mxu0 0
  %1424 = vmatpush1.bf16.msra.mxu0 0
  %1425 = vmatprep.subr.bf16.mxu0 0
  %1426 = vmatpush1.bf16.msra.mxu0 0
  %1427 = vmatprep.subr.bf16.mxu0 0
  %1428 = vmatpush1.bf16.msra.mxu0 0
  %1429 = vmatprep.subr.bf16.mxu0 0
  %1430 = vmatpush1.bf16.msra.mxu0 0
  %1431 = vmatprep.subr.bf16.mxu0 0
  %1432 = vmatpush1.bf16.msra.mxu0 0
  %1433 = vmatprep.subr.bf16.mxu0 0
  %1434 = vmatpush1.bf16.msra.mxu0 0
  %1435 = vmatprep.subr.bf16.mxu0 0
  %1436 = vmatpush1.bf16.msra.mxu0 0
  %1437 = vmatprep.subr.bf16.mxu0 0
  %1438 = vmatpush1.bf16.msra.mxu0 0
  %1439 = vmatprep.mubr.bf16.mxu0 0
  %1440 = vmatmul.mubr.bf16.gmra.mrb[0].mxu0 %v1149
  %v1441 = vpop.f32.mrb[0].mxu0
  %v1442 = vadd.f32 0.0, %v1441
  %v1443 = vpop.f32.mrb[0].mxu0
  %v1444 = vadd.f32 0.0, %v1443
  %v1445 = vpop.f32.mrb[0].mxu0
  %v1446 = vpop.f32.mrb[0].mxu0
  %1447 = vdwg.mxu0
  %1448 = vmatprep.subr.bf16.mxu0 %v1191
  %1449 = vmatpush1.bf16.msra.mxu0 %v1188
  %1450 = vmatprep.subr.bf16.mxu0 0
  %1451 = vmatpush1.bf16.msra.mxu0 0
  %1452 = vmatprep.subr.bf16.mxu0 0
  %1453 = vmatpush1.bf16.msra.mxu0 0
  %1454 = vmatprep.subr.bf16.mxu0 0
  %1455 = vmatpush1.bf16.msra.mxu0 0
  %1456 = vmatprep.subr.bf16.mxu0 0
  %1457 = vmatpush1.bf16.msra.mxu0 0
  %1458 = vmatprep.subr.bf16.mxu0 0
  %1459 = vmatpush1.bf16.msra.mxu0 0
  %1460 = vmatprep.subr.bf16.mxu0 0
  %1461 = vmatpush1.bf16.msra.mxu0 0
  %1462 = vmatprep.subr.bf16.mxu0 0
  %1463 = vmatpush1.bf16.msra.mxu0 0
  %1464 = vmatprep.subr.bf16.mxu0 0
  %1465 = vmatpush1.bf16.msra.mxu0 0
  %1466 = vmatprep.subr.bf16.mxu0 0
  %1467 = vmatpush1.bf16.msra.mxu0 0
  %1468 = vmatprep.subr.bf16.mxu0 0
  %1469 = vmatpush1.bf16.msra.mxu0 0
  %1470 = vmatprep.subr.bf16.mxu0 0
  %1471 = vmatpush1.bf16.msra.mxu0 0
  %1472 = vmatprep.subr.bf16.mxu0 0
  %1473 = vmatpush1.bf16.msra.mxu0 0
  %1474 = vmatprep.subr.bf16.mxu0 0
  %1475 = vmatpush1.bf16.msra.mxu0 0
  %1476 = vmatprep.subr.bf16.mxu0 0
  %1477 = vmatpush1.bf16.msra.mxu0 0
  %1478 = vmatprep.subr.bf16.mxu0 0
  %1479 = vmatpush1.bf16.msra.mxu0 0
  %1480 = vmatprep.mubr.bf16.mxu0 0
  %1481 = vmatmul.mubr.bf16.gmra.mrb[0].mxu0 %v1149
  %v1482 = vpop.f32.mrb[0].mxu0
  %v1483 = vadd.f32 0.0, %v1482
  %v1484 = vpop.f32.mrb[0].mxu0
  %v1485 = vadd.f32 0.0, %v1484
  %v1486 = vpop.f32.mrb[0].mxu0
  %v1487 = vpop.f32.mrb[0].mxu0
  %1488 = vdwg.mxu0
  %1489 = vmatprep.subr.bf16.mxu0 %v1197
  %1490 = vmatpush1.bf16.msra.mxu0 %v1194
  %1491 = vmatprep.subr.bf16.mxu0 0
  %1492 = vmatpush1.bf16.msra.mxu0 0
  %1493 = vmatprep.subr.bf16.mxu0 0
  %1494 = vmatpush1.bf16.msra.mxu0 0
  %1495 = vmatprep.subr.bf16.mxu0 0
  %1496 = vmatpush1.bf16.msra.mxu0 0
  %1497 = vmatprep.subr.bf16.mxu0 0
  %1498 = vmatpush1.bf16.msra.mxu0 0
  %1499 = vmatprep.subr.bf16.mxu0 0
  %1500 = vmatpush1.bf16.msra.mxu0 0
  %1501 = vmatprep.subr.bf16.mxu0 0
  %1502 = vmatpush1.bf16.msra.mxu0 0
  %1503 = vmatprep.subr.bf16.mxu0 0
  %1504 = vmatpush1.bf16.msra.mxu0 0
  %1505 = vmatprep.subr.bf16.mxu0 0
  %1506 = vmatpush1.bf16.msra.mxu0 0
  %1507 = vmatprep.subr.bf16.mxu0 0
  %1508 = vmatpush1.bf16.msra.mxu0 0
  %1509 = vmatprep.subr.bf16.mxu0 0
  %1510 = vmatpush1.bf16.msra.mxu0 0
  %1511 = vmatprep.subr.bf16.mxu0 0
  %1512 = vmatpush1.bf16.msra.mxu0 0
  %1513 = vmatprep.subr.bf16.mxu0 0
  %1514 = vmatpush1.bf16.msra.mxu0 0
  %1515 = vmatprep.subr.bf16.mxu0 0
  %1516 = vmatpush1.bf16.msra.mxu0 0
  %1517 = vmatprep.subr.bf16.mxu0 0
  %1518 = vmatpush1.bf16.msra.mxu0 0
  %1519 = vmatprep.subr.bf16.mxu0 0
  %1520 = vmatpush1.bf16.msra.mxu0 0
  %1521 = vmatprep.mubr.bf16.mxu0 0
  %1522 = vmatmul.mubr.bf16.gmra.mrb[0].mxu0 %v1149
  %v1523 = vpop.f32.mrb[0].mxu0
  %v1524 = vadd.f32 0.0, %v1523
  %v1525 = vpop.f32.mrb[0].mxu0
  %v1526 = vadd.f32 0.0, %v1525
  %v1527 = vpop.f32.mrb[0].mxu0
  %v1528 = vpop.f32.mrb[0].mxu0
  %1529 = vdwg.mxu0
  %1530 = vmatprep.subr.bf16.mxu0 0
  %1531 = vmatpush1.bf16.msra.mxu0 %v1200
  %1532 = vmatprep.subr.bf16.mxu0 0
  %1533 = vmatpush1.bf16.msra.mxu0 0
  %1534 = vmatprep.subr.bf16.mxu0 0
  %1535 = vmatpush1.bf16.msra.mxu0 0
  %1536 = vmatprep.subr.bf16.mxu0 0
  %1537 = vmatpush1.bf16.msra.mxu0 0
  %1538 = vmatprep.subr.bf16.mxu0 0
  %1539 = vmatpush1.bf16.msra.mxu0 0
  %1540 = vmatprep.subr.bf16.mxu0 0
  %1541 = vmatpush1.bf16.msra.mxu0 0
  %1542 = vmatprep.subr.bf16.mxu0 0
  %1543 = vmatpush1.bf16.msra.mxu0 0
  %1544 = vmatprep.subr.bf16.mxu0 0
  %1545 = vmatpush1.bf16.msra.mxu0 0
  %1546 = vmatprep.subr.bf16.mxu0 0
  %1547 = vmatpush1.bf16.msra.mxu0 0
  %1548 = vmatprep.subr.bf16.mxu0 0
  %1549 = vmatpush1.bf16.msra.mxu0 0
  %1550 = vmatprep.subr.bf16.mxu0 0
  %1551 = vmatpush1.bf16.msra.mxu0 0
  %1552 = vmatprep.subr.bf16.mxu0 0
  %1553 = vmatpush1.bf16.msra.mxu0 0
  %1554 = vmatprep.subr.bf16.mxu0 0
  %1555 = vmatpush1.bf16.msra.mxu0 0
  %1556 = vmatprep.subr.bf16.mxu0 0
  %1557 = vmatpush1.bf16.msra.mxu0 0
  %1558 = vmatprep.subr.bf16.mxu0 0
  %1559 = vmatpush1.bf16.msra.mxu0 0
  %1560 = vmatprep.subr.bf16.mxu0 0
  %1561 = vmatpush1.bf16.msra.mxu0 0
  %1562 = vmatprep.mubr.bf16.mxu0 0
  %1563 = vmatmul.mubr.bf16.gmra.mrb[0].mxu0 %v1149
  %v1564 = vpop.f32.mrb[0].mxu0
  %v1565 = vadd.f32 0.0, %v1564
  %v1566 = vpop.f32.mrb[0].mxu0
  %v1567 = vpop.f32.mrb[0].mxu0
  %v1568 = vpop.f32.mrb[0].mxu0
  %1569 = vdwg.mxu0
  %v1570 = vadd.f32 %v669, %v1237
  %v1571 = vadd.f32 %v671, %v1239
  %v1572 = vadd.f32 %v710, %v1278
  %v1573 = vadd.f32 %v712, %v1280
  %v1574 = vadd.f32 %v751, %v1319
  %v1575 = vadd.f32 %v753, %v1321
  %v1576 = vadd.f32 %v792, %v1360
  %v1577 = vadd.f32 %v794, %v1362
  %v1578 = vadd.f32 %v833, %v1401
  %v1579 = vadd.f32 %v835, %v1403
  %v1580 = vadd.f32 %v874, %v1442
  %v1581 = vadd.f32 %v876, %v1444
  %v1582 = vadd.f32 %v915, %v1483
  %v1583 = vadd.f32 %v917, %v1485
  %v1584 = vadd.f32 %v956, %v1524
  %v1585 = vadd.f32 %v958, %v1526
  %v1586 = vadd.f32 %v997, %v1565
  %s1587 = scalar_lea.vmem %s0, 12
  %v1588 = vld [vmem:[%s1587] sm:$0xf]
  %1589 = vrot.lane.b32.xlu0 %v1076, 94
  %v1590 = vpop.permute.xlu0 %1589
  %1591 = vrot.lane.b32.xlu0 %v1077, 94
  %v1592 = vpop.permute.xlu0 %1591
  %1593 = vrot.lane.b32.xlu0 %v1078, 94
  %v1594 = vpop.permute.xlu0 %1593
  %1595 = vrot.lane.b32.xlu0 %v1079, 94
  %v1596 = vpop.permute.xlu0 %1595
  %1597 = vrot.lane.b32.xlu0 %v1080, 94
  %v1598 = vpop.permute.xlu0 %1597
  %1599 = vrot.lane.b32.xlu0 %v1081, 94
  %v1600 = vpop.permute.xlu0 %1599
  %1601 = vrot.lane.b32.xlu0 %v1082, 94
  %v1602 = vpop.permute.xlu0 %1601
  %1603 = vrot.lane.b32.xlu0 %v1083, 94
  %v1604 = vpop.permute.xlu0 %1603
  %1605 = vrot.lane.b32.xlu0 %v1084, 94
  %v1606 = vpop.permute.xlu0 %1605
  %1607 = vrot.lane.b32.xlu0 %v1085, 94
  %v1608 = vpop.permute.xlu0 %1607
  %1609 = vrot.lane.b32.xlu0 %v1086, 94
  %v1610 = vpop.permute.xlu0 %1609
  %1611 = vrot.lane.b32.xlu0 %v1087, 94
  %v1612 = vpop.permute.xlu0 %1611
  %1613 = vrot.lane.b32.xlu0 %v1088, 94
  %v1614 = vpop.permute.xlu0 %1613
  %1615 = vrot.lane.b32.xlu0 %v1089, 94
  %v1616 = vpop.permute.xlu0 %1615
  %1617 = vrot.lane.b32.xlu0 %v1090, 94
  %v1618 = vpop.permute.xlu0 %1617
  %1619 = vrot.lane.b32.xlu0 %v1091, 94
  %v1620 = vpop.permute.xlu0 %1619
  %1621 = vrot.lane.b32.xlu0 %v1092, 94
  %v1622 = vpop.permute.xlu0 %1621
  %1623 = vrot.lane.b32.xlu0 %v1093, 94
  %v1624 = vpop.permute.xlu0 %1623
  %vm1625 = vcmask 769024
  %v1626 = vsel %vm1625, %v1590, %v1592
  %v1627 = vsel %vm1625, %v1592, %v1594
  %v1628 = vsel %vm1625, %v1594, %v1596
  %v1629 = vsel %vm1625, %v1596, %v1598
  %v1630 = vsel %vm1625, %v1598, %v1600
  %v1631 = vsel %vm1625, %v1600, %v1602
  %v1632 = vsel %vm1625, %v1602, %v1604
  %v1633 = vsel %vm1625, %v1604, %v1606
  %v1634 = vsel %vm1625, %v1606, %v1608
  %v1635 = vsel %vm1625, %v1608, %v1610
  %v1636 = vsel %vm1625, %v1610, %v1612
  %v1637 = vsel %vm1625, %v1612, %v1614
  %v1638 = vsel %vm1625, %v1614, %v1616
  %v1639 = vsel %vm1625, %v1616, %v1618
  %v1640 = vsel %vm1625, %v1618, %v1620
  %v1641 = vsel %vm1625, %v1620, %v1622
  %v1642 = vsel %vm1625, %v1622, %v1624
  %v1644 = vsel %vm156, %v1588, 0
  %v1647 = vsel %vm160, %v1626, 0
  %v1650 = vsel %vm160, %v1627, 0
  %v1653 = vsel %vm160, %v1628, 0
  %v1656 = vsel %vm160, %v1629, 0
  %v1659 = vsel %vm160, %v1630, 0
  %v1662 = vsel %vm160, %v1631, 0
  %v1665 = vsel %vm160, %v1632, 0
  %v1668 = vsel %vm160, %v1633, 0
  %v1671 = vsel %vm160, %v1634, 0
  %v1674 = vsel %vm160, %v1635, 0
  %v1677 = vsel %vm160, %v1636, 0
  %v1680 = vsel %vm160, %v1637, 0
  %v1683 = vsel %vm160, %v1638, 0
  %v1686 = vsel %vm160, %v1639, 0
  %v1689 = vsel %vm160, %v1640, 0
  %v1692 = vsel %vm160, %v1641, 0
  %v1695 = vsel %vm160, %v1642, 0
  %1697 = vmatprep.subr.bf16.mxu0 %v1650
  %1698 = vmatpush1.bf16.msra.mxu0 %v1647
  %1699 = vmatprep.subr.bf16.mxu0 0
  %1700 = vmatpush1.bf16.msra.mxu0 0
  %1701 = vmatprep.subr.bf16.mxu0 0
  %1702 = vmatpush1.bf16.msra.mxu0 0
  %1703 = vmatprep.subr.bf16.mxu0 0
  %1704 = vmatpush1.bf16.msra.mxu0 0
  %1705 = vmatprep.subr.bf16.mxu0 0
  %1706 = vmatpush1.bf16.msra.mxu0 0
  %1707 = vmatprep.subr.bf16.mxu0 0
  %1708 = vmatpush1.bf16.msra.mxu0 0
  %1709 = vmatprep.subr.bf16.mxu0 0
  %1710 = vmatpush1.bf16.msra.mxu0 0
  %1711 = vmatprep.subr.bf16.mxu0 0
  %1712 = vmatpush1.bf16.msra.mxu0 0
  %1713 = vmatprep.subr.bf16.mxu0 0
  %1714 = vmatpush1.bf16.msra.mxu0 0
  %1715 = vmatprep.subr.bf16.mxu0 0
  %1716 = vmatpush1.bf16.msra.mxu0 0
  %1717 = vmatprep.subr.bf16.mxu0 0
  %1718 = vmatpush1.bf16.msra.mxu0 0
  %1719 = vmatprep.subr.bf16.mxu0 0
  %1720 = vmatpush1.bf16.msra.mxu0 0
  %1721 = vmatprep.subr.bf16.mxu0 0
  %1722 = vmatpush1.bf16.msra.mxu0 0
  %1723 = vmatprep.subr.bf16.mxu0 0
  %1724 = vmatpush1.bf16.msra.mxu0 0
  %1725 = vmatprep.subr.bf16.mxu0 0
  %1726 = vmatpush1.bf16.msra.mxu0 0
  %1727 = vmatprep.subr.bf16.mxu0 0
  %1728 = vmatpush1.bf16.msra.mxu0 0
  %1729 = vmatprep.mubr.bf16.mxu0 0
  %1730 = vmatmul.mubr.bf16.gmra.mrb[0].mxu0 %v1644
  %v1731 = vpop.f32.mrb[0].mxu0
  %v1732 = vadd.f32 0.0, %v1731
  %v1733 = vpop.f32.mrb[0].mxu0
  %v1734 = vadd.f32 0.0, %v1733
  %v1735 = vpop.f32.mrb[0].mxu0
  %v1736 = vpop.f32.mrb[0].mxu0
  %1737 = vdwg.mxu0
  %1738 = vmatprep.subr.bf16.mxu0 %v1656
  %1739 = vmatpush1.bf16.msra.mxu0 %v1653
  %1740 = vmatprep.subr.bf16.mxu0 0
  %1741 = vmatpush1.bf16.msra.mxu0 0
  %1742 = vmatprep.subr.bf16.mxu0 0
  %1743 = vmatpush1.bf16.msra.mxu0 0
  %1744 = vmatprep.subr.bf16.mxu0 0
  %1745 = vmatpush1.bf16.msra.mxu0 0
  %1746 = vmatprep.subr.bf16.mxu0 0
  %1747 = vmatpush1.bf16.msra.mxu0 0
  %1748 = vmatprep.subr.bf16.mxu0 0
  %1749 = vmatpush1.bf16.msra.mxu0 0
  %1750 = vmatprep.subr.bf16.mxu0 0
  %1751 = vmatpush1.bf16.msra.mxu0 0
  %1752 = vmatprep.subr.bf16.mxu0 0
  %1753 = vmatpush1.bf16.msra.mxu0 0
  %1754 = vmatprep.subr.bf16.mxu0 0
  %1755 = vmatpush1.bf16.msra.mxu0 0
  %1756 = vmatprep.subr.bf16.mxu0 0
  %1757 = vmatpush1.bf16.msra.mxu0 0
  %1758 = vmatprep.subr.bf16.mxu0 0
  %1759 = vmatpush1.bf16.msra.mxu0 0
  %1760 = vmatprep.subr.bf16.mxu0 0
  %1761 = vmatpush1.bf16.msra.mxu0 0
  %1762 = vmatprep.subr.bf16.mxu0 0
  %1763 = vmatpush1.bf16.msra.mxu0 0
  %1764 = vmatprep.subr.bf16.mxu0 0
  %1765 = vmatpush1.bf16.msra.mxu0 0
  %1766 = vmatprep.subr.bf16.mxu0 0
  %1767 = vmatpush1.bf16.msra.mxu0 0
  %1768 = vmatprep.subr.bf16.mxu0 0
  %1769 = vmatpush1.bf16.msra.mxu0 0
  %1770 = vmatprep.mubr.bf16.mxu0 0
  %1771 = vmatmul.mubr.bf16.gmra.mrb[0].mxu0 %v1644
  %v1772 = vpop.f32.mrb[0].mxu0
  %v1773 = vadd.f32 0.0, %v1772
  %v1774 = vpop.f32.mrb[0].mxu0
  %v1775 = vadd.f32 0.0, %v1774
  %v1776 = vpop.f32.mrb[0].mxu0
  %v1777 = vpop.f32.mrb[0].mxu0
  %1778 = vdwg.mxu0
  %1779 = vmatprep.subr.bf16.mxu0 %v1662
  %1780 = vmatpush1.bf16.msra.mxu0 %v1659
  %1781 = vmatprep.subr.bf16.mxu0 0
  %1782 = vmatpush1.bf16.msra.mxu0 0
  %1783 = vmatprep.subr.bf16.mxu0 0
  %1784 = vmatpush1.bf16.msra.mxu0 0
  %1785 = vmatprep.subr.bf16.mxu0 0
  %1786 = vmatpush1.bf16.msra.mxu0 0
  %1787 = vmatprep.subr.bf16.mxu0 0
  %1788 = vmatpush1.bf16.msra.mxu0 0
  %1789 = vmatprep.subr.bf16.mxu0 0
  %1790 = vmatpush1.bf16.msra.mxu0 0
  %1791 = vmatprep.subr.bf16.mxu0 0
  %1792 = vmatpush1.bf16.msra.mxu0 0
  %1793 = vmatprep.subr.bf16.mxu0 0
  %1794 = vmatpush1.bf16.msra.mxu0 0
  %1795 = vmatprep.subr.bf16.mxu0 0
  %1796 = vmatpush1.bf16.msra.mxu0 0
  %1797 = vmatprep.subr.bf16.mxu0 0
  %1798 = vmatpush1.bf16.msra.mxu0 0
  %1799 = vmatprep.subr.bf16.mxu0 0
  %1800 = vmatpush1.bf16.msra.mxu0 0
  %1801 = vmatprep.subr.bf16.mxu0 0
  %1802 = vmatpush1.bf16.msra.mxu0 0
  %1803 = vmatprep.subr.bf16.mxu0 0
  %1804 = vmatpush1.bf16.msra.mxu0 0
  %1805 = vmatprep.subr.bf16.mxu0 0
  %1806 = vmatpush1.bf16.msra.mxu0 0
  %1807 = vmatprep.subr.bf16.mxu0 0
  %1808 = vmatpush1.bf16.msra.mxu0 0
  %1809 = vmatprep.subr.bf16.mxu0 0
  %1810 = vmatpush1.bf16.msra.mxu0 0
  %1811 = vmatprep.mubr.bf16.mxu0 0
  %1812 = vmatmul.mubr.bf16.gmra.mrb[0].mxu0 %v1644
  %v1813 = vpop.f32.mrb[0].mxu0
  %v1814 = vadd.f32 0.0, %v1813
  %v1815 = vpop.f32.mrb[0].mxu0
  %v1816 = vadd.f32 0.0, %v1815
  %v1817 = vpop.f32.mrb[0].mxu0
  %v1818 = vpop.f32.mrb[0].mxu0
  %1819 = vdwg.mxu0
  %1820 = vmatprep.subr.bf16.mxu0 %v1668
  %1821 = vmatpush1.bf16.msra.mxu0 %v1665
  %1822 = vmatprep.subr.bf16.mxu0 0
  %1823 = vmatpush1.bf16.msra.mxu0 0
  %1824 = vmatprep.subr.bf16.mxu0 0
  %1825 = vmatpush1.bf16.msra.mxu0 0
  %1826 = vmatprep.subr.bf16.mxu0 0
  %1827 = vmatpush1.bf16.msra.mxu0 0
  %1828 = vmatprep.subr.bf16.mxu0 0
  %1829 = vmatpush1.bf16.msra.mxu0 0
  %1830 = vmatprep.subr.bf16.mxu0 0
  %1831 = vmatpush1.bf16.msra.mxu0 0
  %1832 = vmatprep.subr.bf16.mxu0 0
  %1833 = vmatpush1.bf16.msra.mxu0 0
  %1834 = vmatprep.subr.bf16.mxu0 0
  %1835 = vmatpush1.bf16.msra.mxu0 0
  %1836 = vmatprep.subr.bf16.mxu0 0
  %1837 = vmatpush1.bf16.msra.mxu0 0
  %1838 = vmatprep.subr.bf16.mxu0 0
  %1839 = vmatpush1.bf16.msra.mxu0 0
  %1840 = vmatprep.subr.bf16.mxu0 0
  %1841 = vmatpush1.bf16.msra.mxu0 0
  %1842 = vmatprep.subr.bf16.mxu0 0
  %1843 = vmatpush1.bf16.msra.mxu0 0
  %1844 = vmatprep.subr.bf16.mxu0 0
  %1845 = vmatpush1.bf16.msra.mxu0 0
  %1846 = vmatprep.subr.bf16.mxu0 0
  %1847 = vmatpush1.bf16.msra.mxu0 0
  %1848 = vmatprep.subr.bf16.mxu0 0
  %1849 = vmatpush1.bf16.msra.mxu0 0
  %1850 = vmatprep.subr.bf16.mxu0 0
  %1851 = vmatpush1.bf16.msra.mxu0 0
  %1852 = vmatprep.mubr.bf16.mxu0 0
  %1853 = vmatmul.mubr.bf16.gmra.mrb[0].mxu0 %v1644
  %v1854 = vpop.f32.mrb[0].mxu0
  %v1855 = vadd.f32 0.0, %v1854
  %v1856 = vpop.f32.mrb[0].mxu0
  %v1857 = vadd.f32 0.0, %v1856
  %v1858 = vpop.f32.mrb[0].mxu0
  %v1859 = vpop.f32.mrb[0].mxu0
  %1860 = vdwg.mxu0
  %1861 = vmatprep.subr.bf16.mxu0 %v1674
  %1862 = vmatpush1.bf16.msra.mxu0 %v1671
  %1863 = vmatprep.subr.bf16.mxu0 0
  %1864 = vmatpush1.bf16.msra.mxu0 0
  %1865 = vmatprep.subr.bf16.mxu0 0
  %1866 = vmatpush1.bf16.msra.mxu0 0
  %1867 = vmatprep.subr.bf16.mxu0 0
  %1868 = vmatpush1.bf16.msra.mxu0 0
  %1869 = vmatprep.subr.bf16.mxu0 0
  %1870 = vmatpush1.bf16.msra.mxu0 0
  %1871 = vmatprep.subr.bf16.mxu0 0
  %1872 = vmatpush1.bf16.msra.mxu0 0
  %1873 = vmatprep.subr.bf16.mxu0 0
  %1874 = vmatpush1.bf16.msra.mxu0 0
  %1875 = vmatprep.subr.bf16.mxu0 0
  %1876 = vmatpush1.bf16.msra.mxu0 0
  %1877 = vmatprep.subr.bf16.mxu0 0
  %1878 = vmatpush1.bf16.msra.mxu0 0
  %1879 = vmatprep.subr.bf16.mxu0 0
  %1880 = vmatpush1.bf16.msra.mxu0 0
  %1881 = vmatprep.subr.bf16.mxu0 0
  %1882 = vmatpush1.bf16.msra.mxu0 0
  %1883 = vmatprep.subr.bf16.mxu0 0
  %1884 = vmatpush1.bf16.msra.mxu0 0
  %1885 = vmatprep.subr.bf16.mxu0 0
  %1886 = vmatpush1.bf16.msra.mxu0 0
  %1887 = vmatprep.subr.bf16.mxu0 0
  %1888 = vmatpush1.bf16.msra.mxu0 0
  %1889 = vmatprep.subr.bf16.mxu0 0
  %1890 = vmatpush1.bf16.msra.mxu0 0
  %1891 = vmatprep.subr.bf16.mxu0 0
  %1892 = vmatpush1.bf16.msra.mxu0 0
  %1893 = vmatprep.mubr.bf16.mxu0 0
  %1894 = vmatmul.mubr.bf16.gmra.mrb[0].mxu0 %v1644
  %v1895 = vpop.f32.mrb[0].mxu0
  %v1896 = vadd.f32 0.0, %v1895
  %v1897 = vpop.f32.mrb[0].mxu0
  %v1898 = vadd.f32 0.0, %v1897
  %v1899 = vpop.f32.mrb[0].mxu0
  %v1900 = vpop.f32.mrb[0].mxu0
  %1901 = vdwg.mxu0
  %1902 = vmatprep.subr.bf16.mxu0 %v1680
  %1903 = vmatpush1.bf16.msra.mxu0 %v1677
  %1904 = vmatprep.subr.bf16.mxu0 0
  %1905 = vmatpush1.bf16.msra.mxu0 0
  %1906 = vmatprep.subr.bf16.mxu0 0
  %1907 = vmatpush1.bf16.msra.mxu0 0
  %1908 = vmatprep.subr.bf16.mxu0 0
  %1909 = vmatpush1.bf16.msra.mxu0 0
  %1910 = vmatprep.subr.bf16.mxu0 0
  %1911 = vmatpush1.bf16.msra.mxu0 0
  %1912 = vmatprep.subr.bf16.mxu0 0
  %1913 = vmatpush1.bf16.msra.mxu0 0
  %1914 = vmatprep.subr.bf16.mxu0 0
  %1915 = vmatpush1.bf16.msra.mxu0 0
  %1916 = vmatprep.subr.bf16.mxu0 0
  %1917 = vmatpush1.bf16.msra.mxu0 0
  %1918 = vmatprep.subr.bf16.mxu0 0
  %1919 = vmatpush1.bf16.msra.mxu0 0
  %1920 = vmatprep.subr.bf16.mxu0 0
  %1921 = vmatpush1.bf16.msra.mxu0 0
  %1922 = vmatprep.subr.bf16.mxu0 0
  %1923 = vmatpush1.bf16.msra.mxu0 0
  %1924 = vmatprep.subr.bf16.mxu0 0
  %1925 = vmatpush1.bf16.msra.mxu0 0
  %1926 = vmatprep.subr.bf16.mxu0 0
  %1927 = vmatpush1.bf16.msra.mxu0 0
  %1928 = vmatprep.subr.bf16.mxu0 0
  %1929 = vmatpush1.bf16.msra.mxu0 0
  %1930 = vmatprep.subr.bf16.mxu0 0
  %1931 = vmatpush1.bf16.msra.mxu0 0
  %1932 = vmatprep.subr.bf16.mxu0 0
  %1933 = vmatpush1.bf16.msra.mxu0 0
  %1934 = vmatprep.mubr.bf16.mxu0 0
  %1935 = vmatmul.mubr.bf16.gmra.mrb[0].mxu0 %v1644
  %v1936 = vpop.f32.mrb[0].mxu0
  %v1937 = vadd.f32 0.0, %v1936
  %v1938 = vpop.f32.mrb[0].mxu0
  %v1939 = vadd.f32 0.0, %v1938
  %v1940 = vpop.f32.mrb[0].mxu0
  %v1941 = vpop.f32.mrb[0].mxu0
  %1942 = vdwg.mxu0
  %1943 = vmatprep.subr.bf16.mxu0 %v1686
  %1944 = vmatpush1.bf16.msra.mxu0 %v1683
  %1945 = vmatprep.subr.bf16.mxu0 0
  %1946 = vmatpush1.bf16.msra.mxu0 0
  %1947 = vmatprep.subr.bf16.mxu0 0
  %1948 = vmatpush1.bf16.msra.mxu0 0
  %1949 = vmatprep.subr.bf16.mxu0 0
  %1950 = vmatpush1.bf16.msra.mxu0 0
  %1951 = vmatprep.subr.bf16.mxu0 0
  %1952 = vmatpush1.bf16.msra.mxu0 0
  %1953 = vmatprep.subr.bf16.mxu0 0
  %1954 = vmatpush1.bf16.msra.mxu0 0
  %1955 = vmatprep.subr.bf16.mxu0 0
  %1956 = vmatpush1.bf16.msra.mxu0 0
  %1957 = vmatprep.subr.bf16.mxu0 0
  %1958 = vmatpush1.bf16.msra.mxu0 0
  %1959 = vmatprep.subr.bf16.mxu0 0
  %1960 = vmatpush1.bf16.msra.mxu0 0
  %1961 = vmatprep.subr.bf16.mxu0 0
  %1962 = vmatpush1.bf16.msra.mxu0 0
  %1963 = vmatprep.subr.bf16.mxu0 0
  %1964 = vmatpush1.bf16.msra.mxu0 0
  %1965 = vmatprep.subr.bf16.mxu0 0
  %1966 = vmatpush1.bf16.msra.mxu0 0
  %1967 = vmatprep.subr.bf16.mxu0 0
  %1968 = vmatpush1.bf16.msra.mxu0 0
  %1969 = vmatprep.subr.bf16.mxu0 0
  %1970 = vmatpush1.bf16.msra.mxu0 0
  %1971 = vmatprep.subr.bf16.mxu0 0
  %1972 = vmatpush1.bf16.msra.mxu0 0
  %1973 = vmatprep.subr.bf16.mxu0 0
  %1974 = vmatpush1.bf16.msra.mxu0 0
  %1975 = vmatprep.mubr.bf16.mxu0 0
  %1976 = vmatmul.mubr.bf16.gmra.mrb[0].mxu0 %v1644
  %v1977 = vpop.f32.mrb[0].mxu0
  %v1978 = vadd.f32 0.0, %v1977
  %v1979 = vpop.f32.mrb[0].mxu0
  %v1980 = vadd.f32 0.0, %v1979
  %v1981 = vpop.f32.mrb[0].mxu0
  %v1982 = vpop.f32.mrb[0].mxu0
  %1983 = vdwg.mxu0
  %1984 = vmatprep.subr.bf16.mxu0 %v1692
  %1985 = vmatpush1.bf16.msra.mxu0 %v1689
  %1986 = vmatprep.subr.bf16.mxu0 0
  %1987 = vmatpush1.bf16.msra.mxu0 0
  %1988 = vmatprep.subr.bf16.mxu0 0
  %1989 = vmatpush1.bf16.msra.mxu0 0
  %1990 = vmatprep.subr.bf16.mxu0 0
  %1991 = vmatpush1.bf16.msra.mxu0 0
  %1992 = vmatprep.subr.bf16.mxu0 0
  %1993 = vmatpush1.bf16.msra.mxu0 0
  %1994 = vmatprep.subr.bf16.mxu0 0
  %1995 = vmatpush1.bf16.msra.mxu0 0
  %1996 = vmatprep.subr.bf16.mxu0 0
  %1997 = vmatpush1.bf16.msra.mxu0 0
  %1998 = vmatprep.subr.bf16.mxu0 0
  %1999 = vmatpush1.bf16.msra.mxu0 0
  %2000 = vmatprep.subr.bf16.mxu0 0
  %2001 = vmatpush1.bf16.msra.mxu0 0
  %2002 = vmatprep.subr.bf16.mxu0 0
  %2003 = vmatpush1.bf16.msra.mxu0 0
  %2004 = vmatprep.subr.bf16.mxu0 0
  %2005 = vmatpush1.bf16.msra.mxu0 0
  %2006 = vmatprep.subr.bf16.mxu0 0
  %2007 = vmatpush1.bf16.msra.mxu0 0
  %2008 = vmatprep.subr.bf16.mxu0 0
  %2009 = vmatpush1.bf16.msra.mxu0 0
  %2010 = vmatprep.subr.bf16.mxu0 0
  %2011 = vmatpush1.bf16.msra.mxu0 0
  %2012 = vmatprep.subr.bf16.mxu0 0
  %2013 = vmatpush1.bf16.msra.mxu0 0
  %2014 = vmatprep.subr.bf16.mxu0 0
  %2015 = vmatpush1.bf16.msra.mxu0 0
  %2016 = vmatprep.mubr.bf16.mxu0 0
  %2017 = vmatmul.mubr.bf16.gmra.mrb[0].mxu0 %v1644
  %v2018 = vpop.f32.mrb[0].mxu0
  %v2019 = vadd.f32 0.0, %v2018
  %v2020 = vpop.f32.mrb[0].mxu0
  %v2021 = vadd.f32 0.0, %v2020
  %v2022 = vpop.f32.mrb[0].mxu0
  %v2023 = vpop.f32.mrb[0].mxu0
  %2024 = vdwg.mxu0
  %2025 = vmatprep.subr.bf16.mxu0 0
  %2026 = vmatpush1.bf16.msra.mxu0 %v1695
  %2027 = vmatprep.subr.bf16.mxu0 0
  %2028 = vmatpush1.bf16.msra.mxu0 0
  %2029 = vmatprep.subr.bf16.mxu0 0
  %2030 = vmatpush1.bf16.msra.mxu0 0
  %2031 = vmatprep.subr.bf16.mxu0 0
  %2032 = vmatpush1.bf16.msra.mxu0 0
  %2033 = vmatprep.subr.bf16.mxu0 0
  %2034 = vmatpush1.bf16.msra.mxu0 0
  %2035 = vmatprep.subr.bf16.mxu0 0
  %2036 = vmatpush1.bf16.msra.mxu0 0
  %2037 = vmatprep.subr.bf16.mxu0 0
  %2038 = vmatpush1.bf16.msra.mxu0 0
  %2039 = vmatprep.subr.bf16.mxu0 0
  %2040 = vmatpush1.bf16.msra.mxu0 0
  %2041 = vmatprep.subr.bf16.mxu0 0
  %2042 = vmatpush1.bf16.msra.mxu0 0
  %2043 = vmatprep.subr.bf16.mxu0 0
  %2044 = vmatpush1.bf16.msra.mxu0 0
  %2045 = vmatprep.subr.bf16.mxu0 0
  %2046 = vmatpush1.bf16.msra.mxu0 0
  %2047 = vmatprep.subr.bf16.mxu0 0
  %2048 = vmatpush1.bf16.msra.mxu0 0
  %2049 = vmatprep.subr.bf16.mxu0 0
  %2050 = vmatpush1.bf16.msra.mxu0 0
  %2051 = vmatprep.subr.bf16.mxu0 0
  %2052 = vmatpush1.bf16.msra.mxu0 0
  %2053 = vmatprep.subr.bf16.mxu0 0
  %2054 = vmatpush1.bf16.msra.mxu0 0
  %2055 = vmatprep.subr.bf16.mxu0 0
  %2056 = vmatpush1.bf16.msra.mxu0 0
  %2057 = vmatprep.mubr.bf16.mxu0 0
  %2058 = vmatmul.mubr.bf16.gmra.mrb[0].mxu0 %v1644
  %v2059 = vpop.f32.mrb[0].mxu0
  %v2060 = vadd.f32 0.0, %v2059
  %v2061 = vpop.f32.mrb[0].mxu0
  %v2062 = vpop.f32.mrb[0].mxu0
  %v2063 = vpop.f32.mrb[0].mxu0
  %2064 = vdwg.mxu0
  %v2065 = vadd.f32 %v1570, %v1732
  %v2066 = vadd.f32 %v1571, %v1734
  %v2067 = vadd.f32 %v1572, %v1773
  %v2068 = vadd.f32 %v1573, %v1775
  %v2069 = vadd.f32 %v1574, %v1814
  %v2070 = vadd.f32 %v1575, %v1816
  %v2071 = vadd.f32 %v1576, %v1855
  %v2072 = vadd.f32 %v1577, %v1857
  %v2073 = vadd.f32 %v1578, %v1896
  %v2074 = vadd.f32 %v1579, %v1898
  %v2075 = vadd.f32 %v1580, %v1937
  %v2076 = vadd.f32 %v1581, %v1939
  %v2077 = vadd.f32 %v1582, %v1978
  %v2078 = vadd.f32 %v1583, %v1980
  %v2079 = vadd.f32 %v1584, %v2019
  %v2080 = vadd.f32 %v1585, %v2021
  %v2081 = vadd.f32 %v1586, %v2060
  %v2082 = vld [vmem:[%s2] sm:$0xff]
  %2084 = vset.pattern.permute.xlu0 0
  %2085 = vperm.xlu0 %2084, %v2082
  %v2086 = vpop.permute.xlu0 %2085
  %v2088 = vadd.f32 %v2065, %v2086
  %v2089 = vadd.f32 %v2066, %v2086
  %v2090 = vadd.f32 %v2067, %v2086
  %v2091 = vadd.f32 %v2068, %v2086
  %v2092 = vadd.f32 %v2069, %v2086
  %v2093 = vadd.f32 %v2070, %v2086
  %v2094 = vadd.f32 %v2071, %v2086
  %v2095 = vadd.f32 %v2072, %v2086
  %v2096 = vadd.f32 %v2073, %v2086
  %v2097 = vadd.f32 %v2074, %v2086
  %v2098 = vadd.f32 %v2075, %v2086
  %v2099 = vadd.f32 %v2076, %v2086
  %v2100 = vadd.f32 %v2077, %v2086
  %v2101 = vadd.f32 %v2078, %v2086
  %v2102 = vadd.f32 %v2079, %v2086
  %v2103 = vadd.f32 %v2080, %v2086
  %v2104 = vadd.f32 %v2081, %v2086
  %vm2105 = vcmp.gt.f32.partialorder %v2088, 0.0
  %vm2106 = vcmp.gt.f32.partialorder %v2089, 0.0
  %vm2107 = vcmp.gt.f32.partialorder %v2090, 0.0
  %vm2108 = vcmp.gt.f32.partialorder %v2091, 0.0
  %vm2109 = vcmp.gt.f32.partialorder %v2092, 0.0
  %vm2110 = vcmp.gt.f32.partialorder %v2093, 0.0
  %vm2111 = vcmp.gt.f32.partialorder %v2094, 0.0
  %vm2112 = vcmp.gt.f32.partialorder %v2095, 0.0
  %vm2113 = vcmp.gt.f32.partialorder %v2096, 0.0
  %vm2114 = vcmp.gt.f32.partialorder %v2097, 0.0
  %vm2115 = vcmp.gt.f32.partialorder %v2098, 0.0
  %vm2116 = vcmp.gt.f32.partialorder %v2099, 0.0
  %vm2117 = vcmp.gt.f32.partialorder %v2100, 0.0
  %vm2118 = vcmp.gt.f32.partialorder %v2101, 0.0
  %vm2119 = vcmp.gt.f32.partialorder %v2102, 0.0
  %vm2120 = vcmp.gt.f32.partialorder %v2103, 0.0
  %vm2121 = vcmp.gt.f32.partialorder %v2104, 0.0
  %v2122 = vmul.f32 %v2088, 0.2
  %v2123 = vmul.f32 %v2089, 0.2
  %v2124 = vmul.f32 %v2090, 0.2
  %v2125 = vmul.f32 %v2091, 0.2
  %v2126 = vmul.f32 %v2092, 0.2
  %v2127 = vmul.f32 %v2093, 0.2
  %v2128 = vmul.f32 %v2094, 0.2
  %v2129 = vmul.f32 %v2095, 0.2
  %v2130 = vmul.f32 %v2096, 0.2
  %v2131 = vmul.f32 %v2097, 0.2
  %v2132 = vmul.f32 %v2098, 0.2
  %v2133 = vmul.f32 %v2099, 0.2
  %v2134 = vmul.f32 %v2100, 0.2
  %v2135 = vmul.f32 %v2101, 0.2
  %v2136 = vmul.f32 %v2102, 0.2
  %v2137 = vmul.f32 %v2103, 0.2
  %v2138 = vmul.f32 %v2104, 0.2
  %v2139 = vsel %vm2105, %v2088, %v2122
  %v2140 = vsel %vm2106, %v2089, %v2123
  %v2141 = vsel %vm2107, %v2090, %v2124
  %v2142 = vsel %vm2108, %v2091, %v2125
  %v2143 = vsel %vm2109, %v2092, %v2126
  %v2144 = vsel %vm2110, %v2093, %v2127
  %v2145 = vsel %vm2111, %v2094, %v2128
  %v2146 = vsel %vm2112, %v2095, %v2129
  %v2147 = vsel %vm2113, %v2096, %v2130
  %v2148 = vsel %vm2114, %v2097, %v2131
  %v2149 = vsel %vm2115, %v2098, %v2132
  %v2150 = vsel %vm2116, %v2099, %v2133
  %v2151 = vsel %vm2117, %v2100, %v2134
  %v2152 = vsel %vm2118, %v2101, %v2135
  %v2153 = vsel %vm2119, %v2102, %v2136
  %v2154 = vsel %vm2120, %v2103, %v2137
  %v2155 = vsel %vm2121, %v2104, %v2138
  %v2156 = vpack.c.bf16 %v2139, %v2139
  %v2157 = vpack.c.bf16 %v2140, %v2140
  %v2158 = vpack.c.bf16 %v2141, %v2141
  %v2159 = vpack.c.bf16 %v2142, %v2142
  %v2160 = vpack.c.bf16 %v2143, %v2143
  %v2161 = vpack.c.bf16 %v2144, %v2144
  %v2162 = vpack.c.bf16 %v2145, %v2145
  %v2163 = vpack.c.bf16 %v2146, %v2146
  %v2164 = vpack.c.bf16 %v2147, %v2147
  %v2165 = vpack.c.bf16 %v2148, %v2148
  %v2166 = vpack.c.bf16 %v2149, %v2149
  %v2167 = vpack.c.bf16 %v2150, %v2150
  %v2168 = vpack.c.bf16 %v2151, %v2151
  %v2169 = vpack.c.bf16 %v2152, %v2152
  %v2170 = vpack.c.bf16 %v2153, %v2153
  %v2171 = vpack.c.bf16 %v2154, %v2154
  %v2172 = vpack.c.bf16 %v2155, %v2155
  %v2190 = vunpack.c.l.b16 %v2156
  %v2191 = vunpack.c.l.b16 %v2157
  %v2192 = vunpack.c.l.b16 %v2158
  %v2193 = vunpack.c.l.b16 %v2159
  %v2194 = vunpack.c.l.b16 %v2160
  %v2195 = vunpack.c.l.b16 %v2161
  %v2196 = vunpack.c.l.b16 %v2162
  %v2197 = vunpack.c.l.b16 %v2163
  %v2198 = vunpack.c.l.b16 %v2164
  %v2199 = vunpack.c.l.b16 %v2165
  %v2200 = vunpack.c.l.b16 %v2166
  %v2201 = vunpack.c.l.b16 %v2167
  %v2202 = vunpack.c.l.b16 %v2168
  %v2203 = vunpack.c.l.b16 %v2169
  %v2204 = vunpack.c.l.b16 %v2170
  %v2205 = vunpack.c.l.b16 %v2171
  %v2206 = vunpack.c.l.b16 %v2172
  %v2207 = vpack.c.b16 %v2191, %v2190
  %v2208 = vpack.c.b16 %v2193, %v2192
  %v2209 = vpack.c.b16 %v2195, %v2194
  %v2210 = vpack.c.b16 %v2197, %v2196
  %v2211 = vpack.c.b16 %v2199, %v2198
  %v2212 = vpack.c.b16 %v2201, %v2200
  %v2213 = vpack.c.b16 %v2203, %v2202
  %v2214 = vpack.c.b16 %v2205, %v2204
  %v2215 = vpack.c.b16 %v2206, %v2206
  %2225 = vst [vmem:[%s3] sm:$0xff] %v2207
  %2226 = vst [vmem:[%s3 + $0x8] sm:$0xff] %v2208
  %2227 = vst [vmem:[%s3 + $0x10] sm:$0xff] %v2209
  %2228 = vst [vmem:[%s3 + $0x18] sm:$0xff] %v2210
  %2229 = vst [vmem:[%s3 + $0x20] sm:$0xff] %v2211
  %2230 = vst [vmem:[%s3 + $0x28] sm:$0xff] %v2212
  %2231 = vst [vmem:[%s3 + $0x30] sm:$0xff] %v2213
  %2232 = vst [vmem:[%s3 + $0x38] sm:$0xff] %v2214
  %vm2233 = vcmask 781312
  %2234 = vst.msk [vmem:[%s3 + $0x40] sm:$0xf] %vm2233, %v2215
  // Predicated region
  $region14: #{discriminator_forward.4} parent=0 // pred_check
    _
  $region15: #{discriminator_forward.4} parent=0 // pred_check_branch
    %2236 = sbr.rel (0) target = $region17
  $region16: #{discriminator_forward.4} parent=0 // pred_region
    _
  $region17: #{discriminator_forward.4} parent=0 // pred_fallthru
    _
  // Predicated region
  $region18: #{discriminator_forward.4} parent=0 // pred_check
    _
  $region19: #{discriminator_forward.4} parent=0 // pred_check_branch
    %2238 = sbr.rel (0) target = $region21
  $region20: #{discriminator_forward.4} parent=0 // pred_region
    _
  $region21: #{discriminator_forward.4} parent=0 // pred_fallthru
    _

// kernel: discriminator_forward.5
$region0: #{discriminator_forward.5}
  #allocation0 [shape = 'u32[]', space=smem, size = 0x4, offset = 0x4, fixed_abs, tag = 'smem constant byte address 0x4 - core index']
  #allocation1 [shape = 'u32[144,128]{1,0:T(1,128)}', space=vmem, size = 0x12000, scoped, tag = 'internal scratch']
  %s0 = inlined_call_operand.vmem [shape: bf16[4,16,32], index: 0, kind: input, shape index: {}]
  %s1 = inlined_call_operand.vmem [shape: bf16[32,578], index: 1, kind: input, shape index: {}]
  %s2 = inlined_call_operand.vmem [shape: f32[1,560], index: 2, kind: input, shape index: {}]
  %s3 = inlined_call_operand.vmem [shape: f32[16,1], index: 3, kind: input, shape index: {}]
  %s4 = inlined_call_operand.vmem [shape: f32[16,1], index: 4, kind: input, shape index: {}]
  %s5 = inlined_call_operand.vmem [shape: bf16[16,560], index: 5, kind: output, shape index: {}]
  %s6 = sld [smem:[#allocation0]]
  $region30: #{discriminator_forward.5} parent=0
    _
  %s8 = ssub.s32 1, %s6
  %s9 = scalar_select 0, %s8, %s6
  // Predicated region
  $region2: #{discriminator_forward.5} parent=0 // pred_check
    _
  $region3: #{discriminator_forward.5} parent=0 // pred_check_branch
    %11 = sbr.rel (0) target = $region5
  $region4: #{discriminator_forward.5} parent=0 // pred_region
    _
  $region5: #{discriminator_forward.5} parent=0 // pred_fallthru
    _
  // Predicated region
  $region6: #{discriminator_forward.5} parent=0 // pred_check
    _
  $region7: #{discriminator_forward.5} parent=0 // pred_check_branch
    %13 = sbr.rel (0) target = $region9
  $region8: #{discriminator_forward.5} parent=0 // pred_region
    _
  $region9: #{discriminator_forward.5} parent=0 // pred_fallthru
    _
  // Predicated region
  $region10: #{discriminator_forward.5} parent=0 // pred_check
    _
  $region11: #{discriminator_forward.5} parent=0 // pred_check_branch
    %15 = sbr.rel (0) target = $region13
  $region12: #{discriminator_forward.5} parent=0 // pred_region
    _
  $region13: #{discriminator_forward.5} parent=0 // pred_fallthru
    _
  // Predicated region
  $region14: #{discriminator_forward.5} parent=0 // pred_check
    _
  $region15: #{discriminator_forward.5} parent=0 // pred_check_branch
    %17 = sbr.rel (0) target = $region17
  $region16: #{discriminator_forward.5} parent=0 // pred_region
    _
  $region17: #{discriminator_forward.5} parent=0 // pred_fallthru
    _
  // Predicated region
  $region18: #{discriminator_forward.5} parent=0 // pred_check
    _
  $region19: #{discriminator_forward.5} parent=0 // pred_check_branch
    %19 = sbr.rel (0) target = $region21
  $region20: #{discriminator_forward.5} parent=0 // pred_region
    _
  $region21: #{discriminator_forward.5} parent=0 // pred_fallthru
    _
  %v21 = vld [vmem:[%s0] sm:$0xf]
  %v22 = vld [vmem:[%s0 + $0x4] sm:$0xf]
  %v23 = vld [vmem:[%s1] sm:$0xff]
  %v24 = vld [vmem:[%s1 + $0x8] sm:$0xff]
  %v25 = vld [vmem:[%s1 + $0x10] sm:$0xf]
  %v26 = vld [vmem:[%s1 + $0x14] sm:$0xff]
  %v27 = vld [vmem:[%s1 + $0x1c] sm:$0xff]
  %v28 = vld [vmem:[%s1 + $0x24] sm:$0xf]
  %v29 = vld [vmem:[%s1 + $0x28] sm:$0xff]
  %v30 = vld [vmem:[%s1 + $0x30] sm:$0xff]
  %v31 = vld [vmem:[%s1 + $0x38] sm:$0xf]
  %v32 = vld [vmem:[%s1 + $0x3c] sm:$0xff]
  %v33 = vld [vmem:[%s1 + $0x44] sm:$0xff]
  %v34 = vld [vmem:[%s1 + $0x4c] sm:$0xf]
  %s35 = scalar_lea.vmem %s0, 8
  %v36 = vld [vmem:[%s35] sm:$0xf]
  %v37 = vld [vmem:[%s35 + $0x4] sm:$0xf]
  %v40 = vunpack.c.l.b16 %v36
  %v41 = vunpack.c.l.b16 %v37
  %v42 = vpack.c.b16 %v41, %v40
  %v55 = vunpack.c.l.b16 %v23
  %v56 = vunpack.c.h.b16 %v23
  %v57 = vunpack.c.l.b16 %v24
  %v58 = vunpack.c.h.b16 %v24
  %v59 = vunpack.c.l.b16 %v25
  %v60 = vunpack.c.l.b16 %v26
  %v61 = vunpack.c.h.b16 %v26
  %v62 = vunpack.c.l.b16 %v27
  %v63 = vunpack.c.h.b16 %v27
  %v64 = vunpack.c.l.b16 %v28
  %v65 = vunpack.c.l.b16 %v29
  %v66 = vunpack.c.h.b16 %v29
  %v67 = vunpack.c.l.b16 %v30
  %v68 = vunpack.c.h.b16 %v30
  %v69 = vunpack.c.l.b16 %v31
  %v70 = vunpack.c.l.b16 %v32
  %v71 = vunpack.c.h.b16 %v32
  %v72 = vunpack.c.l.b16 %v33
  %v73 = vunpack.c.h.b16 %v33
  %v74 = vunpack.c.l.b16 %v34
  %v75 = vpack.c.b16 %v60, %v55
  %v76 = vpack.c.b16 %v61, %v56
  %v77 = vpack.c.b16 %v62, %v57
  %v78 = vpack.c.b16 %v63, %v58
  %v79 = vpack.c.b16 %v64, %v59
  %v80 = vpack.c.b16 %v70, %v65
  %v81 = vpack.c.b16 %v71, %v66
  %v82 = vpack.c.b16 %v72, %v67
  %v83 = vpack.c.b16 %v73, %v68
  %v84 = vpack.c.b16 %v74, %v69
  %85 = vrot.lane.b32.xlu0 %v75, 127
  %v86 = vpop.permute.xlu0 %85
  %87 = vrot.lane.b32.xlu0 %v76, 127
  %v88 = vpop.permute.xlu0 %87
  %89 = vrot.lane.b32.xlu0 %v77, 127
  %v90 = vpop.permute.xlu0 %89
  %91 = vrot.lane.b32.xlu0 %v78, 127
  %v92 = vpop.permute.xlu0 %91
  %93 = vrot.lane.b32.xlu0 %v79, 127
  %v94 = vpop.permute.xlu0 %93
  %95 = vrot.lane.b32.xlu0 %v80, 127
  %v96 = vpop.permute.xlu0 %95
  %97 = vrot.lane.b32.xlu0 %v81, 127
  %v98 = vpop.permute.xlu0 %97
  %99 = vrot.lane.b32.xlu0 %v82, 127
  %v100 = vpop.permute.xlu0 %99
  %101 = vrot.lane.b32.xlu0 %v83, 127
  %v102 = vpop.permute.xlu0 %101
  %103 = vrot.lane.b32.xlu0 %v84, 127
  %v104 = vpop.permute.xlu0 %103
  %vm105 = vcmask 1039360
  %v106 = vsel %vm105, %v86, %v88
  %v107 = vsel %vm105, %v88, %v90
  %v108 = vsel %vm105, %v90, %v92
  %v109 = vsel %vm105, %v92, %v94
  %v110 = vsel %vm105, %v96, %v98
  %v111 = vsel %vm105, %v98, %v100
  %v112 = vsel %vm105, %v100, %v102
  %v113 = vsel %vm105, %v102, %v104
  %vm124 = vcmask 261120
  %v126 = vsel %vm124, %v42, 0
  %128 = vmatprep.subr.bf16.mxu0 %v107
  %129 = vmatpush1.bf16.msra.mxu0 %v106
  %130 = vmatprep.subr.bf16.mxu0 %v111
  %131 = vmatpush1.bf16.msra.mxu0 %v110
  %132 = vmatprep.subr.bf16.mxu0 0
  %133 = vmatpush1.bf16.msra.mxu0 0
  %134 = vmatprep.subr.bf16.mxu0 0
  %135 = vmatpush1.bf16.msra.mxu0 0
  %136 = vmatprep.subr.bf16.mxu0 0
  %137 = vmatpush1.bf16.msra.mxu0 0
  %138 = vmatprep.subr.bf16.mxu0 0
  %139 = vmatpush1.bf16.msra.mxu0 0
  %140 = vmatprep.subr.bf16.mxu0 0
  %141 = vmatpush1.bf16.msra.mxu0 0
  %142 = vmatprep.subr.bf16.mxu0 0
  %143 = vmatpush1.bf16.msra.mxu0 0
  %144 = vmatprep.subr.bf16.mxu0 0
  %145 = vmatpush1.bf16.msra.mxu0 0
  %146 = vmatprep.subr.bf16.mxu0 0
  %147 = vmatpush1.bf16.msra.mxu0 0
  %148 = vmatprep.subr.bf16.mxu0 0
  %149 = vmatpush1.bf16.msra.mxu0 0
  %150 = vmatprep.subr.bf16.mxu0 0
  %151 = vmatpush1.bf16.msra.mxu0 0
  %152 = vmatprep.subr.bf16.mxu0 0
  %153 = vmatpush1.bf16.msra.mxu0 0
  %154 = vmatprep.subr.bf16.mxu0 0
  %155 = vmatpush1.bf16.msra.mxu0 0
  %156 = vmatprep.subr.bf16.mxu0 0
  %157 = vmatpush1.bf16.msra.mxu0 0
  %158 = vmatprep.subr.bf16.mxu0 0
  %159 = vmatpush1.bf16.msra.mxu0 0
  %160 = vmatprep.mubr.bf16.mxu0 0
  %161 = vmatmul.mubr.bf16.gmra.mrb[0].mxu0 %v126
  %v162 = vpop.f32.mrb[0].mxu0
  %v163 = vadd.f32 0.0, %v162
  %v164 = vpop.f32.mrb[0].mxu0
  %v165 = vadd.f32 0.0, %v164
  %v166 = vpop.f32.mrb[0].mxu0
  %v167 = vadd.f32 0.0, %v166
  %v168 = vpop.f32.mrb[0].mxu0
  %v169 = vadd.f32 0.0, %v168
  %170 = vdwg.mxu0
  %171 = vmatprep.subr.bf16.mxu0 %v109
  %172 = vmatpush1.bf16.msra.mxu0 %v108
  %173 = vmatprep.subr.bf16.mxu0 %v113
  %174 = vmatpush1.bf16.msra.mxu0 %v112
  %175 = vmatprep.subr.bf16.mxu0 0
  %176 = vmatpush1.bf16.msra.mxu0 0
  %177 = vmatprep.subr.bf16.mxu0 0
  %178 = vmatpush1.bf16.msra.mxu0 0
  %179 = vmatprep.subr.bf16.mxu0 0
  %180 = vmatpush1.bf16.msra.mxu0 0
  %181 = vmatprep.subr.bf16.mxu0 0
  %182 = vmatpush1.bf16.msra.mxu0 0
  %183 = vmatprep.subr.bf16.mxu0 0
  %184 = vmatpush1.bf16.msra.mxu0 0
  %185 = vmatprep.subr.bf16.mxu0 0
  %186 = vmatpush1.bf16.msra.mxu0 0
  %187 = vmatprep.subr.bf16.mxu0 0
  %188 = vmatpush1.bf16.msra.mxu0 0
  %189 = vmatprep.subr.bf16.mxu0 0
  %190 = vmatpush1.bf16.msra.mxu0 0
  %191 = vmatprep.subr.bf16.mxu0 0
  %192 = vmatpush1.bf16.msra.mxu0 0
  %193 = vmatprep.subr.bf16.mxu0 0
  %194 = vmatpush1.bf16.msra.mxu0 0
  %195 = vmatprep.subr.bf16.mxu0 0
  %196 = vmatpush1.bf16.msra.mxu0 0
  %197 = vmatprep.subr.bf16.mxu0 0
  %198 = vmatpush1.bf16.msra.mxu0 0
  %199 = vmatprep.subr.bf16.mxu0 0
  %200 = vmatpush1.bf16.msra.mxu0 0
  %201 = vmatprep.subr.bf16.mxu0 0
  %202 = vmatpush1.bf16.msra.mxu0 0
  %203 = vmatprep.mubr.bf16.mxu0 0
  %204 = vmatmul.mubr.bf16.gmra.mrb[0].mxu0 %v126
  %v205 = vpop.f32.mrb[0].mxu0
  %v206 = vadd.f32 0.0, %v205
  %v207 = vpop.f32.mrb[0].mxu0
  %v208 = vadd.f32 0.0, %v207
  %v209 = vpop.f32.mrb[0].mxu0
  %v210 = vadd.f32 0.0, %v209
  %v211 = vpop.f32.mrb[0].mxu0
  %v212 = vadd.f32 0.0, %v211
  %213 = vdwg.mxu0
  %214 = vmatprep.subr.bf16.mxu0 0
  %215 = vmatpush1.bf16.msra.mxu0 %v94
  %216 = vmatprep.subr.bf16.mxu0 0
  %217 = vmatpush1.bf16.msra.mxu0 %v104
  %218 = vmatprep.subr.bf16.mxu0 0
  %219 = vmatpush1.bf16.msra.mxu0 0
  %220 = vmatprep.subr.bf16.mxu0 0
  %221 = vmatpush1.bf16.msra.mxu0 0
  %222 = vmatprep.subr.bf16.mxu0 0
  %223 = vmatpush1.bf16.msra.mxu0 0
  %224 = vmatprep.subr.bf16.mxu0 0
  %225 = vmatpush1.bf16.msra.mxu0 0
  %226 = vmatprep.subr.bf16.mxu0 0
  %227 = vmatpush1.bf16.msra.mxu0 0
  %228 = vmatprep.subr.bf16.mxu0 0
  %229 = vmatpush1.bf16.msra.mxu0 0
  %230 = vmatprep.subr.bf16.mxu0 0
  %231 = vmatpush1.bf16.msra.mxu0 0
  %232 = vmatprep.subr.bf16.mxu0 0
  %233 = vmatpush1.bf16.msra.mxu0 0
  %234 = vmatprep.subr.bf16.mxu0 0
  %235 = vmatpush1.bf16.msra.mxu0 0
  %236 = vmatprep.subr.bf16.mxu0 0
  %237 = vmatpush1.bf16.msra.mxu0 0
  %238 = vmatprep.subr.bf16.mxu0 0
  %239 = vmatpush1.bf16.msra.mxu0 0
  %240 = vmatprep.subr.bf16.mxu0 0
  %241 = vmatpush1.bf16.msra.mxu0 0
  %242 = vmatprep.subr.bf16.mxu0 0
  %243 = vmatpush1.bf16.msra.mxu0 0
  %244 = vmatprep.subr.bf16.mxu0 0
  %245 = vmatpush1.bf16.msra.mxu0 0
  %246 = vmatprep.mubr.bf16.mxu0 0
  %247 = vmatmul.mubr.bf16.gmra.mrb[0].mxu0 %v126
  %v248 = vpop.f32.mrb[0].mxu0
  %v249 = vadd.f32 0.0, %v248
  %v250 = vpop.f32.mrb[0].mxu0
  %v251 = vpop.f32.mrb[0].mxu0
  %v252 = vadd.f32 0.0, %v251
  %v253 = vpop.f32.mrb[0].mxu0
  %254 = vdwg.mxu0
  %v257 = vunpack.c.l.b16 %v21
  %v258 = vunpack.c.l.b16 %v22
  %v259 = vpack.c.b16 %v258, %v257
  %v271 = vsel %vm124, %v259, 0
  %273 = vmatprep.subr.bf16.mxu0 %v76
  %274 = vmatpush1.bf16.msra.mxu0 %v75
  %275 = vmatprep.subr.bf16.mxu0 %v81
  %276 = vmatpush1.bf16.msra.mxu0 %v80
  %277 = vmatprep.subr.bf16.mxu0 0
  %278 = vmatpush1.bf16.msra.mxu0 0
  %279 = vmatprep.subr.bf16.mxu0 0
  %280 = vmatpush1.bf16.msra.mxu0 0
  %281 = vmatprep.subr.bf16.mxu0 0
  %282 = vmatpush1.bf16.msra.mxu0 0
  %283 = vmatprep.subr.bf16.mxu0 0
  %284 = vmatpush1.bf16.msra.mxu0 0
  %285 = vmatprep.subr.bf16.mxu0 0
  %286 = vmatpush1.bf16.msra.mxu0 0
  %287 = vmatprep.subr.bf16.mxu0 0
  %288 = vmatpush1.bf16.msra.mxu0 0
  %289 = vmatprep.subr.bf16.mxu0 0
  %290 = vmatpush1.bf16.msra.mxu0 0
  %291 = vmatprep.subr.bf16.mxu0 0
  %292 = vmatpush1.bf16.msra.mxu0 0
  %293 = vmatprep.subr.bf16.mxu0 0
  %294 = vmatpush1.bf16.msra.mxu0 0
  %295 = vmatprep.subr.bf16.mxu0 0
  %296 = vmatpush1.bf16.msra.mxu0 0
  %297 = vmatprep.subr.bf16.mxu0 0
  %298 = vmatpush1.bf16.msra.mxu0 0
  %299 = vmatprep.subr.bf16.mxu0 0
  %300 = vmatpush1.bf16.msra.mxu0 0
  %301 = vmatprep.subr.bf16.mxu0 0
  %302 = vmatpush1.bf16.msra.mxu0 0
  %303 = vmatprep.subr.bf16.mxu0 0
  %304 = vmatpush1.bf16.msra.mxu0 0
  %305 = vmatprep.mubr.bf16.mxu0 0
  %306 = vmatmul.mubr.bf16.gmra.mrb[0].mxu0 %v271
  %v307 = vpop.f32.mrb[0].mxu0
  %v308 = vadd.f32 %v163, %v307
  %v309 = vpop.f32.mrb[0].mxu0
  %v310 = vadd.f32 %v165, %v309
  %v311 = vpop.f32.mrb[0].mxu0
  %v312 = vadd.f32 %v167, %v311
  %v313 = vpop.f32.mrb[0].mxu0
  %v314 = vadd.f32 %v169, %v313
  %315 = vdwg.mxu0
  %316 = vmatprep.subr.bf16.mxu0 %v78
  %317 = vmatpush1.bf16.msra.mxu0 %v77
  %318 = vmatprep.subr.bf16.mxu0 %v83
  %319 = vmatpush1.bf16.msra.mxu0 %v82
  %320 = vmatprep.subr.bf16.mxu0 0
  %321 = vmatpush1.bf16.msra.mxu0 0
  %322 = vmatprep.subr.bf16.mxu0 0
  %323 = vmatpush1.bf16.msra.mxu0 0
  %324 = vmatprep.subr.bf16.mxu0 0
  %325 = vmatpush1.bf16.msra.mxu0 0
  %326 = vmatprep.subr.bf16.mxu0 0
  %327 = vmatpush1.bf16.msra.mxu0 0
  %328 = vmatprep.subr.bf16.mxu0 0
  %329 = vmatpush1.bf16.msra.mxu0 0
  %330 = vmatprep.subr.bf16.mxu0 0
  %331 = vmatpush1.bf16.msra.mxu0 0
  %332 = vmatprep.subr.bf16.mxu0 0
  %333 = vmatpush1.bf16.msra.mxu0 0
  %334 = vmatprep.subr.bf16.mxu0 0
  %335 = vmatpush1.bf16.msra.mxu0 0
  %336 = vmatprep.subr.bf16.mxu0 0
  %337 = vmatpush1.bf16.msra.mxu0 0
  %338 = vmatprep.subr.bf16.mxu0 0
  %339 = vmatpush1.bf16.msra.mxu0 0
  %340 = vmatprep.subr.bf16.mxu0 0
  %341 = vmatpush1.bf16.msra.mxu0 0
  %342 = vmatprep.subr.bf16.mxu0 0
  %343 = vmatpush1.bf16.msra.mxu0 0
  %344 = vmatprep.subr.bf16.mxu0 0
  %345 = vmatpush1.bf16.msra.mxu0 0
  %346 = vmatprep.subr.bf16.mxu0 0
  %347 = vmatpush1.bf16.msra.mxu0 0
  %348 = vmatprep.mubr.bf16.mxu0 0
  %349 = vmatmul.mubr.bf16.gmra.mrb[0].mxu0 %v271
  %v350 = vpop.f32.mrb[0].mxu0
  %v351 = vadd.f32 %v206, %v350
  %v352 = vpop.f32.mrb[0].mxu0
  %v353 = vadd.f32 %v208, %v352
  %v354 = vpop.f32.mrb[0].mxu0
  %v355 = vadd.f32 %v210, %v354
  %v356 = vpop.f32.mrb[0].mxu0
  %v357 = vadd.f32 %v212, %v356
  %358 = vdwg.mxu0
  %359 = vmatprep.subr.bf16.mxu0 0
  %360 = vmatpush1.bf16.msra.mxu0 %v79
  %361 = vmatprep.subr.bf16.mxu0 0
  %362 = vmatpush1.bf16.msra.mxu0 %v84
  %363 = vmatprep.subr.bf16.mxu0 0
  %364 = vmatpush1.bf16.msra.mxu0 0
  %365 = vmatprep.subr.bf16.mxu0 0
  %366 = vmatpush1.bf16.msra.mxu0 0
  %367 = vmatprep.subr.bf16.mxu0 0
  %368 = vmatpush1.bf16.msra.mxu0 0
  %369 = vmatprep.subr.bf16.mxu0 0
  %370 = vmatpush1.bf16.msra.mxu0 0
  %371 = vmatprep.subr.bf16.mxu0 0
  %372 = vmatpush1.bf16.msra.mxu0 0
  %373 = vmatprep.subr.bf16.mxu0 0
  %374 = vmatpush1.bf16.msra.mxu0 0
  %375 = vmatprep.subr.bf16.mxu0 0
  %376 = vmatpush1.bf16.msra.mxu0 0
  %377 = vmatprep.subr.bf16.mxu0 0
  %378 = vmatpush1.bf16.msra.mxu0 0
  %379 = vmatprep.subr.bf16.mxu0 0
  %380 = vmatpush1.bf16.msra.mxu0 0
  %381 = vmatprep.subr.bf16.mxu0 0
  %382 = vmatpush1.bf16.msra.mxu0 0
  %383 = vmatprep.subr.bf16.mxu0 0
  %384 = vmatpush1.bf16.msra.mxu0 0
  %385 = vmatprep.subr.bf16.mxu0 0
  %386 = vmatpush1.bf16.msra.mxu0 0
  %387 = vmatprep.subr.bf16.mxu0 0
  %388 = vmatpush1.bf16.msra.mxu0 0
  %389 = vmatprep.subr.bf16.mxu0 0
  %390 = vmatpush1.bf16.msra.mxu0 0
  %391 = vmatprep.mubr.bf16.mxu0 0
  %392 = vmatmul.mubr.bf16.gmra.mrb[0].mxu0 %v271
  %v393 = vpop.f32.mrb[0].mxu0
  %v394 = vadd.f32 %v249, %v393
  %v395 = vpop.f32.mrb[0].mxu0
  %v396 = vpop.f32.mrb[0].mxu0
  %v397 = vadd.f32 %v252, %v396
  %v398 = vpop.f32.mrb[0].mxu0
  %399 = vdwg.mxu0
  %s400 = scalar_lea.vmem %s0, 16
  %v401 = vld [vmem:[%s400] sm:$0xf]
  %v402 = vld [vmem:[%s400 + $0x4] sm:$0xf]
  %v405 = vunpack.c.l.b16 %v401
  %v406 = vunpack.c.l.b16 %v402
  %v407 = vpack.c.b16 %v406, %v405
  %408 = vrot.lane.b32.xlu0 %v75, 111
  %v409 = vpop.permute.xlu0 %408
  %410 = vrot.lane.b32.xlu0 %v76, 111
  %v411 = vpop.permute.xlu0 %410
  %412 = vrot.lane.b32.xlu0 %v77, 111
  %v413 = vpop.permute.xlu0 %412
  %414 = vrot.lane.b32.xlu0 %v78, 111
  %v415 = vpop.permute.xlu0 %414
  %416 = vrot.lane.b32.xlu0 %v79, 111
  %v417 = vpop.permute.xlu0 %416
  %418 = vrot.lane.b32.xlu0 %v80, 111
  %v419 = vpop.permute.xlu0 %418
  %420 = vrot.lane.b32.xlu0 %v81, 111
  %v421 = vpop.permute.xlu0 %420
  %422 = vrot.lane.b32.xlu0 %v82, 111
  %v423 = vpop.permute.xlu0 %422
  %424 = vrot.lane.b32.xlu0 %v83, 111
  %v425 = vpop.permute.xlu0 %424
  %426 = vrot.lane.b32.xlu0 %v84, 111
  %v427 = vpop.permute.xlu0 %426
  %vm428 = vcmask 908288
  %v429 = vsel %vm428, %v409, %v411
  %v430 = vsel %vm428, %v411, %v413
  %v431 = vsel %vm428, %v413, %v415
  %v432 = vsel %vm428, %v415, %v417
  %v433 = vsel %vm428, %v419, %v421
  %v434 = vsel %vm428, %v421, %v423
  %v435 = vsel %vm428, %v423, %v425
  %v436 = vsel %vm428, %v425, %v427
  %v448 = vsel %vm124, %v407, 0
  %450 = vmatprep.subr.bf16.mxu0 %v430
  %451 = vmatpush1.bf16.msra.mxu0 %v429
  %452 = vmatprep.subr.bf16.mxu0 %v434
  %453 = vmatpush1.bf16.msra.mxu0 %v433
  %454 = vmatprep.subr.bf16.mxu0 0
  %455 = vmatpush1.bf16.msra.mxu0 0
  %456 = vmatprep.subr.bf16.mxu0 0
  %457 = vmatpush1.bf16.msra.mxu0 0
  %458 = vmatprep.subr.bf16.mxu0 0
  %459 = vmatpush1.bf16.msra.mxu0 0
  %460 = vmatprep.subr.bf16.mxu0 0
  %461 = vmatpush1.bf16.msra.mxu0 0
  %462 = vmatprep.subr.bf16.mxu0 0
  %463 = vmatpush1.bf16.msra.mxu0 0
  %464 = vmatprep.subr.bf16.mxu0 0
  %465 = vmatpush1.bf16.msra.mxu0 0
  %466 = vmatprep.subr.bf16.mxu0 0
  %467 = vmatpush1.bf16.msra.mxu0 0
  %468 = vmatprep.subr.bf16.mxu0 0
  %469 = vmatpush1.bf16.msra.mxu0 0
  %470 = vmatprep.subr.bf16.mxu0 0
  %471 = vmatpush1.bf16.msra.mxu0 0
  %472 = vmatprep.subr.bf16.mxu0 0
  %473 = vmatpush1.bf16.msra.mxu0 0
  %474 = vmatprep.subr.bf16.mxu0 0
  %475 = vmatpush1.bf16.msra.mxu0 0
  %476 = vmatprep.subr.bf16.mxu0 0
  %477 = vmatpush1.bf16.msra.mxu0 0
  %478 = vmatprep.subr.bf16.mxu0 0
  %479 = vmatpush1.bf16.msra.mxu0 0
  %480 = vmatprep.subr.bf16.mxu0 0
  %481 = vmatpush1.bf16.msra.mxu0 0
  %482 = vmatprep.mubr.bf16.mxu0 0
  %483 = vmatmul.mubr.bf16.gmra.mrb[0].mxu0 %v448
  %v484 = vpop.f32.mrb[0].mxu0
  %v485 = vadd.f32 0.0, %v484
  %v486 = vpop.f32.mrb[0].mxu0
  %v487 = vadd.f32 0.0, %v486
  %v488 = vpop.f32.mrb[0].mxu0
  %v489 = vadd.f32 0.0, %v488
  %v490 = vpop.f32.mrb[0].mxu0
  %v491 = vadd.f32 0.0, %v490
  %492 = vdwg.mxu0
  %493 = vmatprep.subr.bf16.mxu0 %v432
  %494 = vmatpush1.bf16.msra.mxu0 %v431
  %495 = vmatprep.subr.bf16.mxu0 %v436
  %496 = vmatpush1.bf16.msra.mxu0 %v435
  %497 = vmatprep.subr.bf16.mxu0 0
  %498 = vmatpush1.bf16.msra.mxu0 0
  %499 = vmatprep.subr.bf16.mxu0 0
  %500 = vmatpush1.bf16.msra.mxu0 0
  %501 = vmatprep.subr.bf16.mxu0 0
  %502 = vmatpush1.bf16.msra.mxu0 0
  %503 = vmatprep.subr.bf16.mxu0 0
  %504 = vmatpush1.bf16.msra.mxu0 0
  %505 = vmatprep.subr.bf16.mxu0 0
  %506 = vmatpush1.bf16.msra.mxu0 0
  %507 = vmatprep.subr.bf16.mxu0 0
  %508 = vmatpush1.bf16.msra.mxu0 0
  %509 = vmatprep.subr.bf16.mxu0 0
  %510 = vmatpush1.bf16.msra.mxu0 0
  %511 = vmatprep.subr.bf16.mxu0 0
  %512 = vmatpush1.bf16.msra.mxu0 0
  %513 = vmatprep.subr.bf16.mxu0 0
  %514 = vmatpush1.bf16.msra.mxu0 0
  %515 = vmatprep.subr.bf16.mxu0 0
  %516 = vmatpush1.bf16.msra.mxu0 0
  %517 = vmatprep.subr.bf16.mxu0 0
  %518 = vmatpush1.bf16.msra.mxu0 0
  %519 = vmatprep.subr.bf16.mxu0 0
  %520 = vmatpush1.bf16.msra.mxu0 0
  %521 = vmatprep.subr.bf16.mxu0 0
  %522 = vmatpush1.bf16.msra.mxu0 0
  %523 = vmatprep.subr.bf16.mxu0 0
  %524 = vmatpush1.bf16.msra.mxu0 0
  %525 = vmatprep.mubr.bf16.mxu0 0
  %526 = vmatmul.mubr.bf16.gmra.mrb[0].mxu0 %v448
  %v527 = vpop.f32.mrb[0].mxu0
  %v528 = vadd.f32 0.0, %v527
  %v529 = vpop.f32.mrb[0].mxu0
  %v530 = vadd.f32 0.0, %v529
  %v531 = vpop.f32.mrb[0].mxu0
  %v532 = vadd.f32 0.0, %v531
  %v533 = vpop.f32.mrb[0].mxu0
  %v534 = vadd.f32 0.0, %v533
  %535 = vdwg.mxu0
  %536 = vmatprep.subr.bf16.mxu0 0
  %537 = vmatpush1.bf16.msra.mxu0 %v417
  %538 = vmatprep.subr.bf16.mxu0 0
  %539 = vmatpush1.bf16.msra.mxu0 %v427
  %540 = vmatprep.subr.bf16.mxu0 0
  %541 = vmatpush1.bf16.msra.mxu0 0
  %542 = vmatprep.subr.bf16.mxu0 0
  %543 = vmatpush1.bf16.msra.mxu0 0
  %544 = vmatprep.subr.bf16.mxu0 0
  %545 = vmatpush1.bf16.msra.mxu0 0
  %546 = vmatprep.subr.bf16.mxu0 0
  %547 = vmatpush1.bf16.msra.mxu0 0
  %548 = vmatprep.subr.bf16.mxu0 0
  %549 = vmatpush1.bf16.msra.mxu0 0
  %550 = vmatprep.subr.bf16.mxu0 0
  %551 = vmatpush1.bf16.msra.mxu0 0
  %552 = vmatprep.subr.bf16.mxu0 0
  %553 = vmatpush1.bf16.msra.mxu0 0
  %554 = vmatprep.subr.bf16.mxu0 0
  %555 = vmatpush1.bf16.msra.mxu0 0
  %556 = vmatprep.subr.bf16.mxu0 0
  %557 = vmatpush1.bf16.msra.mxu0 0
  %558 = vmatprep.subr.bf16.mxu0 0
  %559 = vmatpush1.bf16.msra.mxu0 0
  %560 = vmatprep.subr.bf16.mxu0 0
  %561 = vmatpush1.bf16.msra.mxu0 0
  %562 = vmatprep.subr.bf16.mxu0 0
  %563 = vmatpush1.bf16.msra.mxu0 0
  %564 = vmatprep.subr.bf16.mxu0 0
  %565 = vmatpush1.bf16.msra.mxu0 0
  %566 = vmatprep.subr.bf16.mxu0 0
  %567 = vmatpush1.bf16.msra.mxu0 0
  %568 = vmatprep.mubr.bf16.mxu0 0
  %569 = vmatmul.mubr.bf16.gmra.mrb[0].mxu0 %v448
  %v570 = vpop.f32.mrb[0].mxu0
  %v571 = vadd.f32 0.0, %v570
  %v572 = vpop.f32.mrb[0].mxu0
  %v573 = vpop.f32.mrb[0].mxu0
  %v574 = vadd.f32 0.0, %v573
  %v575 = vpop.f32.mrb[0].mxu0
  %576 = vdwg.mxu0
  %v577 = vadd.f32 %v308, %v485
  %v578 = vadd.f32 %v310, %v487
  %v579 = vadd.f32 %v351, %v528
  %v580 = vadd.f32 %v353, %v530
  %v581 = vadd.f32 %v394, %v571
  %v582 = vadd.f32 %v312, %v489
  %v583 = vadd.f32 %v314, %v491
  %v584 = vadd.f32 %v355, %v532
  %v585 = vadd.f32 %v357, %v534
  %v586 = vadd.f32 %v397, %v574
  %s587 = scalar_lea.vmem %s0, 24
  %v588 = vld [vmem:[%s587] sm:$0xf]
  %v589 = vld [vmem:[%s587 + $0x4] sm:$0xf]
  %v592 = vunpack.c.l.b16 %v588
  %v593 = vunpack.c.l.b16 %v589
  %v594 = vpack.c.b16 %v593, %v592
  %595 = vrot.lane.b32.xlu0 %v75, 110
  %v596 = vpop.permute.xlu0 %595
  %597 = vrot.lane.b32.xlu0 %v76, 110
  %v598 = vpop.permute.xlu0 %597
  %599 = vrot.lane.b32.xlu0 %v77, 110
  %v600 = vpop.permute.xlu0 %599
  %601 = vrot.lane.b32.xlu0 %v78, 110
  %v602 = vpop.permute.xlu0 %601
  %603 = vrot.lane.b32.xlu0 %v79, 110
  %v604 = vpop.permute.xlu0 %603
  %605 = vrot.lane.b32.xlu0 %v80, 110
  %v606 = vpop.permute.xlu0 %605
  %607 = vrot.lane.b32.xlu0 %v81, 110
  %v608 = vpop.permute.xlu0 %607
  %609 = vrot.lane.b32.xlu0 %v82, 110
  %v610 = vpop.permute.xlu0 %609
  %611 = vrot.lane.b32.xlu0 %v83, 110
  %v612 = vpop.permute.xlu0 %611
  %613 = vrot.lane.b32.xlu0 %v84, 110
  %v614 = vpop.permute.xlu0 %613
  %vm615 = vcmask 900096
  %v616 = vsel %vm615, %v596, %v598
  %v617 = vsel %vm615, %v598, %v600
  %v618 = vsel %vm615, %v600, %v602
  %v619 = vsel %vm615, %v602, %v604
  %v620 = vsel %vm615, %v606, %v608
  %v621 = vsel %vm615, %v608, %v610
  %v622 = vsel %vm615, %v610, %v612
  %v623 = vsel %vm615, %v612, %v614
  %v635 = vsel %vm124, %v594, 0
  %637 = vmatprep.subr.bf16.mxu0 %v617
  %638 = vmatpush1.bf16.msra.mxu0 %v616
  %639 = vmatprep.subr.bf16.mxu0 %v621
  %640 = vmatpush1.bf16.msra.mxu0 %v620
  %641 = vmatprep.subr.bf16.mxu0 0
  %642 = vmatpush1.bf16.msra.mxu0 0
  %643 = vmatprep.subr.bf16.mxu0 0
  %644 = vmatpush1.bf16.msra.mxu0 0
  %645 = vmatprep.subr.bf16.mxu0 0
  %646 = vmatpush1.bf16.msra.mxu0 0
  %647 = vmatprep.subr.bf16.mxu0 0
  %648 = vmatpush1.bf16.msra.mxu0 0
  %649 = vmatprep.subr.bf16.mxu0 0
  %650 = vmatpush1.bf16.msra.mxu0 0
  %651 = vmatprep.subr.bf16.mxu0 0
  %652 = vmatpush1.bf16.msra.mxu0 0
  %653 = vmatprep.subr.bf16.mxu0 0
  %654 = vmatpush1.bf16.msra.mxu0 0
  %655 = vmatprep.subr.bf16.mxu0 0
  %656 = vmatpush1.bf16.msra.mxu0 0
  %657 = vmatprep.subr.bf16.mxu0 0
  %658 = vmatpush1.bf16.msra.mxu0 0
  %659 = vmatprep.subr.bf16.mxu0 0
  %660 = vmatpush1.bf16.msra.mxu0 0
  %661 = vmatprep.subr.bf16.mxu0 0
  %662 = vmatpush1.bf16.msra.mxu0 0
  %663 = vmatprep.subr.bf16.mxu0 0
  %664 = vmatpush1.bf16.msra.mxu0 0
  %665 = vmatprep.subr.bf16.mxu0 0
  %666 = vmatpush1.bf16.msra.mxu0 0
  %667 = vmatprep.subr.bf16.mxu0 0
  %668 = vmatpush1.bf16.msra.mxu0 0
  %669 = vmatprep.mubr.bf16.mxu0 0
  %670 = vmatmul.mubr.bf16.gmra.mrb[0].mxu0 %v635
  %v671 = vpop.f32.mrb[0].mxu0
  %v672 = vadd.f32 0.0, %v671
  %v673 = vpop.f32.mrb[0].mxu0
  %v674 = vadd.f32 0.0, %v673
  %v675 = vpop.f32.mrb[0].mxu0
  %v676 = vadd.f32 0.0, %v675
  %v677 = vpop.f32.mrb[0].mxu0
  %v678 = vadd.f32 0.0, %v677
  %679 = vdwg.mxu0
  %680 = vmatprep.subr.bf16.mxu0 %v619
  %681 = vmatpush1.bf16.msra.mxu0 %v618
  %682 = vmatprep.subr.bf16.mxu0 %v623
  %683 = vmatpush1.bf16.msra.mxu0 %v622
  %684 = vmatprep.subr.bf16.mxu0 0
  %685 = vmatpush1.bf16.msra.mxu0 0
  %686 = vmatprep.subr.bf16.mxu0 0
  %687 = vmatpush1.bf16.msra.mxu0 0
  %688 = vmatprep.subr.bf16.mxu0 0
  %689 = vmatpush1.bf16.msra.mxu0 0
  %690 = vmatprep.subr.bf16.mxu0 0
  %691 = vmatpush1.bf16.msra.mxu0 0
  %692 = vmatprep.subr.bf16.mxu0 0
  %693 = vmatpush1.bf16.msra.mxu0 0
  %694 = vmatprep.subr.bf16.mxu0 0
  %695 = vmatpush1.bf16.msra.mxu0 0
  %696 = vmatprep.subr.bf16.mxu0 0
  %697 = vmatpush1.bf16.msra.mxu0 0
  %698 = vmatprep.subr.bf16.mxu0 0
  %699 = vmatpush1.bf16.msra.mxu0 0
  %700 = vmatprep.subr.bf16.mxu0 0
  %701 = vmatpush1.bf16.msra.mxu0 0
  %702 = vmatprep.subr.bf16.mxu0 0
  %703 = vmatpush1.bf16.msra.mxu0 0
  %704 = vmatprep.subr.bf16.mxu0 0
  %705 = vmatpush1.bf16.msra.mxu0 0
  %706 = vmatprep.subr.bf16.mxu0 0
  %707 = vmatpush1.bf16.msra.mxu0 0
  %708 = vmatprep.subr.bf16.mxu0 0
  %709 = vmatpush1.bf16.msra.mxu0 0
  %710 = vmatprep.subr.bf16.mxu0 0
  %711 = vmatpush1.bf16.msra.mxu0 0
  %712 = vmatprep.mubr.bf16.mxu0 0
  %713 = vmatmul.mubr.bf16.gmra.mrb[0].mxu0 %v635
  %v714 = vpop.f32.mrb[0].mxu0
  %v715 = vadd.f32 0.0, %v714
  %v716 = vpop.f32.mrb[0].mxu0
  %v717 = vadd.f32 0.0, %v716
  %v718 = vpop.f32.mrb[0].mxu0
  %v719 = vadd.f32 0.0, %v718
  %v720 = vpop.f32.mrb[0].mxu0
  %v721 = vadd.f32 0.0, %v720
  %722 = vdwg.mxu0
  %723 = vmatprep.subr.bf16.mxu0 0
  %724 = vmatpush1.bf16.msra.mxu0 %v604
  %725 = vmatprep.subr.bf16.mxu0 0
  %726 = vmatpush1.bf16.msra.mxu0 %v614
  %727 = vmatprep.subr.bf16.mxu0 0
  %728 = vmatpush1.bf16.msra.mxu0 0
  %729 = vmatprep.subr.bf16.mxu0 0
  %730 = vmatpush1.bf16.msra.mxu0 0
  %731 = vmatprep.subr.bf16.mxu0 0
  %732 = vmatpush1.bf16.msra.mxu0 0
  %733 = vmatprep.subr.bf16.mxu0 0
  %734 = vmatpush1.bf16.msra.mxu0 0
  %735 = vmatprep.subr.bf16.mxu0 0
  %736 = vmatpush1.bf16.msra.mxu0 0
  %737 = vmatprep.subr.bf16.mxu0 0
  %738 = vmatpush1.bf16.msra.mxu0 0
  %739 = vmatprep.subr.bf16.mxu0 0
  %740 = vmatpush1.bf16.msra.mxu0 0
  %741 = vmatprep.subr.bf16.mxu0 0
  %742 = vmatpush1.bf16.msra.mxu0 0
  %743 = vmatprep.subr.bf16.mxu0 0
  %744 = vmatpush1.bf16.msra.mxu0 0
  %745 = vmatprep.subr.bf16.mxu0 0
  %746 = vmatpush1.bf16.msra.mxu0 0
  %747 = vmatprep.subr.bf16.mxu0 0
  %748 = vmatpush1.bf16.msra.mxu0 0
  %749 = vmatprep.subr.bf16.mxu0 0
  %750 = vmatpush1.bf16.msra.mxu0 0
  %751 = vmatprep.subr.bf16.mxu0 0
  %752 = vmatpush1.bf16.msra.mxu0 0
  %753 = vmatprep.subr.bf16.mxu0 0
  %754 = vmatpush1.bf16.msra.mxu0 0
  %755 = vmatprep.mubr.bf16.mxu0 0
  %756 = vmatmul.mubr.bf16.gmra.mrb[0].mxu0 %v635
  %v757 = vpop.f32.mrb[0].mxu0
  %v758 = vadd.f32 0.0, %v757
  %v759 = vpop.f32.mrb[0].mxu0
  %v760 = vpop.f32.mrb[0].mxu0
  %v761 = vadd.f32 0.0, %v760
  %v762 = vpop.f32.mrb[0].mxu0
  %763 = vdwg.mxu0
  %v764 = vadd.f32 %v577, %v672
  %v765 = vadd.f32 %v578, %v674
  %v766 = vadd.f32 %v579, %v715
  %v767 = vadd.f32 %v580, %v717
  %v768 = vadd.f32 %v581, %v758
  %v769 = vadd.f32 %v582, %v676
  %v770 = vadd.f32 %v583, %v678
  %v771 = vadd.f32 %v584, %v719
  %v772 = vadd.f32 %v585, %v721
  %v773 = vadd.f32 %v586, %v761
  %v774 = vld [vmem:[%s2] sm:$0x1f]
  %v776 = vlaneseq
  %v777 = vshrl.u32 %v776, 7
  %v778 = vsub.s32 0, %v777
  %v779 = vrot.slane %v774, %v778
  %v780 = vlaneseq
  %v781 = vshrl.u32 %v780, 7
  %v782 = vsub.s32 1, %v781
  %v783 = vrot.slane %v774, %v782
  %v784 = vlaneseq
  %v785 = vshrl.u32 %v784, 7
  %v786 = vsub.s32 2, %v785
  %v787 = vrot.slane %v774, %v786
  %v788 = vlaneseq
  %v789 = vshrl.u32 %v788, 7
  %v790 = vsub.s32 3, %v789
  %v791 = vrot.slane %v774, %v790
  %v792 = vlaneseq
  %v793 = vshrl.u32 %v792, 7
  %v794 = vsub.s32 4, %v793
  %v795 = vrot.slane %v774, %v794
  %v801 = vmul.f32 %v764, %v779
  %v802 = vmul.f32 %v765, %v783
  %v803 = vmul.f32 %v766, %v787
  %v804 = vmul.f32 %v767, %v791
  %v805 = vmul.f32 %v768, %v795
  %v806 = vmul.f32 %v769, %v779
  %v807 = vmul.f32 %v770, %v783
  %v808 = vmul.f32 %v771, %v787
  %v809 = vmul.f32 %v772, %v791
  %v810 = vmul.f32 %v773, %v795
  %v811 = vadd.f32 %v801, %v802
  %v812 = vadd.f32 %v811, %v803
  %v813 = vadd.f32 %v812, %v804
  %vm814 = vcmask 392192
  %v815 = vsel %vm814, %v805, 0.0
  %v816 = vadd.f32 %v813, %v815
  %817 = vadd.xlane.f32.xlu0 %v816
  %v818 = vpop.xlane.xlu0 %817
  %v819 = vadd.f32 %v806, %v807
  %v820 = vadd.f32 %v819, %v808
  %v821 = vadd.f32 %v820, %v809
  %v822 = vsel %vm814, %v810, 0.0
  %v823 = vadd.f32 %v821, %v822
  %824 = vadd.xlane.f32.xlu0 %v823
  %v825 = vpop.xlane.xlu0 %824
  %v826 = vrcp.pop 512.0
  %v827 = vmul.f32 %v818, %v826
  %v828 = vmul.f32 %v825, %v826
  %v829 = vmul.f32 %v764, %v764
  %v830 = vmul.f32 %v765, %v765
  %v831 = vmul.f32 %v766, %v766
  %v832 = vmul.f32 %v767, %v767
  %v833 = vmul.f32 %v768, %v768
  %v834 = vmul.f32 %v769, %v769
  %v835 = vmul.f32 %v770, %v770
  %v836 = vmul.f32 %v771, %v771
  %v837 = vmul.f32 %v772, %v772
  %v838 = vmul.f32 %v773, %v773
  %v839 = vmul.f32 %v829, %v779
  %v840 = vmul.f32 %v830, %v783
  %v841 = vmul.f32 %v831, %v787
  %v842 = vmul.f32 %v832, %v791
  %v843 = vmul.f32 %v833, %v795
  %v844 = vmul.f32 %v834, %v779
  %v845 = vmul.f32 %v835, %v783
  %v846 = vmul.f32 %v836, %v787
  %v847 = vmul.f32 %v837, %v791
  %v848 = vmul.f32 %v838, %v795
  %v849 = vadd.f32 %v839, %v840
  %v850 = vadd.f32 %v849, %v841
  %v851 = vadd.f32 %v850, %v842
  %v852 = vsel %vm814, %v843, 0.0
  %v853 = vadd.f32 %v851, %v852
  %854 = vadd.xlane.f32.xlu0 %v853
  %v855 = vpop.xlane.xlu0 %854
  %v856 = vadd.f32 %v844, %v845
  %v857 = vadd.f32 %v856, %v846
  %v858 = vadd.f32 %v857, %v847
  %v859 = vsel %vm814, %v848, 0.0
  %v860 = vadd.f32 %v858, %v859
  %861 = vadd.xlane.f32.xlu0 %v860
  %v862 = vpop.xlane.xlu0 %861
  %v863 = vmul.f32 %v855, %v826
  %v864 = vmul.f32 %v862, %v826
  %v865 = vmul.f32 %v827, %v827
  %v866 = vmul.f32 %v828, %v828
  %v867 = vsub.f32 %v863, %v865
  %v868 = vsub.f32 %v864, %v866
  %v869 = vsub.f32 %v764, %v827
  %v870 = vsub.f32 %v765, %v827
  %v871 = vsub.f32 %v766, %v827
  %v872 = vsub.f32 %v767, %v827
  %v873 = vsub.f32 %v768, %v827
  %v874 = vsub.f32 %v769, %v828
  %v875 = vsub.f32 %v770, %v828
  %v876 = vsub.f32 %v771, %v828
  %v877 = vsub.f32 %v772, %v828
  %v878 = vsub.f32 %v773, %v828
  %v879 = vadd.f32 %v867, 1e-05
  %v880 = vadd.f32 %v868, 1e-05
  %v881 = vrsqrt.pop %v879
  %v882 = vrsqrt.pop %v880
  %v883 = vmul.f32 %v869, %v881
  %v884 = vmul.f32 %v870, %v881
  %v885 = vmul.f32 %v871, %v881
  %v886 = vmul.f32 %v872, %v881
  %v887 = vmul.f32 %v873, %v881
  %v888 = vmul.f32 %v874, %v882
  %v889 = vmul.f32 %v875, %v882
  %v890 = vmul.f32 %v876, %v882
  %v891 = vmul.f32 %v877, %v882
  %v892 = vmul.f32 %v878, %v882
  %v893 = vld [vmem:[%s3] sm:$0xff]
  %v894 = vld [vmem:[%s3 + $0x8] sm:$0xff]
  %896 = vset.pattern.permute.xlu0 0
  %897 = vperm.xlu0 %896, %v893
  %v898 = vpop.permute.xlu0 %897
  %901 = vset.pattern.permute.xlu0 0
  %902 = vperm.xlu0 %901, %v894
  %v903 = vpop.permute.xlu0 %902
  %v905 = vmul.f32 %v883, %v898
  %v906 = vmul.f32 %v884, %v898
  %v907 = vmul.f32 %v885, %v898
  %v908 = vmul.f32 %v886, %v898
  %v909 = vmul.f32 %v887, %v898
  %v910 = vmul.f32 %v888, %v903
  %v911 = vmul.f32 %v889, %v903
  %v912 = vmul.f32 %v890, %v903
  %v913 = vmul.f32 %v891, %v903
  %v914 = vmul.f32 %v892, %v903
  %v915 = vld [vmem:[%s4] sm:$0xff]
  %v916 = vld [vmem:[%s4 + $0x8] sm:$0xff]
  %918 = vset.pattern.permute.xlu0 0
  %919 = vperm.xlu0 %918, %v915
  %v920 = vpop.permute.xlu0 %919
  %923 = vset.pattern.permute.xlu0 0
  %924 = vperm.xlu0 %923, %v916
  %v925 = vpop.permute.xlu0 %924
  %v927 = vadd.f32 %v905, %v920
  %v928 = vadd.f32 %v906, %v920
  %v929 = vadd.f32 %v907, %v920
  %v930 = vadd.f32 %v908, %v920
  %v931 = vadd.f32 %v909, %v920
  %v932 = vadd.f32 %v910, %v925
  %v933 = vadd.f32 %v911, %v925
  %v934 = vadd.f32 %v912, %v925
  %v935 = vadd.f32 %v913, %v925
  %v936 = vadd.f32 %v914, %v925
  %vm937 = vcmp.gt.f32.partialorder %v927, 0.0
  %vm938 = vcmp.gt.f32.partialorder %v928, 0.0
  %vm939 = vcmp.gt.f32.partialorder %v929, 0.0
  %vm940 = vcmp.gt.f32.partialorder %v930, 0.0
  %vm941 = vcmp.gt.f32.partialorder %v931, 0.0
  %vm942 = vcmp.gt.f32.partialorder %v932, 0.0
  %vm943 = vcmp.gt.f32.partialorder %v933, 0.0
  %vm944 = vcmp.gt.f32.partialorder %v934, 0.0
  %vm945 = vcmp.gt.f32.partialorder %v935, 0.0
  %vm946 = vcmp.gt.f32.partialorder %v936, 0.0
  %v947 = vmul.f32 %v927, 0.2
  %v948 = vmul.f32 %v928, 0.2
  %v949 = vmul.f32 %v929, 0.2
  %v950 = vmul.f32 %v930, 0.2
  %v951 = vmul.f32 %v931, 0.2
  %v952 = vmul.f32 %v932, 0.2
  %v953 = vmul.f32 %v933, 0.2
  %v954 = vmul.f32 %v934, 0.2
  %v955 = vmul.f32 %v935, 0.2
  %v956 = vmul.f32 %v936, 0.2
  %v957 = vsel %vm937, %v927, %v947
  %v958 = vsel %vm938, %v928, %v948
  %v959 = vsel %vm939, %v929, %v949
  %v960 = vsel %vm940, %v930, %v950
  %v961 = vsel %vm941, %v931, %v951
  %v962 = vsel %vm942, %v932, %v952
  %v963 = vsel %vm943, %v933, %v953
  %v964 = vsel %vm944, %v934, %v954
  %v965 = vsel %vm945, %v935, %v955
  %v966 = vsel %vm946, %v936, %v956
  %v967 = vpack.c.bf16 %v962, %v957
  %v968 = vpack.c.bf16 %v963, %v958
  %v969 = vpack.c.bf16 %v964, %v959
  %v970 = vpack.c.bf16 %v965, %v960
  %v971 = vpack.c.bf16 %v966, %v961
  %v977 = vunpack.c.l.b16 %v967
  %v978 = vunpack.c.l.b16 %v968
  %v979 = vunpack.c.l.b16 %v969
  %v980 = vunpack.c.l.b16 %v970
  %v981 = vunpack.c.l.b16 %v971
  %v982 = vunpack.c.h.b16 %v967
  %v983 = vunpack.c.h.b16 %v968
  %v984 = vunpack.c.h.b16 %v969
  %v985 = vunpack.c.h.b16 %v970
  %v986 = vunpack.c.h.b16 %v971
  %v987 = vpack.c.b16 %v978, %v977
  %v988 = vpack.c.b16 %v980, %v979
  %v989 = vpack.c.b16 %v981, %v981
  %v990 = vpack.c.b16 %v983, %v982
  %v991 = vpack.c.b16 %v985, %v984
  %v992 = vpack.c.b16 %v986, %v986
  %999 = vst [vmem:[%s5] sm:$0xff] %v987
  %1000 = vst [vmem:[%s5 + $0x8] sm:$0xff] %v988
  %vm1001 = vcmask 388096
  %1002 = vst.msk [vmem:[%s5 + $0x10] sm:$0xf] %vm1001, %v989
  %1003 = vst [vmem:[%s5 + $0x14] sm:$0xff] %v990
  %1004 = vst [vmem:[%s5 + $0x1c] sm:$0xff] %v991
  %1005 = vst.msk [vmem:[%s5 + $0x24] sm:$0xf] %vm1001, %v992
  // Predicated region
  $region22: #{discriminator_forward.5} parent=0 // pred_check
    _
  $region23: #{discriminator_forward.5} parent=0 // pred_check_branch
    %1007 = sbr.rel (0) target = $region25
  $region24: #{discriminator_forward.5} parent=0 // pred_region
    _
  $region25: #{discriminator_forward.5} parent=0 // pred_fallthru
    _
  // Predicated region
  $region26: #{discriminator_forward.5} parent=0 // pred_check
    _
  $region27: #{discriminator_forward.5} parent=0 // pred_check_branch
    %1009 = sbr.rel (0) target = $region29
  $region28: #{discriminator_forward.5} parent=0 // pred_region
    _
  $region29: #{discriminator_forward.5} parent=0 // pred_fallthru
    _

// kernel: discriminator_forward.6
$region0: #{discriminator_forward.6}
  #allocation0 [shape = 'u32[]', space=smem, size = 0x4, offset = 0x4, fixed_abs, tag = 'smem constant byte address 0x4 - core index']
  #allocation1 [shape = 'u32[144,128]{1,0:T(1,128)}', space=vmem, size = 0x12000, scoped, tag = 'internal scratch']
  %s0 = inlined_call_operand.vmem [shape: bf16[4,32,64], index: 0, kind: input, shape index: {}]
  %s1 = inlined_call_operand.vmem [shape: bf16[64,162], index: 1, kind: input, shape index: {}]
  %s2 = inlined_call_operand.vmem [shape: f32[1,152], index: 2, kind: input, shape index: {}]
  %s3 = inlined_call_operand.vmem [shape: f32[32,1], index: 3, kind: input, shape index: {}]
  %s4 = inlined_call_operand.vmem [shape: f32[32,1], index: 4, kind: input, shape index: {}]
  %s5 = inlined_call_operand.vmem [shape: bf16[32,152], index: 5, kind: output, shape index: {}]
  %s6 = sld [smem:[#allocation0]]
  $region30: #{discriminator_forward.6} parent=0
    _
  %s8 = ssub.s32 1, %s6
  %s9 = scalar_select 0, %s8, %s6
  // Predicated region
  $region2: #{discriminator_forward.6} parent=0 // pred_check
    _
  $region3: #{discriminator_forward.6} parent=0 // pred_check_branch
    %11 = sbr.rel (0) target = $region5
  $region4: #{discriminator_forward.6} parent=0 // pred_region
    _
  $region5: #{discriminator_forward.6} parent=0 // pred_fallthru
    _
  // Predicated region
  $region6: #{discriminator_forward.6} parent=0 // pred_check
    _
  $region7: #{discriminator_forward.6} parent=0 // pred_check_branch
    %13 = sbr.rel (0) target = $region9
  $region8: #{discriminator_forward.6} parent=0 // pred_region
    _
  $region9: #{discriminator_forward.6} parent=0 // pred_fallthru
    _
  // Predicated region
  $region10: #{discriminator_forward.6} parent=0 // pred_check
    _
  $region11: #{discriminator_forward.6} parent=0 // pred_check_branch
    %15 = sbr.rel (0) target = $region13
  $region12: #{discriminator_forward.6} parent=0 // pred_region
    _
  $region13: #{discriminator_forward.6} parent=0 // pred_fallthru
    _
  // Predicated region
  $region14: #{discriminator_forward.6} parent=0 // pred_check
    _
  $region15: #{discriminator_forward.6} parent=0 // pred_check_branch
    %17 = sbr.rel (0) target = $region17
  $region16: #{discriminator_forward.6} parent=0 // pred_region
    _
  $region17: #{discriminator_forward.6} parent=0 // pred_fallthru
    _
  // Predicated region
  $region18: #{discriminator_forward.6} parent=0 // pred_check
    _
  $region19: #{discriminator_forward.6} parent=0 // pred_check_branch
    %19 = sbr.rel (0) target = $region21
  $region20: #{discriminator_forward.6} parent=0 // pred_region
    _
  $region21: #{discriminator_forward.6} parent=0 // pred_fallthru
    _
  %v21 = vld [vmem:[%s0] sm:$0xf]
  %v22 = vld [vmem:[%s0 + $0x4] sm:$0xf]
  %v23 = vld [vmem:[%s0 + $0x8] sm:$0xf]
  %v24 = vld [vmem:[%s0 + $0xc] sm:$0xf]
  %v25 = vld [vmem:[%s1] sm:$0xff]
  %v26 = vld [vmem:[%s1 + $0x8] sm:$0xff]
  %v27 = vld [vmem:[%s1 + $0x10] sm:$0xff]
  %v28 = vld [vmem:[%s1 + $0x18] sm:$0xff]
  %v29 = vld [vmem:[%s1 + $0x20] sm:$0xff]
  %v30 = vld [vmem:[%s1 + $0x28] sm:$0xff]
  %v31 = vld [vmem:[%s1 + $0x30] sm:$0xff]
  %v32 = vld [vmem:[%s1 + $0x38] sm:$0xff]
  %s33 = scalar_lea.vmem %s0, 16
  %v34 = vld [vmem:[%s33] sm:$0xf]
  %v35 = vld [vmem:[%s33 + $0x4] sm:$0xf]
  %v36 = vld [vmem:[%s33 + $0x8] sm:$0xf]
  %v37 = vld [vmem:[%s33 + $0xc] sm:$0xf]
  %v42 = vunpack.c.l.b16 %v34
  %v43 = vunpack.c.l.b16 %v35
  %v44 = vunpack.c.l.b16 %v36
  %v45 = vunpack.c.l.b16 %v37
  %v46 = vpack.c.b16 %v43, %v42
  %v47 = vpack.c.b16 %v45, %v44
  %v56 = vunpack.c.l.b16 %v25
  %v57 = vunpack.c.h.b16 %v25
  %v58 = vunpack.c.l.b16 %v26
  %v59 = vunpack.c.h.b16 %v26
  %v60 = vunpack.c.l.b16 %v27
  %v61 = vunpack.c.h.b16 %v27
  %v62 = vunpack.c.l.b16 %v28
  %v63 = vunpack.c.h.b16 %v28
  %v64 = vunpack.c.l.b16 %v29
  %v65 = vunpack.c.h.b16 %v29
  %v66 = vunpack.c.l.b16 %v30
  %v67 = vunpack.c.h.b16 %v30
  %v68 = vunpack.c.l.b16 %v31
  %v69 = vunpack.c.h.b16 %v31
  %v70 = vunpack.c.l.b16 %v32
  %v71 = vunpack.c.h.b16 %v32
  %v72 = vpack.c.b16 %v58, %v56
  %v73 = vpack.c.b16 %v59, %v57
  %v74 = vpack.c.b16 %v62, %v60
  %v75 = vpack.c.b16 %v63, %v61
  %v76 = vpack.c.b16 %v66, %v64
  %v77 = vpack.c.b16 %v67, %v65
  %v78 = vpack.c.b16 %v70, %v68
  %v79 = vpack.c.b16 %v71, %v69
  %80 = vrot.lane.b32.xlu0 %v72, 127
  %v81 = vpop.permute.xlu0 %80
  %82 = vrot.lane.b32.xlu0 %v73, 127
  %v83 = vpop.permute.xlu0 %82
  %84 = vrot.lane.b32.xlu0 %v74, 127
  %v85 = vpop.permute.xlu0 %84
  %86 = vrot.lane.b32.xlu0 %v75, 127
  %v87 = vpop.permute.xlu0 %86
  %88 = vrot.lane.b32.xlu0 %v76, 127
  %v89 = vpop.permute.xlu0 %88
  %90 = vrot.lane.b32.xlu0 %v77, 127
  %v91 = vpop.permute.xlu0 %90
  %92 = vrot.lane.b32.xlu0 %v78, 127
  %v93 = vpop.permute.xlu0 %92
  %94 = vrot.lane.b32.xlu0 %v79, 127
  %v95 = vpop.permute.xlu0 %94
  %vm96 = vcmask 1039360
  %v97 = vsel %vm96, %v81, %v83
  %v98 = vsel %vm96, %v85, %v87
  %v99 = vsel %vm96, %v89, %v91
  %v100 = vsel %vm96, %v93, %v95
  %vm109 = vcmask 523264
  %v111 = vsel %vm109, %v46, 0
  %v114 = vsel %vm109, %v47, 0
  %116 = vmatprep.subr.bf16.mxu0 %v83
  %117 = vmatpush1.bf16.msra.mxu0 %v97
  %118 = vmatprep.subr.bf16.mxu0 %v87
  %119 = vmatpush1.bf16.msra.mxu0 %v98
  %120 = vmatprep.subr.bf16.mxu0 %v91
  %121 = vmatpush1.bf16.msra.mxu0 %v99
  %122 = vmatprep.subr.bf16.mxu0 %v95
  %123 = vmatpush1.bf16.msra.mxu0 %v100
  %124 = vmatprep.subr.bf16.mxu0 0
  %125 = vmatpush1.bf16.msra.mxu0 0
  %126 = vmatprep.subr.bf16.mxu0 0
  %127 = vmatpush1.bf16.msra.mxu0 0
  %128 = vmatprep.subr.bf16.mxu0 0
  %129 = vmatpush1.bf16.msra.mxu0 0
  %130 = vmatprep.subr.bf16.mxu0 0
  %131 = vmatpush1.bf16.msra.mxu0 0
  %132 = vmatprep.subr.bf16.mxu0 0
  %133 = vmatpush1.bf16.msra.mxu0 0
  %134 = vmatprep.subr.bf16.mxu0 0
  %135 = vmatpush1.bf16.msra.mxu0 0
  %136 = vmatprep.subr.bf16.mxu0 0
  %137 = vmatpush1.bf16.msra.mxu0 0
  %138 = vmatprep.subr.bf16.mxu0 0
  %139 = vmatpush1.bf16.msra.mxu0 0
  %140 = vmatprep.subr.bf16.mxu0 0
  %141 = vmatpush1.bf16.msra.mxu0 0
  %142 = vmatprep.subr.bf16.mxu0 0
  %143 = vmatpush1.bf16.msra.mxu0 0
  %144 = vmatprep.subr.bf16.mxu0 0
  %145 = vmatpush1.bf16.msra.mxu0 0
  %146 = vmatprep.subr.bf16.mxu0 0
  %147 = vmatpush1.bf16.msra.mxu0 0
  %148 = vmatprep.mubr.bf16.mxu0 0
  %149 = vmatmul.mubr.bf16.gmra.mrb[0].mxu0 %v111
  %v150 = vpop.f32.mrb[0].mxu0
  %v151 = vadd.f32 0.0, %v150
  %v152 = vpop.f32.mrb[0].mxu0
  %v153 = vadd.f32 0.0, %v152
  %v154 = vpop.f32.mrb[0].mxu0
  %v155 = vadd.f32 0.0, %v154
  %v156 = vpop.f32.mrb[0].mxu0
  %v157 = vadd.f32 0.0, %v156
  %158 = vmatprep.mubr.bf16.mxu0 0
  %159 = vmatmul.mubr.bf16.gmra.mrb[0].mxu0 %v114
  %v160 = vpop.f32.mrb[0].mxu0
  %v161 = vadd.f32 0.0, %v160
  %v162 = vpop.f32.mrb[0].mxu0
  %v163 = vadd.f32 0.0, %v162
  %v164 = vpop.f32.mrb[0].mxu0
  %v165 = vadd.f32 0.0, %v164
  %v166 = vpop.f32.mrb[0].mxu0
  %v167 = vadd.f32 0.0, %v166
  %168 = vdwg.mxu0
  %v173 = vunpack.c.l.b16 %v21
  %v174 = vunpack.c.l.b16 %v22
  %v175 = vunpack.c.l.b16 %v23
  %v176 = vunpack.c.l.b16 %v24
  %v177 = vpack.c.b16 %v174, %v173
  %v178 = vpack.c.b16 %v176, %v175
  %v188 = vsel %vm109, %v177, 0
  %v191 = vsel %vm109, %v178, 0
  %193 = vmatprep.subr.bf16.mxu0 %v73
  %194 = vmatpush1.bf16.msra.mxu0 %v72
  %195 = vmatprep.subr.bf16.mxu0 %v75
  %196 = vmatpush1.bf16.msra.mxu0 %v74
  %197 = vmatprep.subr.bf16.mxu0 %v77
  %198 = vmatpush1.bf16.msra.mxu0 %v76
  %199 = vmatprep.subr.bf16.mxu0 %v79
  %200 = vmatpush1.bf16.msra.mxu0 %v78
  %201 = vmatprep.subr.bf16.mxu0 0
  %202 = vmatpush1.bf16.msra.mxu0 0
  %203 = vmatprep.subr.bf16.mxu0 0
  %204 = vmatpush1.bf16.msra.mxu0 0
  %205 = vmatprep.subr.bf16.mxu0 0
  %206 = vmatpush1.bf16.msra.mxu0 0
  %207 = vmatprep.subr.bf16.mxu0 0
  %208 = vmatpush1.bf16.msra.mxu0 0
  %209 = vmatprep.subr.bf16.mxu0 0
  %210 = vmatpush1.bf16.msra.mxu0 0
  %211 = vmatprep.subr.bf16.mxu0 0
  %212 = vmatpush1.bf16.msra.mxu0 0
  %213 = vmatprep.subr.bf16.mxu0 0
  %214 = vmatpush1.bf16.msra.mxu0 0
  %215 = vmatprep.subr.bf16.mxu0 0
  %216 = vmatpush1.bf16.msra.mxu0 0
  %217 = vmatprep.subr.bf16.mxu0 0
  %218 = vmatpush1.bf16.msra.mxu0 0
  %219 = vmatprep.subr.bf16.mxu0 0
  %220 = vmatpush1.bf16.msra.mxu0 0
  %221 = vmatprep.subr.bf16.mxu0 0
  %222 = vmatpush1.bf16.msra.mxu0 0
  %223 = vmatprep.subr.bf16.mxu0 0
  %224 = vmatpush1.bf16.msra.mxu0 0
  %225 = vmatprep.mubr.bf16.mxu0 0
  %226 = vmatmul.mubr.bf16.gmra.mrb[0].mxu0 %v188
  %v227 = vpop.f32.mrb[0].mxu0
  %v228 = vadd.f32 %v151, %v227
  %v229 = vpop.f32.mrb[0].mxu0
  %v230 = vadd.f32 %v153, %v229
  %v231 = vpop.f32.mrb[0].mxu0
  %v232 = vadd.f32 %v155, %v231
  %v233 = vpop.f32.mrb[0].mxu0
  %v234 = vadd.f32 %v157, %v233
  %235 = vmatprep.mubr.bf16.mxu0 0
  %236 = vmatmul.mubr.bf16.gmra.mrb[0].mxu0 %v191
  %v237 = vpop.f32.mrb[0].mxu0
  %v238 = vadd.f32 %v161, %v237
  %v239 = vpop.f32.mrb[0].mxu0
  %v240 = vadd.f32 %v163, %v239
  %v241 = vpop.f32.mrb[0].mxu0
  %v242 = vadd.f32 %v165, %v241
  %v243 = vpop.f32.mrb[0].mxu0
  %v244 = vadd.f32 %v167, %v243
  %245 = vdwg.mxu0
  %s246 = scalar_lea.vmem %s0, 32
  %v247 = vld [vmem:[%s246] sm:$0xf]
  %v248 = vld [vmem:[%s246 + $0x4] sm:$0xf]
  %v249 = vld [vmem:[%s246 + $0x8] sm:$0xf]
  %v250 = vld [vmem:[%s246 + $0xc] sm:$0xf]
  %v255 = vunpack.c.l.b16 %v247
  %v256 = vunpack.c.l.b16 %v248
  %v257 = vunpack.c.l.b16 %v249
  %v258 = vunpack.c.l.b16 %v250
  %v259 = vpack.c.b16 %v256, %v255
  %v260 = vpack.c.b16 %v258, %v257
  %261 = vrot.lane.b32.xlu0 %v72, 119
  %v262 = vpop.permute.xlu0 %261
  %263 = vrot.lane.b32.xlu0 %v73, 119
  %v264 = vpop.permute.xlu0 %263
  %265 = vrot.lane.b32.xlu0 %v74, 119
  %v266 = vpop.permute.xlu0 %265
  %267 = vrot.lane.b32.xlu0 %v75, 119
  %v268 = vpop.permute.xlu0 %267
  %269 = vrot.lane.b32.xlu0 %v76, 119
  %v270 = vpop.permute.xlu0 %269
  %271 = vrot.lane.b32.xlu0 %v77, 119
  %v272 = vpop.permute.xlu0 %271
  %273 = vrot.lane.b32.xlu0 %v78, 119
  %v274 = vpop.permute.xlu0 %273
  %275 = vrot.lane.b32.xlu0 %v79, 119
  %v276 = vpop.permute.xlu0 %275
  %vm277 = vcmask 973824
  %v278 = vsel %vm277, %v262, %v264
  %v279 = vsel %vm277, %v266, %v268
  %v280 = vsel %vm277, %v270, %v272
  %v281 = vsel %vm277, %v274, %v276
  %v291 = vsel %vm109, %v259, 0
  %v294 = vsel %vm109, %v260, 0
  %296 = vmatprep.subr.bf16.mxu0 %v264
  %297 = vmatpush1.bf16.msra.mxu0 %v278
  %298 = vmatprep.subr.bf16.mxu0 %v268
  %299 = vmatpush1.bf16.msra.mxu0 %v279
  %300 = vmatprep.subr.bf16.mxu0 %v272
  %301 = vmatpush1.bf16.msra.mxu0 %v280
  %302 = vmatprep.subr.bf16.mxu0 %v276
  %303 = vmatpush1.bf16.msra.mxu0 %v281
  %304 = vmatprep.subr.bf16.mxu0 0
  %305 = vmatpush1.bf16.msra.mxu0 0
  %306 = vmatprep.subr.bf16.mxu0 0
  %307 = vmatpush1.bf16.msra.mxu0 0
  %308 = vmatprep.subr.bf16.mxu0 0
  %309 = vmatpush1.bf16.msra.mxu0 0
  %310 = vmatprep.subr.bf16.mxu0 0
  %311 = vmatpush1.bf16.msra.mxu0 0
  %312 = vmatprep.subr.bf16.mxu0 0
  %313 = vmatpush1.bf16.msra.mxu0 0
  %314 = vmatprep.subr.bf16.mxu0 0
  %315 = vmatpush1.bf16.msra.mxu0 0
  %316 = vmatprep.subr.bf16.mxu0 0
  %317 = vmatpush1.bf16.msra.mxu0 0
  %318 = vmatprep.subr.bf16.mxu0 0
  %319 = vmatpush1.bf16.msra.mxu0 0
  %320 = vmatprep.subr.bf16.mxu0 0
  %321 = vmatpush1.bf16.msra.mxu0 0
  %322 = vmatprep.subr.bf16.mxu0 0
  %323 = vmatpush1.bf16.msra.mxu0 0
  %324 = vmatprep.subr.bf16.mxu0 0
  %325 = vmatpush1.bf16.msra.mxu0 0
  %326 = vmatprep.subr.bf16.mxu0 0
  %327 = vmatpush1.bf16.msra.mxu0 0
  %328 = vmatprep.mubr.bf16.mxu0 0
  %329 = vmatmul.mubr.bf16.gmra.mrb[0].mxu0 %v291
  %v330 = vpop.f32.mrb[0].mxu0
  %v331 = vadd.f32 0.0, %v330
  %v332 = vpop.f32.mrb[0].mxu0
  %v333 = vadd.f32 0.0, %v332
  %v334 = vpop.f32.mrb[0].mxu0
  %v335 = vadd.f32 0.0, %v334
  %v336 = vpop.f32.mrb[0].mxu0
  %v337 = vadd.f32 0.0, %v336
  %338 = vmatprep.mubr.bf16.mxu0 0
  %339 = vmatmul.mubr.bf16.gmra.mrb[0].mxu0 %v294
  %v340 = vpop.f32.mrb[0].mxu0
  %v341 = vadd.f32 0.0, %v340
  %v342 = vpop.f32.mrb[0].mxu0
  %v343 = vadd.f32 0.0, %v342
  %v344 = vpop.f32.mrb[0].mxu0
  %v345 = vadd.f32 0.0, %v344
  %v346 = vpop.f32.mrb[0].mxu0
  %v347 = vadd.f32 0.0, %v346
  %348 = vdwg.mxu0
  %v349 = vadd.f32 %v228, %v331
  %v350 = vadd.f32 %v230, %v333
  %v351 = vadd.f32 %v232, %v335
  %v352 = vadd.f32 %v234, %v337
  %v353 = vadd.f32 %v238, %v341
  %v354 = vadd.f32 %v240, %v343
  %v355 = vadd.f32 %v242, %v345
  %v356 = vadd.f32 %v244, %v347
  %s357 = scalar_lea.vmem %s0, 48
  %v358 = vld [vmem:[%s357] sm:$0xf]
  %v359 = vld [vmem:[%s357 + $0x4] sm:$0xf]
  %v360 = vld [vmem:[%s357 + $0x8] sm:$0xf]
  %v361 = vld [vmem:[%s357 + $0xc] sm:$0xf]
  %v366 = vunpack.c.l.b16 %v358
  %v367 = vunpack.c.l.b16 %v359
  %v368 = vunpack.c.l.b16 %v360
  %v369 = vunpack.c.l.b16 %v361
  %v370 = vpack.c.b16 %v367, %v366
  %v371 = vpack.c.b16 %v369, %v368
  %372 = vrot.lane.b32.xlu0 %v72, 118
  %v373 = vpop.permute.xlu0 %372
  %374 = vrot.lane.b32.xlu0 %v73, 118
  %v375 = vpop.permute.xlu0 %374
  %376 = vrot.lane.b32.xlu0 %v74, 118
  %v377 = vpop.permute.xlu0 %376
  %378 = vrot.lane.b32.xlu0 %v75, 118
  %v379 = vpop.permute.xlu0 %378
  %380 = vrot.lane.b32.xlu0 %v76, 118
  %v381 = vpop.permute.xlu0 %380
  %382 = vrot.lane.b32.xlu0 %v77, 118
  %v383 = vpop.permute.xlu0 %382
  %384 = vrot.lane.b32.xlu0 %v78, 118
  %v385 = vpop.permute.xlu0 %384
  %386 = vrot.lane.b32.xlu0 %v79, 118
  %v387 = vpop.permute.xlu0 %386
  %vm388 = vcmask 965632
  %v389 = vsel %vm388, %v373, %v375
  %v390 = vsel %vm388, %v377, %v379
  %v391 = vsel %vm388, %v381, %v383
  %v392 = vsel %vm388, %v385, %v387
  %v402 = vsel %vm109, %v370, 0
  %v405 = vsel %vm109, %v371, 0
  %407 = vmatprep.subr.bf16.mxu0 %v375
  %408 = vmatpush1.bf16.msra.mxu0 %v389
  %409 = vmatprep.subr.bf16.mxu0 %v379
  %410 = vmatpush1.bf16.msra.mxu0 %v390
  %411 = vmatprep.subr.bf16.mxu0 %v383
  %412 = vmatpush1.bf16.msra.mxu0 %v391
  %413 = vmatprep.subr.bf16.mxu0 %v387
  %414 = vmatpush1.bf16.msra.mxu0 %v392
  %415 = vmatprep.subr.bf16.mxu0 0
  %416 = vmatpush1.bf16.msra.mxu0 0
  %417 = vmatprep.subr.bf16.mxu0 0
  %418 = vmatpush1.bf16.msra.mxu0 0
  %419 = vmatprep.subr.bf16.mxu0 0
  %420 = vmatpush1.bf16.msra.mxu0 0
  %421 = vmatprep.subr.bf16.mxu0 0
  %422 = vmatpush1.bf16.msra.mxu0 0
  %423 = vmatprep.subr.bf16.mxu0 0
  %424 = vmatpush1.bf16.msra.mxu0 0
  %425 = vmatprep.subr.bf16.mxu0 0
  %426 = vmatpush1.bf16.msra.mxu0 0
  %427 = vmatprep.subr.bf16.mxu0 0
  %428 = vmatpush1.bf16.msra.mxu0 0
  %429 = vmatprep.subr.bf16.mxu0 0
  %430 = vmatpush1.bf16.msra.mxu0 0
  %431 = vmatprep.subr.bf16.mxu0 0
  %432 = vmatpush1.bf16.msra.mxu0 0
  %433 = vmatprep.subr.bf16.mxu0 0
  %434 = vmatpush1.bf16.msra.mxu0 0
  %435 = vmatprep.subr.bf16.mxu0 0
  %436 = vmatpush1.bf16.msra.mxu0 0
  %437 = vmatprep.subr.bf16.mxu0 0
  %438 = vmatpush1.bf16.msra.mxu0 0
  %439 = vmatprep.mubr.bf16.mxu0 0
  %440 = vmatmul.mubr.bf16.gmra.mrb[0].mxu0 %v402
  %v441 = vpop.f32.mrb[0].mxu0
  %v442 = vadd.f32 0.0, %v441
  %v443 = vpop.f32.mrb[0].mxu0
  %v444 = vadd.f32 0.0, %v443
  %v445 = vpop.f32.mrb[0].mxu0
  %v446 = vadd.f32 0.0, %v445
  %v447 = vpop.f32.mrb[0].mxu0
  %v448 = vadd.f32 0.0, %v447
  %449 = vmatprep.mubr.bf16.mxu0 0
  %450 = vmatmul.mubr.bf16.gmra.mrb[0].mxu0 %v405
  %v451 = vpop.f32.mrb[0].mxu0
  %v452 = vadd.f32 0.0, %v451
  %v453 = vpop.f32.mrb[0].mxu0
  %v454 = vadd.f32 0.0, %v453
  %v455 = vpop.f32.mrb[0].mxu0
  %v456 = vadd.f32 0.0, %v455
  %v457 = vpop.f32.mrb[0].mxu0
  %v458 = vadd.f32 0.0, %v457
  %459 = vdwg.mxu0
  %v460 = vadd.f32 %v349, %v442
  %v461 = vadd.f32 %v350, %v444
  %v462 = vadd.f32 %v351, %v446
  %v463 = vadd.f32 %v352, %v448
  %v464 = vadd.f32 %v353, %v452
  %v465 = vadd.f32 %v354, %v454
  %v466 = vadd.f32 %v355, %v456
  %v467 = vadd.f32 %v356, %v458
  %v468 = vld [vmem:[%s2] sm:$0x3]
  %v470 = vlaneseq
  %v471 = vshrl.u32 %v470, 7
  %v472 = vsub.s32 0, %v471
  %v473 = vrot.slane %v468, %v472
  %v474 = vlaneseq
  %v475 = vshrl.u32 %v474, 7
  %v476 = vsub.s32 1, %v475
  %v477 = vrot.slane %v468, %v476
  %v480 = vmul.f32 %v460, %v473
  %v481 = vmul.f32 %v461, %v477
  %v482 = vmul.f32 %v462, %v473
  %v483 = vmul.f32 %v463, %v477
  %v484 = vmul.f32 %v464, %v473
  %v485 = vmul.f32 %v465, %v477
  %v486 = vmul.f32 %v466, %v473
  %v487 = vmul.f32 %v467, %v477
  %vm488 = vcmask 195584
  %v489 = vsel %vm488, %v481, 0.0
  %v490 = vadd.f32 %v480, %v489
  %491 = vadd.xlane.f32.xlu0 %v490
  %v492 = vpop.xlane.xlu0 %491
  %v493 = vsel %vm488, %v483, 0.0
  %v494 = vadd.f32 %v482, %v493
  %495 = vadd.xlane.f32.xlu0 %v494
  %v496 = vpop.xlane.xlu0 %495
  %v497 = vsel %vm488, %v485, 0.0
  %v498 = vadd.f32 %v484, %v497
  %499 = vadd.xlane.f32.xlu0 %v498
  %v500 = vpop.xlane.xlu0 %499
  %v501 = vsel %vm488, %v487, 0.0
  %v502 = vadd.f32 %v486, %v501
  %503 = vadd.xlane.f32.xlu0 %v502
  %v504 = vpop.xlane.xlu0 %503
  %v505 = vrcp.pop 128.0
  %v506 = vmul.f32 %v492, %v505
  %v507 = vmul.f32 %v496, %v505
  %v508 = vmul.f32 %v500, %v505
  %v509 = vmul.f32 %v504, %v505
  %v510 = vmul.f32 %v460, %v460
  %v511 = vmul.f32 %v461, %v461
  %v512 = vmul.f32 %v462, %v462
  %v513 = vmul.f32 %v463, %v463
  %v514 = vmul.f32 %v464, %v464
  %v515 = vmul.f32 %v465, %v465
  %v516 = vmul.f32 %v466, %v466
  %v517 = vmul.f32 %v467, %v467
  %v518 = vmul.f32 %v510, %v473
  %v519 = vmul.f32 %v511, %v477
  %v520 = vmul.f32 %v512, %v473
  %v521 = vmul.f32 %v513, %v477
  %v522 = vmul.f32 %v514, %v473
  %v523 = vmul.f32 %v515, %v477
  %v524 = vmul.f32 %v516, %v473
  %v525 = vmul.f32 %v517, %v477
  %v526 = vsel %vm488, %v519, 0.0
  %v527 = vadd.f32 %v518, %v526
  %528 = vadd.xlane.f32.xlu0 %v527
  %v529 = vpop.xlane.xlu0 %528
  %v530 = vsel %vm488, %v521, 0.0
  %v531 = vadd.f32 %v520, %v530
  %532 = vadd.xlane.f32.xlu0 %v531
  %v533 = vpop.xlane.xlu0 %532
  %v534 = vsel %vm488, %v523, 0.0
  %v535 = vadd.f32 %v522, %v534
  %536 = vadd.xlane.f32.xlu0 %v535
  %v537 = vpop.xlane.xlu0 %536
  %v538 = vsel %vm488, %v525, 0.0
  %v539 = vadd.f32 %v524, %v538
  %540 = vadd.xlane.f32.xlu0 %v539
  %v541 = vpop.xlane.xlu0 %540
  %v542 = vmul.f32 %v529, %v505
  %v543 = vmul.f32 %v533, %v505
  %v544 = vmul.f32 %v537, %v505
  %v545 = vmul.f32 %v541, %v505
  %v546 = vmul.f32 %v506, %v506
  %v547 = vmul.f32 %v507, %v507
  %v548 = vmul.f32 %v508, %v508
  %v549 = vmul.f32 %v509, %v509
  %v550 = vsub.f32 %v542, %v546
  %v551 = vsub.f32 %v543, %v547
  %v552 = vsub.f32 %v544, %v548
  %v553 = vsub.f32 %v545, %v549
  %v554 = vsub.f32 %v460, %v506
  %v555 = vsub.f32 %v461, %v506
  %v556 = vsub.f32 %v462, %v507
  %v557 = vsub.f32 %v463, %v507
  %v558 = vsub.f32 %v464, %v508
  %v559 = vsub.f32 %v465, %v508
  %v560 = vsub.f32 %v466, %v509
  %v561 = vsub.f32 %v467, %v509
  %v562 = vadd.f32 %v550, 1e-05
  %v563 = vadd.f32 %v551, 1e-05
  %v564 = vadd.f32 %v552, 1e-05
  %v565 = vadd.f32 %v553, 1e-05
  %v566 = vrsqrt.pop %v562
  %v567 = vrsqrt.pop %v563
  %v568 = vrsqrt.pop %v564
  %v569 = vrsqrt.pop %v565
  %v570 = vmul.f32 %v554, %v566
  %v571 = vmul.f32 %v555, %v566
  %v572 = vmul.f32 %v556, %v567
  %v573 = vmul.f32 %v557, %v567
  %v574 = vmul.f32 %v558, %v568
  %v575 = vmul.f32 %v559, %v568
  %v576 = vmul.f32 %v560, %v569
  %v577 = vmul.f32 %v561, %v569
  %v578 = vld [vmem:[%s3] sm:$0xff]
  %v579 = vld [vmem:[%s3 + $0x8] sm:$0xff]
  %v580 = vld [vmem:[%s3 + $0x10] sm:$0xff]
  %v581 = vld [vmem:[%s3 + $0x18] sm:$0xff]
  %583 = vset.pattern.permute.xlu0 0
  %584 = vperm.xlu0 %583, %v578
  %v585 = vpop.permute.xlu0 %584
  %588 = vset.pattern.permute.xlu0 0
  %589 = vperm.xlu0 %588, %v579
  %v590 = vpop.permute.xlu0 %589
  %593 = vset.pattern.permute.xlu0 0
  %594 = vperm.xlu0 %593, %v580
  %v595 = vpop.permute.xlu0 %594
  %598 = vset.pattern.permute.xlu0 0
  %599 = vperm.xlu0 %598, %v581
  %v600 = vpop.permute.xlu0 %599
  %v602 = vmul.f32 %v570, %v585
  %v603 = vmul.f32 %v571, %v585
  %v604 = vmul.f32 %v572, %v590
  %v605 = vmul.f32 %v573, %v590
  %v606 = vmul.f32 %v574, %v595
  %v607 = vmul.f32 %v575, %v595
  %v608 = vmul.f32 %v576, %v600
  %v609 = vmul.f32 %v577, %v600
  %v610 = vld [vmem:[%s4] sm:$0xff]
  %v611 = vld [vmem:[%s4 + $0x8] sm:$0xff]
  %v612 = vld [vmem:[%s4 + $0x10] sm:$0xff]
  %v613 = vld [vmem:[%s4 + $0x18] sm:$0xff]
  %615 = vset.pattern.permute.xlu0 0
  %616 = vperm.xlu0 %615, %v610
  %v617 = vpop.permute.xlu0 %616
  %620 = vset.pattern.permute.xlu0 0
  %621 = vperm.xlu0 %620, %v611
  %v622 = vpop.permute.xlu0 %621
  %625 = vset.pattern.permute.xlu0 0
  %626 = vperm.xlu0 %625, %v612
  %v627 = vpop.permute.xlu0 %626
  %630 = vset.pattern.permute.xlu0 0
  %631 = vperm.xlu0 %630, %v613
  %v632 = vpop.permute.xlu0 %631
  %v634 = vadd.f32 %v602, %v617
  %v635 = vadd.f32 %v603, %v617
  %v636 = vadd.f32 %v604, %v622
  %v637 = vadd.f32 %v605, %v622
  %v638 = vadd.f32 %v606, %v627
  %v639 = vadd.f32 %v607, %v627
  %v640 = vadd.f32 %v608, %v632
  %v641 = vadd.f32 %v609, %v632
  %vm642 = vcmp.gt.f32.partialorder %v634, 0.0
  %vm643 = vcmp.gt.f32.partialorder %v635, 0.0
  %vm644 = vcmp.gt.f32.partialorder %v636, 0.0
  %vm645 = vcmp.gt.f32.partialorder %v637, 0.0
  %vm646 = vcmp.gt.f32.partialorder %v638, 0.0
  %vm647 = vcmp.gt.f32.partialorder %v639, 0.0
  %vm648 = vcmp.gt.f32.partialorder %v640, 0.0
  %vm649 = vcmp.gt.f32.partialorder %v641, 0.0
  %v650 = vmul.f32 %v634, 0.2
  %v651 = vmul.f32 %v635, 0.2
  %v652 = vmul.f32 %v636, 0.2
  %v653 = vmul.f32 %v637, 0.2
  %v654 = vmul.f32 %v638, 0.2
  %v655 = vmul.f32 %v639, 0.2
  %v656 = vmul.f32 %v640, 0.2
  %v657 = vmul.f32 %v641, 0.2
  %v658 = vsel %vm642, %v634, %v650
  %v659 = vsel %vm643, %v635, %v651
  %v660 = vsel %vm644, %v636, %v652
  %v661 = vsel %vm645, %v637, %v653
  %v662 = vsel %vm646, %v638, %v654
  %v663 = vsel %vm647, %v639, %v655
  %v664 = vsel %vm648, %v640, %v656
  %v665 = vsel %vm649, %v641, %v657
  %v666 = vpack.c.bf16 %v660, %v658
  %v667 = vpack.c.bf16 %v661, %v659
  %v668 = vpack.c.bf16 %v664, %v662
  %v669 = vpack.c.bf16 %v665, %v663
  %v674 = vunpack.c.l.b16 %v666
  %v675 = vunpack.c.l.b16 %v667
  %v676 = vunpack.c.h.b16 %v666
  %v677 = vunpack.c.h.b16 %v667
  %v678 = vunpack.c.l.b16 %v668
  %v679 = vunpack.c.l.b16 %v669
  %v680 = vunpack.c.h.b16 %v668
  %v681 = vunpack.c.h.b16 %v669
  %v682 = vpack.c.b16 %v675, %v674
  %v683 = vpack.c.b16 %v677, %v676
  %v684 = vpack.c.b16 %v679, %v678
  %v685 = vpack.c.b16 %v681, %v680
  %vm690 = vcmask 1043456
  %vm691 = vcmask 195588
  %vm692 = vmor %vm691, %vm690
  %693 = vst.msk [vmem:[%s5] sm:$0xff] %vm692, %v682
  %694 = vst.msk [vmem:[%s5 + $0x8] sm:$0xff] %vm692, %v683
  %695 = vst.msk [vmem:[%s5 + $0x10] sm:$0xff] %vm692, %v684
  %696 = vst.msk [vmem:[%s5 + $0x18] sm:$0xff] %vm692, %v685
  // Predicated region
  $region22: #{discriminator_forward.6} parent=0 // pred_check
    _
  $region23: #{discriminator_forward.6} parent=0 // pred_check_branch
    %698 = sbr.rel (0) target = $region25
  $region24: #{discriminator_forward.6} parent=0 // pred_region
    _
  $region25: #{discriminator_forward.6} parent=0 // pred_fallthru
    _
  // Predicated region
  $region26: #{discriminator_forward.6} parent=0 // pred_check
    _
  $region27: #{discriminator_forward.6} parent=0 // pred_check_branch
    %700 = sbr.rel (0) target = $region29
  $region28: #{discriminator_forward.6} parent=0 // pred_region
    _
  $region29: #{discriminator_forward.6} parent=0 // pred_fallthru
    _

// kernel: discriminator_forward.7
$region0: #{discriminator_forward.7}
  #allocation0 [shape = 'u32[]', space=smem, size = 0x4, offset = 0x4, fixed_abs, tag = 'smem constant byte address 0x4 - core index']
  #allocation1 [shape = 'u32[144,128]{1,0:T(1,128)}', space=vmem, size = 0x12000, scoped, tag = 'internal scratch']
  #allocation2 [shape = 'f32[64,44]{1,0:T(8,128)}', space=vmem, size = 0x8000, scoped, tag = 'scratch operand']
  #allocation3 [shape = 'f32[1,1]{1,0:T(1,128)S(1)}', space=vmem, size = 0x200, scoped, tag = 'scoped memory for discriminator_forward.7']
  %s0 = inlined_call_operand.vmem [shape: bf16[4,64,128], index: 0, kind: input, shape index: {}]
  %s1 = inlined_call_operand.vmem [shape: bf16[128,50], index: 1, kind: input, shape index: {}]
  %s2 = inlined_call_operand.vmem [shape: f32[1,44], index: 2, kind: input, shape index: {}]
  %s3 = inlined_call_operand.vmem [shape: f32[64,1], index: 3, kind: input, shape index: {}]
  %s4 = inlined_call_operand.vmem [shape: f32[64,1], index: 4, kind: input, shape index: {}]
  %s5 = inlined_call_operand.vmem [shape: f32[64,16], index: 5, kind: input, shape index: {}]
  %s6 = inlined_call_operand.<no memory space> [shape: f32[1,1], index: 6, kind: input, shape index: {}]
  %s7 = inlined_call_operand.vmem [shape: f32[1,128], index: 7, kind: output, shape index: {}]
  %s8 = sld [smem:[#allocation0]]
  $region38: #{discriminator_forward.7} parent=0
    _
  %s10 = ssub.s32 1, %s8
  %s11 = scalar_select 0, %s10, %s8
  %v12 = vstv %s6
  %13 = vst [vmem:[#allocation3] sm:$0x1] %v12
  // Predicated region
  $region2: #{discriminator_forward.7} parent=0 // pred_check
    _
  $region3: #{discriminator_forward.7} parent=0 // pred_check_branch
    %15 = sbr.rel (0) target = $region5
  $region4: #{discriminator_forward.7} parent=0 // pred_region
    _
  $region5: #{discriminator_forward.7} parent=0 // pred_fallthru
    _
  // Predicated region
  $region6: #{discriminator_forward.7} parent=0 // pred_check
    _
  $region7: #{discriminator_forward.7} parent=0 // pred_check_branch
    %17 = sbr.rel (0) target = $region9
  $region8: #{discriminator_forward.7} parent=0 // pred_region
    _
  $region9: #{discriminator_forward.7} parent=0 // pred_fallthru
    _
  // Predicated region
  $region10: #{discriminator_forward.7} parent=0 // pred_check
    _
  $region11: #{discriminator_forward.7} parent=0 // pred_check_branch
    %19 = sbr.rel (0) target = $region13
  $region12: #{discriminator_forward.7} parent=0 // pred_region
    _
  $region13: #{discriminator_forward.7} parent=0 // pred_fallthru
    _
  // Predicated region
  $region14: #{discriminator_forward.7} parent=0 // pred_check
    _
  $region15: #{discriminator_forward.7} parent=0 // pred_check_branch
    %21 = sbr.rel (0) target = $region17
  $region16: #{discriminator_forward.7} parent=0 // pred_region
    _
  $region17: #{discriminator_forward.7} parent=0 // pred_fallthru
    _
  // Predicated region
  $region18: #{discriminator_forward.7} parent=0 // pred_check
    _
  $region19: #{discriminator_forward.7} parent=0 // pred_check_branch
    %23 = sbr.rel (0) target = $region21
  $region20: #{discriminator_forward.7} parent=0 // pred_region
    _
  $region21: #{discriminator_forward.7} parent=0 // pred_fallthru
    _
  // Predicated region
  $region22: #{discriminator_forward.7} parent=0 // pred_check
    _
  $region23: #{discriminator_forward.7} parent=0 // pred_check_branch
    %25 = sbr.rel (0) target = $region25
  $region24: #{discriminator_forward.7} parent=0 // pred_region
    _
  $region25: #{discriminator_forward.7} parent=0 // pred_fallthru
    _
  // Predicated region
  $region26: #{discriminator_forward.7} parent=0 // pred_check
    _
  $region27: #{discriminator_forward.7} parent=0 // pred_check_branch
    %27 = sbr.rel (0) target = $region29
  $region28: #{discriminator_forward.7} parent=0 // pred_region
    _
  $region29: #{discriminator_forward.7} parent=0 // pred_fallthru
    _
  %v29 = vld [vmem:[%s0] sm:$0xf]
  %v30 = vld [vmem:[%s0 + $0x4] sm:$0xf]
  %v31 = vld [vmem:[%s0 + $0x8] sm:$0xf]
  %v32 = vld [vmem:[%s0 + $0xc] sm:$0xf]
  %v33 = vld [vmem:[%s0 + $0x10] sm:$0xf]
  %v34 = vld [vmem:[%s0 + $0x14] sm:$0xf]
  %v35 = vld [vmem:[%s0 + $0x18] sm:$0xf]
  %v36 = vld [vmem:[%s0 + $0x1c] sm:$0xf]
  %v37 = vld [vmem:[%s1] sm:$0xf]
  %v38 = vld [vmem:[%s1 + $0x4] sm:$0xf]
  %v39 = vld [vmem:[%s1 + $0x8] sm:$0xf]
  %v40 = vld [vmem:[%s1 + $0xc] sm:$0xf]
  %v41 = vld [vmem:[%s1 + $0x10] sm:$0xf]
  %v42 = vld [vmem:[%s1 + $0x14] sm:$0xf]
  %v43 = vld [vmem:[%s1 + $0x18] sm:$0xf]
  %v44 = vld [vmem:[%s1 + $0x1c] sm:$0xf]
  %v45 = vld [vmem:[%s1 + $0x20] sm:$0xf]
  %v46 = vld [vmem:[%s1 + $0x24] sm:$0xf]
  %v47 = vld [vmem:[%s1 + $0x28] sm:$0xf]
  %v48 = vld [vmem:[%s1 + $0x2c] sm:$0xf]
  %v49 = vld [vmem:[%s1 + $0x30] sm:$0xf]
  %v50 = vld [vmem:[%s1 + $0x34] sm:$0xf]
  %v51 = vld [vmem:[%s1 + $0x38] sm:$0xf]
  %v52 = vld [vmem:[%s1 + $0x3c] sm:$0xf]
  %s53 = scalar_lea.vmem %s0, 32
  %v54 = vld [vmem:[%s53] sm:$0xf]
  %v55 = vld [vmem:[%s53 + $0x4] sm:$0xf]
  %v56 = vld [vmem:[%s53 + $0x8] sm:$0xf]
  %v57 = vld [vmem:[%s53 + $0xc] sm:$0xf]
  %v58 = vld [vmem:[%s53 + $0x10] sm:$0xf]
  %v59 = vld [vmem:[%s53 + $0x14] sm:$0xf]
  %v60 = vld [vmem:[%s53 + $0x18] sm:$0xf]
  %v61 = vld [vmem:[%s53 + $0x1c] sm:$0xf]
  %v70 = vunpack.c.l.b16 %v54
  %v71 = vunpack.c.l.b16 %v55
  %v72 = vunpack.c.l.b16 %v56
  %v73 = vunpack.c.l.b16 %v57
  %v74 = vunpack.c.l.b16 %v58
  %v75 = vunpack.c.l.b16 %v59
  %v76 = vunpack.c.l.b16 %v60
  %v77 = vunpack.c.l.b16 %v61
  %v78 = vpack.c.b16 %v71, %v70
  %v79 = vpack.c.b16 %v73, %v72
  %v80 = vpack.c.b16 %v75, %v74
  %v81 = vpack.c.b16 %v77, %v76
  %v102 = vunpack.c.l.b16 %v37
  %v103 = vunpack.c.l.b16 %v38
  %v104 = vunpack.c.l.b16 %v39
  %v105 = vunpack.c.l.b16 %v40
  %v106 = vunpack.c.l.b16 %v41
  %v107 = vunpack.c.l.b16 %v42
  %v108 = vunpack.c.l.b16 %v43
  %v109 = vunpack.c.l.b16 %v44
  %v110 = vunpack.c.l.b16 %v45
  %v111 = vunpack.c.l.b16 %v46
  %v112 = vunpack.c.l.b16 %v47
  %v113 = vunpack.c.l.b16 %v48
  %v114 = vunpack.c.l.b16 %v49
  %v115 = vunpack.c.l.b16 %v50
  %v116 = vunpack.c.l.b16 %v51
  %v117 = vunpack.c.l.b16 %v52
  %v118 = vpack.c.b16 %v103, %v102
  %v119 = vpack.c.b16 %v105, %v104
  %v120 = vpack.c.b16 %v107, %v106
  %v121 = vpack.c.b16 %v109, %v108
  %v122 = vpack.c.b16 %v111, %v110
  %v123 = vpack.c.b16 %v113, %v112
  %v124 = vpack.c.b16 %v115, %v114
  %v125 = vpack.c.b16 %v117, %v116
  %126 = vrot.lane.b32.xlu0 %v118, 127
  %v127 = vpop.permute.xlu0 %126
  %128 = vrot.lane.b32.xlu0 %v119, 127
  %v129 = vpop.permute.xlu0 %128
  %130 = vrot.lane.b32.xlu0 %v120, 127
  %v131 = vpop.permute.xlu0 %130
  %132 = vrot.lane.b32.xlu0 %v121, 127
  %v133 = vpop.permute.xlu0 %132
  %134 = vrot.lane.b32.xlu0 %v122, 127
  %v135 = vpop.permute.xlu0 %134
  %136 = vrot.lane.b32.xlu0 %v123, 127
  %v137 = vpop.permute.xlu0 %136
  %138 = vrot.lane.b32.xlu0 %v124, 127
  %v139 = vpop.permute.xlu0 %138
  %140 = vrot.lane.b32.xlu0 %v125, 127
  %v141 = vpop.permute.xlu0 %140
  %150 = vmatprep.subr.bf16.mxu0 0
  %151 = vmatpush1.bf16.msra.mxu0 %v127
  %152 = vmatprep.subr.bf16.mxu0 0
  %153 = vmatpush1.bf16.msra.mxu0 %v129
  %154 = vmatprep.subr.bf16.mxu0 0
  %155 = vmatpush1.bf16.msra.mxu0 %v131
  %156 = vmatprep.subr.bf16.mxu0 0
  %157 = vmatpush1.bf16.msra.mxu0 %v133
  %158 = vmatprep.subr.bf16.mxu0 0
  %159 = vmatpush1.bf16.msra.mxu0 %v135
  %160 = vmatprep.subr.bf16.mxu0 0
  %161 = vmatpush1.bf16.msra.mxu0 %v137
  %162 = vmatprep.subr.bf16.mxu0 0
  %163 = vmatpush1.bf16.msra.mxu0 %v139
  %164 = vmatprep.subr.bf16.mxu0 0
  %165 = vmatpush1.bf16.msra.mxu0 %v141
  %166 = vmatprep.subr.bf16.mxu0 0
  %167 = vmatpush1.bf16.msra.mxu0 0
  %168 = vmatprep.subr.bf16.mxu0 0
  %169 = vmatpush1.bf16.msra.mxu0 0
  %170 = vmatprep.subr.bf16.mxu0 0
  %171 = vmatpush1.bf16.msra.mxu0 0
  %172 = vmatprep.subr.bf16.mxu0 0
  %173 = vmatpush1.bf16.msra.mxu0 0
  %174 = vmatprep.subr.bf16.mxu0 0
  %175 = vmatpush1.bf16.msra.mxu0 0
  %176 = vmatprep.subr.bf16.mxu0 0
  %177 = vmatpush1.bf16.msra.mxu0 0
  %178 = vmatprep.subr.bf16.mxu0 0
  %179 = vmatpush1.bf16.msra.mxu0 0
  %180 = vmatprep.subr.bf16.mxu0 0
  %181 = vmatpush1.bf16.msra.mxu0 0
  %182 = vmatprep.mubr.bf16.mxu0 0
  %183 = vmatmul.mubr.bf16.gmra.mrb[0].mxu0 %v78
  %v184 = vpop.f32.mrb[0].mxu0
  %v185 = vadd.f32 0.0, %v184
  %v186 = vpop.f32.mrb[0].mxu0
  %v187 = vpop.f32.mrb[0].mxu0
  %v188 = vadd.f32 0.0, %v187
  %v189 = vpop.f32.mrb[0].mxu0
  %190 = vmatprep.mubr.bf16.mxu0 0
  %191 = vmatmul.mubr.bf16.gmra.mrb[0].mxu0 %v79
  %v192 = vpop.f32.mrb[0].mxu0
  %v193 = vadd.f32 0.0, %v192
  %v194 = vpop.f32.mrb[0].mxu0
  %v195 = vpop.f32.mrb[0].mxu0
  %v196 = vadd.f32 0.0, %v195
  %v197 = vpop.f32.mrb[0].mxu0
  %198 = vmatprep.mubr.bf16.mxu0 0
  %199 = vmatmul.mubr.bf16.gmra.mrb[0].mxu0 %v80
  %v200 = vpop.f32.mrb[0].mxu0
  %v201 = vadd.f32 0.0, %v200
  %v202 = vpop.f32.mrb[0].mxu0
  %v203 = vpop.f32.mrb[0].mxu0
  %v204 = vadd.f32 0.0, %v203
  %v205 = vpop.f32.mrb[0].mxu0
  %206 = vmatprep.mubr.bf16.mxu0 0
  %207 = vmatmul.mubr.bf16.gmra.mrb[0].mxu0 %v81
  %v208 = vpop.f32.mrb[0].mxu0
  %v209 = vadd.f32 0.0, %v208
  %v210 = vpop.f32.mrb[0].mxu0
  %v211 = vpop.f32.mrb[0].mxu0
  %v212 = vadd.f32 0.0, %v211
  %v213 = vpop.f32.mrb[0].mxu0
  %214 = vdwg.mxu0
  %v223 = vunpack.c.l.b16 %v29
  %v224 = vunpack.c.l.b16 %v30
  %v225 = vunpack.c.l.b16 %v31
  %v226 = vunpack.c.l.b16 %v32
  %v227 = vunpack.c.l.b16 %v33
  %v228 = vunpack.c.l.b16 %v34
  %v229 = vunpack.c.l.b16 %v35
  %v230 = vunpack.c.l.b16 %v36
  %v231 = vpack.c.b16 %v224, %v223
  %v232 = vpack.c.b16 %v226, %v225
  %v233 = vpack.c.b16 %v228, %v227
  %v234 = vpack.c.b16 %v230, %v229
  %247 = vmatprep.subr.bf16.mxu0 0
  %248 = vmatpush1.bf16.msra.mxu0 %v118
  %249 = vmatprep.subr.bf16.mxu0 0
  %250 = vmatpush1.bf16.msra.mxu0 %v119
  %251 = vmatprep.subr.bf16.mxu0 0
  %252 = vmatpush1.bf16.msra.mxu0 %v120
  %253 = vmatprep.subr.bf16.mxu0 0
  %254 = vmatpush1.bf16.msra.mxu0 %v121
  %255 = vmatprep.subr.bf16.mxu0 0
  %256 = vmatpush1.bf16.msra.mxu0 %v122
  %257 = vmatprep.subr.bf16.mxu0 0
  %258 = vmatpush1.bf16.msra.mxu0 %v123
  %259 = vmatprep.subr.bf16.mxu0 0
  %260 = vmatpush1.bf16.msra.mxu0 %v124
  %261 = vmatprep.subr.bf16.mxu0 0
  %262 = vmatpush1.bf16.msra.mxu0 %v125
  %263 = vmatprep.subr.bf16.mxu0 0
  %264 = vmatpush1.bf16.msra.mxu0 0
  %265 = vmatprep.subr.bf16.mxu0 0
  %266 = vmatpush1.bf16.msra.mxu0 0
  %267 = vmatprep.subr.bf16.mxu0 0
  %268 = vmatpush1.bf16.msra.mxu0 0
  %269 = vmatprep.subr.bf16.mxu0 0
  %270 = vmatpush1.bf16.msra.mxu0 0
  %271 = vmatprep.subr.bf16.mxu0 0
  %272 = vmatpush1.bf16.msra.mxu0 0
  %273 = vmatprep.subr.bf16.mxu0 0
  %274 = vmatpush1.bf16.msra.mxu0 0
  %275 = vmatprep.subr.bf16.mxu0 0
  %276 = vmatpush1.bf16.msra.mxu0 0
  %277 = vmatprep.subr.bf16.mxu0 0
  %278 = vmatpush1.bf16.msra.mxu0 0
  %279 = vmatprep.mubr.bf16.mxu0 0
  %280 = vmatmul.mubr.bf16.gmra.mrb[0].mxu0 %v231
  %v281 = vpop.f32.mrb[0].mxu0
  %v282 = vadd.f32 %v185, %v281
  %v283 = vpop.f32.mrb[0].mxu0
  %v284 = vpop.f32.mrb[0].mxu0
  %v285 = vadd.f32 %v188, %v284
  %v286 = vpop.f32.mrb[0].mxu0
  %287 = vmatprep.mubr.bf16.mxu0 0
  %288 = vmatmul.mubr.bf16.gmra.mrb[0].mxu0 %v232
  %v289 = vpop.f32.mrb[0].mxu0
  %v290 = vadd.f32 %v193, %v289
  %v291 = vpop.f32.mrb[0].mxu0
  %v292 = vpop.f32.mrb[0].mxu0
  %v293 = vadd.f32 %v196, %v292
  %v294 = vpop.f32.mrb[0].mxu0
  %295 = vmatprep.mubr.bf16.mxu0 0
  %296 = vmatmul.mubr.bf16.gmra.mrb[0].mxu0 %v233
  %v297 = vpop.f32.mrb[0].mxu0
  %v298 = vadd.f32 %v201, %v297
  %v299 = vpop.f32.mrb[0].mxu0
  %v300 = vpop.f32.mrb[0].mxu0
  %v301 = vadd.f32 %v204, %v300
  %v302 = vpop.f32.mrb[0].mxu0
  %303 = vmatprep.mubr.bf16.mxu0 0
  %304 = vmatmul.mubr.bf16.gmra.mrb[0].mxu0 %v234
  %v305 = vpop.f32.mrb[0].mxu0
  %v306 = vadd.f32 %v209, %v305
  %v307 = vpop.f32.mrb[0].mxu0
  %v308 = vpop.f32.mrb[0].mxu0
  %v309 = vadd.f32 %v212, %v308
  %v310 = vpop.f32.mrb[0].mxu0
  %311 = vdwg.mxu0
  %s312 = scalar_lea.vmem %s0, 64
  %v313 = vld [vmem:[%s312] sm:$0xf]
  %v314 = vld [vmem:[%s312 + $0x4] sm:$0xf]
  %v315 = vld [vmem:[%s312 + $0x8] sm:$0xf]
  %v316 = vld [vmem:[%s312 + $0xc] sm:$0xf]
  %v317 = vld [vmem:[%s312 + $0x10] sm:$0xf]
  %v318 = vld [vmem:[%s312 + $0x14] sm:$0xf]
  %v319 = vld [vmem:[%s312 + $0x18] sm:$0xf]
  %v320 = vld [vmem:[%s312 + $0x1c] sm:$0xf]
  %v329 = vunpack.c.l.b16 %v313
  %v330 = vunpack.c.l.b16 %v314
  %v331 = vunpack.c.l.b16 %v315
  %v332 = vunpack.c.l.b16 %v316
  %v333 = vunpack.c.l.b16 %v317
  %v334 = vunpack.c.l.b16 %v318
  %v335 = vunpack.c.l.b16 %v319
  %v336 = vunpack.c.l.b16 %v320
  %v337 = vpack.c.b16 %v330, %v329
  %v338 = vpack.c.b16 %v332, %v331
  %v339 = vpack.c.b16 %v334, %v333
  %v340 = vpack.c.b16 %v336, %v335
  %345 = vrot.lane.b32.xlu0 %v118, 123
  %v346 = vpop.permute.xlu0 %345
  %347 = vrot.lane.b32.xlu0 %v119, 123
  %v348 = vpop.permute.xlu0 %347
  %349 = vrot.lane.b32.xlu0 %v120, 123
  %v350 = vpop.permute.xlu0 %349
  %351 = vrot.lane.b32.xlu0 %v121, 123
  %v352 = vpop.permute.xlu0 %351
  %353 = vrot.lane.b32.xlu0 %v122, 123
  %v354 = vpop.permute.xlu0 %353
  %355 = vrot.lane.b32.xlu0 %v123, 123
  %v356 = vpop.permute.xlu0 %355
  %357 = vrot.lane.b32.xlu0 %v124, 123
  %v358 = vpop.permute.xlu0 %357
  %359 = vrot.lane.b32.xlu0 %v125, 123
  %v360 = vpop.permute.xlu0 %359
  %369 = vmatprep.subr.bf16.mxu0 0
  %370 = vmatpush1.bf16.msra.mxu0 %v346
  %371 = vmatprep.subr.bf16.mxu0 0
  %372 = vmatpush1.bf16.msra.mxu0 %v348
  %373 = vmatprep.subr.bf16.mxu0 0
  %374 = vmatpush1.bf16.msra.mxu0 %v350
  %375 = vmatprep.subr.bf16.mxu0 0
  %376 = vmatpush1.bf16.msra.mxu0 %v352
  %377 = vmatprep.subr.bf16.mxu0 0
  %378 = vmatpush1.bf16.msra.mxu0 %v354
  %379 = vmatprep.subr.bf16.mxu0 0
  %380 = vmatpush1.bf16.msra.mxu0 %v356
  %381 = vmatprep.subr.bf16.mxu0 0
  %382 = vmatpush1.bf16.msra.mxu0 %v358
  %383 = vmatprep.subr.bf16.mxu0 0
  %384 = vmatpush1.bf16.msra.mxu0 %v360
  %385 = vmatprep.subr.bf16.mxu0 0
  %386 = vmatpush1.bf16.msra.mxu0 0
  %387 = vmatprep.subr.bf16.mxu0 0
  %388 = vmatpush1.bf16.msra.mxu0 0
  %389 = vmatprep.subr.bf16.mxu0 0
  %390 = vmatpush1.bf16.msra.mxu0 0
  %391 = vmatprep.subr.bf16.mxu0 0
  %392 = vmatpush1.bf16.msra.mxu0 0
  %393 = vmatprep.subr.bf16.mxu0 0
  %394 = vmatpush1.bf16.msra.mxu0 0
  %395 = vmatprep.subr.bf16.mxu0 0
  %396 = vmatpush1.bf16.msra.mxu0 0
  %397 = vmatprep.subr.bf16.mxu0 0
  %398 = vmatpush1.bf16.msra.mxu0 0
  %399 = vmatprep.subr.bf16.mxu0 0
  %400 = vmatpush1.bf16.msra.mxu0 0
  %401 = vmatprep.mubr.bf16.mxu0 0
  %402 = vmatmul.mubr.bf16.gmra.mrb[0].mxu0 %v337
  %v403 = vpop.f32.mrb[0].mxu0
  %v404 = vadd.f32 0.0, %v403
  %v405 = vpop.f32.mrb[0].mxu0
  %v406 = vpop.f32.mrb[0].mxu0
  %v407 = vadd.f32 0.0, %v406
  %v408 = vpop.f32.mrb[0].mxu0
  %409 = vmatprep.mubr.bf16.mxu0 0
  %410 = vmatmul.mubr.bf16.gmra.mrb[0].mxu0 %v338
  %v411 = vpop.f32.mrb[0].mxu0
  %v412 = vadd.f32 0.0, %v411
  %v413 = vpop.f32.mrb[0].mxu0
  %v414 = vpop.f32.mrb[0].mxu0
  %v415 = vadd.f32 0.0, %v414
  %v416 = vpop.f32.mrb[0].mxu0
  %417 = vmatprep.mubr.bf16.mxu0 0
  %418 = vmatmul.mubr.bf16.gmra.mrb[0].mxu0 %v339
  %v419 = vpop.f32.mrb[0].mxu0
  %v420 = vadd.f32 0.0, %v419
  %v421 = vpop.f32.mrb[0].mxu0
  %v422 = vpop.f32.mrb[0].mxu0
  %v423 = vadd.f32 0.0, %v422
  %v424 = vpop.f32.mrb[0].mxu0
  %425 = vmatprep.mubr.bf16.mxu0 0
  %426 = vmatmul.mubr.bf16.gmra.mrb[0].mxu0 %v340
  %v427 = vpop.f32.mrb[0].mxu0
  %v428 = vadd.f32 0.0, %v427
  %v429 = vpop.f32.mrb[0].mxu0
  %v430 = vpop.f32.mrb[0].mxu0
  %v431 = vadd.f32 0.0, %v430
  %v432 = vpop.f32.mrb[0].mxu0
  %433 = vdwg.mxu0
  %v434 = vadd.f32 %v282, %v404
  %v435 = vadd.f32 %v285, %v407
  %v436 = vadd.f32 %v290, %v412
  %v437 = vadd.f32 %v293, %v415
  %v438 = vadd.f32 %v298, %v420
  %v439 = vadd.f32 %v301, %v423
  %v440 = vadd.f32 %v306, %v428
  %v441 = vadd.f32 %v309, %v431
  %s442 = scalar_lea.vmem %s0, 96
  %v443 = vld [vmem:[%s442] sm:$0xf]
  %v444 = vld [vmem:[%s442 + $0x4] sm:$0xf]
  %v445 = vld [vmem:[%s442 + $0x8] sm:$0xf]
  %v446 = vld [vmem:[%s442 + $0xc] sm:$0xf]
  %v447 = vld [vmem:[%s442 + $0x10] sm:$0xf]
  %v448 = vld [vmem:[%s442 + $0x14] sm:$0xf]
  %v449 = vld [vmem:[%s442 + $0x18] sm:$0xf]
  %v450 = vld [vmem:[%s442 + $0x1c] sm:$0xf]
  %v459 = vunpack.c.l.b16 %v443
  %v460 = vunpack.c.l.b16 %v444
  %v461 = vunpack.c.l.b16 %v445
  %v462 = vunpack.c.l.b16 %v446
  %v463 = vunpack.c.l.b16 %v447
  %v464 = vunpack.c.l.b16 %v448
  %v465 = vunpack.c.l.b16 %v449
  %v466 = vunpack.c.l.b16 %v450
  %v467 = vpack.c.b16 %v460, %v459
  %v468 = vpack.c.b16 %v462, %v461
  %v469 = vpack.c.b16 %v464, %v463
  %v470 = vpack.c.b16 %v466, %v465
  %475 = vrot.lane.b32.xlu0 %v118, 122
  %v476 = vpop.permute.xlu0 %475
  %477 = vrot.lane.b32.xlu0 %v119, 122
  %v478 = vpop.permute.xlu0 %477
  %479 = vrot.lane.b32.xlu0 %v120, 122
  %v480 = vpop.permute.xlu0 %479
  %481 = vrot.lane.b32.xlu0 %v121, 122
  %v482 = vpop.permute.xlu0 %481
  %483 = vrot.lane.b32.xlu0 %v122, 122
  %v484 = vpop.permute.xlu0 %483
  %485 = vrot.lane.b32.xlu0 %v123, 122
  %v486 = vpop.permute.xlu0 %485
  %487 = vrot.lane.b32.xlu0 %v124, 122
  %v488 = vpop.permute.xlu0 %487
  %489 = vrot.lane.b32.xlu0 %v125, 122
  %v490 = vpop.permute.xlu0 %489
  %499 = vmatprep.subr.bf16.mxu0 0
  %500 = vmatpush1.bf16.msra.mxu0 %v476
  %501 = vmatprep.subr.bf16.mxu0 0
  %502 = vmatpush1.bf16.msra.mxu0 %v478
  %503 = vmatprep.subr.bf16.mxu0 0
  %504 = vmatpush1.bf16.msra.mxu0 %v480
  %505 = vmatprep.subr.bf16.mxu0 0
  %506 = vmatpush1.bf16.msra.mxu0 %v482
  %507 = vmatprep.subr.bf16.mxu0 0
  %508 = vmatpush1.bf16.msra.mxu0 %v484
  %509 = vmatprep.subr.bf16.mxu0 0
  %510 = vmatpush1.bf16.msra.mxu0 %v486
  %511 = vmatprep.subr.bf16.mxu0 0
  %512 = vmatpush1.bf16.msra.mxu0 %v488
  %513 = vmatprep.subr.bf16.mxu0 0
  %514 = vmatpush1.bf16.msra.mxu0 %v490
  %515 = vmatprep.subr.bf16.mxu0 0
  %516 = vmatpush1.bf16.msra.mxu0 0
  %517 = vmatprep.subr.bf16.mxu0 0
  %518 = vmatpush1.bf16.msra.mxu0 0
  %519 = vmatprep.subr.bf16.mxu0 0
  %520 = vmatpush1.bf16.msra.mxu0 0
  %521 = vmatprep.subr.bf16.mxu0 0
  %522 = vmatpush1.bf16.msra.mxu0 0
  %523 = vmatprep.subr.bf16.mxu0 0
  %524 = vmatpush1.bf16.msra.mxu0 0
  %525 = vmatprep.subr.bf16.mxu0 0
  %526 = vmatpush1.bf16.msra.mxu0 0
  %527 = vmatprep.subr.bf16.mxu0 0
  %528 = vmatpush1.bf16.msra.mxu0 0
  %529 = vmatprep.subr.bf16.mxu0 0
  %530 = vmatpush1.bf16.msra.mxu0 0
  %531 = vmatprep.mubr.bf16.mxu0 0
  %532 = vmatmul.mubr.bf16.gmra.mrb[0].mxu0 %v467
  %v533 = vpop.f32.mrb[0].mxu0
  %v534 = vadd.f32 0.0, %v533
  %v535 = vpop.f32.mrb[0].mxu0
  %v536 = vpop.f32.mrb[0].mxu0
  %v537 = vadd.f32 0.0, %v536
  %v538 = vpop.f32.mrb[0].mxu0
  %539 = vmatprep.mubr.bf16.mxu0 0
  %540 = vmatmul.mubr.bf16.gmra.mrb[0].mxu0 %v468
  %v541 = vpop.f32.mrb[0].mxu0
  %v542 = vadd.f32 0.0, %v541
  %v543 = vpop.f32.mrb[0].mxu0
  %v544 = vpop.f32.mrb[0].mxu0
  %v545 = vadd.f32 0.0, %v544
  %v546 = vpop.f32.mrb[0].mxu0
  %547 = vmatprep.mubr.bf16.mxu0 0
  %548 = vmatmul.mubr.bf16.gmra.mrb[0].mxu0 %v469
  %v549 = vpop.f32.mrb[0].mxu0
  %v550 = vadd.f32 0.0, %v549
  %v551 = vpop.f32.mrb[0].mxu0
  %v552 = vpop.f32.mrb[0].mxu0
  %v553 = vadd.f32 0.0, %v552
  %v554 = vpop.f32.mrb[0].mxu0
  %555 = vmatprep.mubr.bf16.mxu0 0
  %556 = vmatmul.mubr.bf16.gmra.mrb[0].mxu0 %v470
  %v557 = vpop.f32.mrb[0].mxu0
  %v558 = vadd.f32 0.0, %v557
  %v559 = vpop.f32.mrb[0].mxu0
  %v560 = vpop.f32.mrb[0].mxu0
  %v561 = vadd.f32 0.0, %v560
  %v562 = vpop.f32.mrb[0].mxu0
  %563 = vdwg.mxu0
  %v564 = vadd.f32 %v434, %v534
  %v565 = vadd.f32 %v435, %v537
  %v566 = vadd.f32 %v436, %v542
  %v567 = vadd.f32 %v437, %v545
  %v568 = vadd.f32 %v438, %v550
  %v569 = vadd.f32 %v439, %v553
  %v570 = vadd.f32 %v440, %v558
  %v571 = vadd.f32 %v441, %v561
  %v572 = vld [vmem:[%s2] sm:$0x1]
  %v574 = vlaneseq
  %v575 = vshrl.u32 %v574, 7
  %v576 = vsub.s32 0, %v575
  %v577 = vrot.slane %v572, %v576
  %v579 = vmul.f32 %v564, %v577
  %v580 = vmul.f32 %v565, %v577
  %v581 = vmul.f32 %v566, %v577
  %v582 = vmul.f32 %v567, %v577
  %v583 = vmul.f32 %v568, %v577
  %v584 = vmul.f32 %v569, %v577
  %v585 = vmul.f32 %v570, %v577
  %v586 = vmul.f32 %v571, %v577
  %vm587 = vcmask 359424
  %v588 = vsel %vm587, %v579, 0.0
  %589 = vadd.xlane.f32.xlu0 %v588
  %v590 = vpop.xlane.xlu0 %589
  %v591 = vsel %vm587, %v580, 0.0
  %592 = vadd.xlane.f32.xlu0 %v591
  %v593 = vpop.xlane.xlu0 %592
  %v594 = vsel %vm587, %v581, 0.0
  %595 = vadd.xlane.f32.xlu0 %v594
  %v596 = vpop.xlane.xlu0 %595
  %v597 = vsel %vm587, %v582, 0.0
  %598 = vadd.xlane.f32.xlu0 %v597
  %v599 = vpop.xlane.xlu0 %598
  %v600 = vsel %vm587, %v583, 0.0
  %601 = vadd.xlane.f32.xlu0 %v600
  %v602 = vpop.xlane.xlu0 %601
  %v603 = vsel %vm587, %v584, 0.0
  %604 = vadd.xlane.f32.xlu0 %v603
  %v605 = vpop.xlane.xlu0 %604
  %v606 = vsel %vm587, %v585, 0.0
  %607 = vadd.xlane.f32.xlu0 %v606
  %v608 = vpop.xlane.xlu0 %607
  %v609 = vsel %vm587, %v586, 0.0
  %610 = vadd.xlane.f32.xlu0 %v609
  %v611 = vpop.xlane.xlu0 %610
  %v612 = vrcp.pop 32.0
  %v613 = vmul.f32 %v590, %v612
  %v614 = vmul.f32 %v593, %v612
  %v615 = vmul.f32 %v596, %v612
  %v616 = vmul.f32 %v599, %v612
  %v617 = vmul.f32 %v602, %v612
  %v618 = vmul.f32 %v605, %v612
  %v619 = vmul.f32 %v608, %v612
  %v620 = vmul.f32 %v611, %v612
  %v621 = vmul.f32 %v564, %v564
  %v622 = vmul.f32 %v565, %v565
  %v623 = vmul.f32 %v566, %v566
  %v624 = vmul.f32 %v567, %v567
  %v625 = vmul.f32 %v568, %v568
  %v626 = vmul.f32 %v569, %v569
  %v627 = vmul.f32 %v570, %v570
  %v628 = vmul.f32 %v571, %v571
  %v629 = vmul.f32 %v621, %v577
  %v630 = vmul.f32 %v622, %v577
  %v631 = vmul.f32 %v623, %v577
  %v632 = vmul.f32 %v624, %v577
  %v633 = vmul.f32 %v625, %v577
  %v634 = vmul.f32 %v626, %v577
  %v635 = vmul.f32 %v627, %v577
  %v636 = vmul.f32 %v628, %v577
  %v637 = vsel %vm587, %v629, 0.0
  %638 = vadd.xlane.f32.xlu0 %v637
  %v639 = vpop.xlane.xlu0 %638
  %v640 = vsel %vm587, %v630, 0.0
  %641 = vadd.xlane.f32.xlu0 %v640
  %v642 = vpop.xlane.xlu0 %641
  %v643 = vsel %vm587, %v631, 0.0
  %644 = vadd.xlane.f32.xlu0 %v643
  %v645 = vpop.xlane.xlu0 %644
  %v646 = vsel %vm587, %v632, 0.0
  %647 = vadd.xlane.f32.xlu0 %v646
  %v648 = vpop.xlane.xlu0 %647
  %v649 = vsel %vm587, %v633, 0.0
  %650 = vadd.xlane.f32.xlu0 %v649
  %v651 = vpop.xlane.xlu0 %650
  %v652 = vsel %vm587, %v634, 0.0
  %653 = vadd.xlane.f32.xlu0 %v652
  %v654 = vpop.xlane.xlu0 %653
  %v655 = vsel %vm587, %v635, 0.0
  %656 = vadd.xlane.f32.xlu0 %v655
  %v657 = vpop.xlane.xlu0 %656
  %v658 = vsel %vm587, %v636, 0.0
  %659 = vadd.xlane.f32.xlu0 %v658
  %v660 = vpop.xlane.xlu0 %659
  %v661 = vmul.f32 %v639, %v612
  %v662 = vmul.f32 %v642, %v612
  %v663 = vmul.f32 %v645, %v612
  %v664 = vmul.f32 %v648, %v612
  %v665 = vmul.f32 %v651, %v612
  %v666 = vmul.f32 %v654, %v612
  %v667 = vmul.f32 %v657, %v612
  %v668 = vmul.f32 %v660, %v612
  %v669 = vmul.f32 %v613, %v613
  %v670 = vmul.f32 %v614, %v614
  %v671 = vmul.f32 %v615, %v615
  %v672 = vmul.f32 %v616, %v616
  %v673 = vmul.f32 %v617, %v617
  %v674 = vmul.f32 %v618, %v618
  %v675 = vmul.f32 %v619, %v619
  %v676 = vmul.f32 %v620, %v620
  %v677 = vsub.f32 %v661, %v669
  %v678 = vsub.f32 %v662, %v670
  %v679 = vsub.f32 %v663, %v671
  %v680 = vsub.f32 %v664, %v672
  %v681 = vsub.f32 %v665, %v673
  %v682 = vsub.f32 %v666, %v674
  %v683 = vsub.f32 %v667, %v675
  %v684 = vsub.f32 %v668, %v676
  %v685 = vsub.f32 %v564, %v613
  %v686 = vsub.f32 %v565, %v614
  %v687 = vsub.f32 %v566, %v615
  %v688 = vsub.f32 %v567, %v616
  %v689 = vsub.f32 %v568, %v617
  %v690 = vsub.f32 %v569, %v618
  %v691 = vsub.f32 %v570, %v619
  %v692 = vsub.f32 %v571, %v620
  %v693 = vadd.f32 %v677, 1e-05
  %v694 = vadd.f32 %v678, 1e-05
  %v695 = vadd.f32 %v679, 1e-05
  %v696 = vadd.f32 %v680, 1e-05
  %v697 = vadd.f32 %v681, 1e-05
  %v698 = vadd.f32 %v682, 1e-05
  %v699 = vadd.f32 %v683, 1e-05
  %v700 = vadd.f32 %v684, 1e-05
  %v701 = vrsqrt.pop %v693
  %v702 = vrsqrt.pop %v694
  %v703 = vrsqrt.pop %v695
  %v704 = vrsqrt.pop %v696
  %v705 = vrsqrt.pop %v697
  %v706 = vrsqrt.pop %v698
  %v707 = vrsqrt.pop %v699
  %v708 = vrsqrt.pop %v700
  %v709 = vmul.f32 %v685, %v701
  %v710 = vmul.f32 %v686, %v702
  %v711 = vmul.f32 %v687, %v703
  %v712 = vmul.f32 %v688, %v704
  %v713 = vmul.f32 %v689, %v705
  %v714 = vmul.f32 %v690, %v706
  %v715 = vmul.f32 %v691, %v707
  %v716 = vmul.f32 %v692, %v708
  %v717 = vld [vmem:[%s3] sm:$0xff]
  %v718 = vld [vmem:[%s3 + $0x8] sm:$0xff]
  %v719 = vld [vmem:[%s3 + $0x10] sm:$0xff]
  %v720 = vld [vmem:[%s3 + $0x18] sm:$0xff]
  %v721 = vld [vmem:[%s3 + $0x20] sm:$0xff]
  %v722 = vld [vmem:[%s3 + $0x28] sm:$0xff]
  %v723 = vld [vmem:[%s3 + $0x30] sm:$0xff]
  %v724 = vld [vmem:[%s3 + $0x38] sm:$0xff]
  %726 = vset.pattern.permute.xlu0 0
  %727 = vperm.xlu0 %726, %v717
  %v728 = vpop.permute.xlu0 %727
  %731 = vset.pattern.permute.xlu0 0
  %732 = vperm.xlu0 %731, %v718
  %v733 = vpop.permute.xlu0 %732
  %736 = vset.pattern.permute.xlu0 0
  %737 = vperm.xlu0 %736, %v719
  %v738 = vpop.permute.xlu0 %737
  %741 = vset.pattern.permute.xlu0 0
  %742 = vperm.xlu0 %741, %v720
  %v743 = vpop.permute.xlu0 %742
  %746 = vset.pattern.permute.xlu0 0
  %747 = vperm.xlu0 %746, %v721
  %v748 = vpop.permute.xlu0 %747
  %751 = vset.pattern.permute.xlu0 0
  %752 = vperm.xlu0 %751, %v722
  %v753 = vpop.permute.xlu0 %752
  %756 = vset.pattern.permute.xlu0 0
  %757 = vperm.xlu0 %756, %v723
  %v758 = vpop.permute.xlu0 %757
  %761 = vset.pattern.permute.xlu0 0
  %762 = vperm.xlu0 %761, %v724
  %v763 = vpop.permute.xlu0 %762
  %v765 = vmul.f32 %v709, %v728
  %v766 = vmul.f32 %v710, %v733
  %v767 = vmul.f32 %v711, %v738
  %v768 = vmul.f32 %v712, %v743
  %v769 = vmul.f32 %v713, %v748
  %v770 = vmul.f32 %v714, %v753
  %v771 = vmul.f32 %v715, %v758
  %v772 = vmul.f32 %v716, %v763
  %v773 = vld [vmem:[%s4] sm:$0xff]
  %v774 = vld [vmem:[%s4 + $0x8] sm:$0xff]
  %v775 = vld [vmem:[%s4 + $0x10] sm:$0xff]
  %v776 = vld [vmem:[%s4 + $0x18] sm:$0xff]
  %v777 = vld [vmem:[%s4 + $0x20] sm:$0xff]
  %v778 = vld [vmem:[%s4 + $0x28] sm:$0xff]
  %v779 = vld [vmem:[%s4 + $0x30] sm:$0xff]
  %v780 = vld [vmem:[%s4 + $0x38] sm:$0xff]
  %782 = vset.pattern.permute.xlu0 0
  %783 = vperm.xlu0 %782, %v773
  %v784 = vpop.permute.xlu0 %783
  %787 = vset.pattern.permute.xlu0 0
  %788 = vperm.xlu0 %787, %v774
  %v789 = vpop.permute.xlu0 %788
  %792 = vset.pattern.permute.xlu0 0
  %793 = vperm.xlu0 %792, %v775
  %v794 = vpop.permute.xlu0 %793
  %797 = vset.pattern.permute.xlu0 0
  %798 = vperm.xlu0 %797, %v776
  %v799 = vpop.permute.xlu0 %798
  %802 = vset.pattern.permute.xlu0 0
  %803 = vperm.xlu0 %802, %v777
  %v804 = vpop.permute.xlu0 %803
  %807 = vset.pattern.permute.xlu0 0
  %808 = vperm.xlu0 %807, %v778
  %v809 = vpop.permute.xlu0 %808
  %812 = vset.pattern.permute.xlu0 0
  %813 = vperm.xlu0 %812, %v779
  %v814 = vpop.permute.xlu0 %813
  %817 = vset.pattern.permute.xlu0 0
  %818 = vperm.xlu0 %817, %v780
  %v819 = vpop.permute.xlu0 %818
  %v821 = vadd.f32 %v765, %v784
  %v822 = vadd.f32 %v766, %v789
  %v823 = vadd.f32 %v767, %v794
  %v824 = vadd.f32 %v768, %v799
  %v825 = vadd.f32 %v769, %v804
  %v826 = vadd.f32 %v770, %v809
  %v827 = vadd.f32 %v771, %v814
  %v828 = vadd.f32 %v772, %v819
  %vm829 = vcmp.gt.f32.partialorder %v821, 0.0
  %vm830 = vcmp.gt.f32.partialorder %v822, 0.0
  %vm831 = vcmp.gt.f32.partialorder %v823, 0.0
  %vm832 = vcmp.gt.f32.partialorder %v824, 0.0
  %vm833 = vcmp.gt.f32.partialorder %v825, 0.0
  %vm834 = vcmp.gt.f32.partialorder %v826, 0.0
  %vm835 = vcmp.gt.f32.partialorder %v827, 0.0
  %vm836 = vcmp.gt.f32.partialorder %v828, 0.0
  %v837 = vmul.f32 %v821, 0.2
  %v838 = vmul.f32 %v822, 0.2
  %v839 = vmul.f32 %v823, 0.2
  %v840 = vmul.f32 %v824, 0.2
  %v841 = vmul.f32 %v825, 0.2
  %v842 = vmul.f32 %v826, 0.2
  %v843 = vmul.f32 %v827, 0.2
  %v844 = vmul.f32 %v828, 0.2
  %v845 = vsel %vm829, %v821, %v837
  %v846 = vsel %vm830, %v822, %v838
  %v847 = vsel %vm831, %v823, %v839
  %v848 = vsel %vm832, %v824, %v840
  %v849 = vsel %vm833, %v825, %v841
  %v850 = vsel %vm834, %v826, %v842
  %v851 = vsel %vm835, %v827, %v843
  %v852 = vsel %vm836, %v828, %v844
  %853 = vst.msk [vmem:[#allocation2] sm:$0xff] %vm587, %v845
  %854 = vst.msk [vmem:[#allocation2 + $0x8] sm:$0xff] %vm587, %v846
  %855 = vst.msk [vmem:[#allocation2 + $0x10] sm:$0xff] %vm587, %v847
  %856 = vst.msk [vmem:[#allocation2 + $0x18] sm:$0xff] %vm587, %v848
  %857 = vst.msk [vmem:[#allocation2 + $0x20] sm:$0xff] %vm587, %v849
  %858 = vst.msk [vmem:[#allocation2 + $0x28] sm:$0xff] %vm587, %v850
  %859 = vst.msk [vmem:[#allocation2 + $0x30] sm:$0xff] %vm587, %v851
  %860 = vst.msk [vmem:[#allocation2 + $0x38] sm:$0xff] %vm587, %v852
  %v861 = vlaneseq
  %v862 = vand.u32 %v861, 127
  %v863 = vld [vmem:[#allocation2] sm:$0xff]
  %v864 = vld [vmem:[#allocation2 + $0x8] sm:$0xff]
  %v865 = vld [vmem:[#allocation2 + $0x10] sm:$0xff]
  %v866 = vld [vmem:[#allocation2 + $0x18] sm:$0xff]
  %v867 = vld [vmem:[#allocation2 + $0x20] sm:$0xff]
  %v868 = vld [vmem:[#allocation2 + $0x28] sm:$0xff]
  %v869 = vld [vmem:[#allocation2 + $0x30] sm:$0xff]
  %v870 = vld [vmem:[#allocation2 + $0x38] sm:$0xff]
  %v871 = vld [vmem:[%s5] sm:$0xff]
  %v872 = vld [vmem:[%s5 + $0x8] sm:$0xff]
  %v873 = vld [vmem:[%s5 + $0x10] sm:$0xff]
  %v874 = vld [vmem:[%s5 + $0x18] sm:$0xff]
  %v875 = vld [vmem:[%s5 + $0x20] sm:$0xff]
  %v876 = vld [vmem:[%s5 + $0x28] sm:$0xff]
  %v877 = vld [vmem:[%s5 + $0x30] sm:$0xff]
  %v878 = vld [vmem:[%s5 + $0x38] sm:$0xff]
  %v879 = vmul.f32 %v863, %v871
  %v880 = vmul.f32 %v864, %v872
  %v881 = vmul.f32 %v865, %v873
  %v882 = vmul.f32 %v866, %v874
  %v883 = vmul.f32 %v867, %v875
  %v884 = vmul.f32 %v868, %v876
  %v885 = vmul.f32 %v869, %v877
  %v886 = vmul.f32 %v870, %v878
  %v887 = vadd.f32 %v879, 0.0
  %v888 = vadd.f32 %v880, 0.0
  %v889 = vadd.f32 %v881, 0.0
  %v890 = vadd.f32 %v882, 0.0
  %v891 = vadd.f32 %v883, 0.0
  %v892 = vadd.f32 %v884, 0.0
  %v893 = vadd.f32 %v885, 0.0
  %v894 = vadd.f32 %v886, 0.0
  %903 = vrot.lane.b32.xlu0 %v871, 1
  %v904 = vpop.permute.xlu0 %903
  %905 = vrot.lane.b32.xlu0 %v872, 1
  %v906 = vpop.permute.xlu0 %905
  %907 = vrot.lane.b32.xlu0 %v873, 1
  %v908 = vpop.permute.xlu0 %907
  %909 = vrot.lane.b32.xlu0 %v874, 1
  %v910 = vpop.permute.xlu0 %909
  %911 = vrot.lane.b32.xlu0 %v875, 1
  %v912 = vpop.permute.xlu0 %911
  %913 = vrot.lane.b32.xlu0 %v876, 1
  %v914 = vpop.permute.xlu0 %913
  %915 = vrot.lane.b32.xlu0 %v877, 1
  %v916 = vpop.permute.xlu0 %915
  %917 = vrot.lane.b32.xlu0 %v878, 1
  %v918 = vpop.permute.xlu0 %917
  %v927 = vmul.f32 %v863, %v904
  %v928 = vmul.f32 %v864, %v906
  %v929 = vmul.f32 %v865, %v908
  %v930 = vmul.f32 %v866, %v910
  %v931 = vmul.f32 %v867, %v912
  %v932 = vmul.f32 %v868, %v914
  %v933 = vmul.f32 %v869, %v916
  %v934 = vmul.f32 %v870, %v918
  %943 = vrot.lane.b32.xlu0 %v927, 123
  %v944 = vpop.permute.xlu0 %943
  %945 = vrot.lane.b32.xlu0 %v928, 123
  %v946 = vpop.permute.xlu0 %945
  %947 = vrot.lane.b32.xlu0 %v929, 123
  %v948 = vpop.permute.xlu0 %947
  %949 = vrot.lane.b32.xlu0 %v930, 123
  %v950 = vpop.permute.xlu0 %949
  %951 = vrot.lane.b32.xlu0 %v931, 123
  %v952 = vpop.permute.xlu0 %951
  %953 = vrot.lane.b32.xlu0 %v932, 123
  %v954 = vpop.permute.xlu0 %953
  %955 = vrot.lane.b32.xlu0 %v933, 123
  %v956 = vpop.permute.xlu0 %955
  %957 = vrot.lane.b32.xlu0 %v934, 123
  %v958 = vpop.permute.xlu0 %957
  %v967 = vadd.f32 %v887, %v944
  %v968 = vadd.f32 %v888, %v946
  %v969 = vadd.f32 %v889, %v948
  %v970 = vadd.f32 %v890, %v950
  %v971 = vadd.f32 %v891, %v952
  %v972 = vadd.f32 %v892, %v954
  %v973 = vadd.f32 %v893, %v956
  %v974 = vadd.f32 %v894, %v958
  %975 = vrot.lane.b32.xlu0 %v871, 2
  %v976 = vpop.permute.xlu0 %975
  %977 = vrot.lane.b32.xlu0 %v872, 2
  %v978 = vpop.permute.xlu0 %977
  %979 = vrot.lane.b32.xlu0 %v873, 2
  %v980 = vpop.permute.xlu0 %979
  %981 = vrot.lane.b32.xlu0 %v874, 2
  %v982 = vpop.permute.xlu0 %981
  %983 = vrot.lane.b32.xlu0 %v875, 2
  %v984 = vpop.permute.xlu0 %983
  %985 = vrot.lane.b32.xlu0 %v876, 2
  %v986 = vpop.permute.xlu0 %985
  %987 = vrot.lane.b32.xlu0 %v877, 2
  %v988 = vpop.permute.xlu0 %987
  %989 = vrot.lane.b32.xlu0 %v878, 2
  %v990 = vpop.permute.xlu0 %989
  %v999 = vmul.f32 %v863, %v976
  %v1000 = vmul.f32 %v864, %v978
  %v1001 = vmul.f32 %v865, %v980
  %v1002 = vmul.f32 %v866, %v982
  %v1003 = vmul.f32 %v867, %v984
  %v1004 = vmul.f32 %v868, %v986
  %v1005 = vmul.f32 %v869, %v988
  %v1006 = vmul.f32 %v870, %v990
  %1015 = vrot.lane.b32.xlu0 %v999, 118
  %v1016 = vpop.permute.xlu0 %1015
  %1017 = vrot.lane.b32.xlu0 %v1000, 118
  %v1018 = vpop.permute.xlu0 %1017
  %1019 = vrot.lane.b32.xlu0 %v1001, 118
  %v1020 = vpop.permute.xlu0 %1019
  %1021 = vrot.lane.b32.xlu0 %v1002, 118
  %v1022 = vpop.permute.xlu0 %1021
  %1023 = vrot.lane.b32.xlu0 %v1003, 118
  %v1024 = vpop.permute.xlu0 %1023
  %1025 = vrot.lane.b32.xlu0 %v1004, 118
  %v1026 = vpop.permute.xlu0 %1025
  %1027 = vrot.lane.b32.xlu0 %v1005, 118
  %v1028 = vpop.permute.xlu0 %1027
  %1029 = vrot.lane.b32.xlu0 %v1006, 118
  %v1030 = vpop.permute.xlu0 %1029
  %v1039 = vadd.f32 %v967, %v1016
  %v1040 = vadd.f32 %v968, %v1018
  %v1041 = vadd.f32 %v969, %v1020
  %v1042 = vadd.f32 %v970, %v1022
  %v1043 = vadd.f32 %v971, %v1024
  %v1044 = vadd.f32 %v972, %v1026
  %v1045 = vadd.f32 %v973, %v1028
  %v1046 = vadd.f32 %v974, %v1030
  %1047 = vrot.lane.b32.xlu0 %v871, 3
  %v1048 = vpop.permute.xlu0 %1047
  %1049 = vrot.lane.b32.xlu0 %v872, 3
  %v1050 = vpop.permute.xlu0 %1049
  %1051 = vrot.lane.b32.xlu0 %v873, 3
  %v1052 = vpop.permute.xlu0 %1051
  %1053 = vrot.lane.b32.xlu0 %v874, 3
  %v1054 = vpop.permute.xlu0 %1053
  %1055 = vrot.lane.b32.xlu0 %v875, 3
  %v1056 = vpop.permute.xlu0 %1055
  %1057 = vrot.lane.b32.xlu0 %v876, 3
  %v1058 = vpop.permute.xlu0 %1057
  %1059 = vrot.lane.b32.xlu0 %v877, 3
  %v1060 = vpop.permute.xlu0 %1059
  %1061 = vrot.lane.b32.xlu0 %v878, 3
  %v1062 = vpop.permute.xlu0 %1061
  %v1071 = vmul.f32 %v863, %v1048
  %v1072 = vmul.f32 %v864, %v1050
  %v1073 = vmul.f32 %v865, %v1052
  %v1074 = vmul.f32 %v866, %v1054
  %v1075 = vmul.f32 %v867, %v1056
  %v1076 = vmul.f32 %v868, %v1058
  %v1077 = vmul.f32 %v869, %v1060
  %v1078 = vmul.f32 %v870, %v1062
  %1087 = vrot.lane.b32.xlu0 %v1071, 113
  %v1088 = vpop.permute.xlu0 %1087
  %1089 = vrot.lane.b32.xlu0 %v1072, 113
  %v1090 = vpop.permute.xlu0 %1089
  %1091 = vrot.lane.b32.xlu0 %v1073, 113
  %v1092 = vpop.permute.xlu0 %1091
  %1093 = vrot.lane.b32.xlu0 %v1074, 113
  %v1094 = vpop.permute.xlu0 %1093
  %1095 = vrot.lane.b32.xlu0 %v1075, 113
  %v1096 = vpop.permute.xlu0 %1095
  %1097 = vrot.lane.b32.xlu0 %v1076, 113
  %v1098 = vpop.permute.xlu0 %1097
  %1099 = vrot.lane.b32.xlu0 %v1077, 113
  %v1100 = vpop.permute.xlu0 %1099
  %1101 = vrot.lane.b32.xlu0 %v1078, 113
  %v1102 = vpop.permute.xlu0 %1101
  %v1111 = vadd.f32 %v1039, %v1088
  %v1112 = vadd.f32 %v1040, %v1090
  %v1113 = vadd.f32 %v1041, %v1092
  %v1114 = vadd.f32 %v1042, %v1094
  %v1115 = vadd.f32 %v1043, %v1096
  %v1116 = vadd.f32 %v1044, %v1098
  %v1117 = vadd.f32 %v1045, %v1100
  %v1118 = vadd.f32 %v1046, %v1102
  %vm1119 = vcmask 31744
  %v1120 = vsel %vm1119, %v1111, 0.0
  %1121 = vadd.xlane.f32.xlu0 %v1120
  %v1122 = vpop.xlane.xlu0 %1121
  %v1123 = vsel %vm1119, %v1112, 0.0
  %1124 = vadd.xlane.f32.xlu0 %v1123
  %v1125 = vpop.xlane.xlu0 %1124
  %v1126 = vsel %vm1119, %v1113, 0.0
  %1127 = vadd.xlane.f32.xlu0 %v1126
  %v1128 = vpop.xlane.xlu0 %1127
  %v1129 = vsel %vm1119, %v1114, 0.0
  %1130 = vadd.xlane.f32.xlu0 %v1129
  %v1131 = vpop.xlane.xlu0 %1130
  %v1132 = vsel %vm1119, %v1115, 0.0
  %1133 = vadd.xlane.f32.xlu0 %v1132
  %v1134 = vpop.xlane.xlu0 %1133
  %v1135 = vsel %vm1119, %v1116, 0.0
  %1136 = vadd.xlane.f32.xlu0 %v1135
  %v1137 = vpop.xlane.xlu0 %1136
  %v1138 = vsel %vm1119, %v1117, 0.0
  %1139 = vadd.xlane.f32.xlu0 %v1138
  %v1140 = vpop.xlane.xlu0 %1139
  %v1141 = vsel %vm1119, %v1118, 0.0
  %1142 = vadd.xlane.f32.xlu0 %v1141
  %v1143 = vpop.xlane.xlu0 %1142
  %v1144 = vadd.f32 %v1122, %v1125
  %v1145 = vadd.f32 %v1144, %v1128
  %v1146 = vadd.f32 %v1145, %v1131
  %v1147 = vadd.f32 %v1146, %v1134
  %v1148 = vadd.f32 %v1147, %v1137
  %v1149 = vadd.f32 %v1148, %v1140
  %v1150 = vadd.f32 %v1149, %v1143
  %v1151 = vrot.slane %v1150, 4
  %v1152 = vadd.f32 %v1150, %v1151
  %v1153 = vrot.slane %v1152, 2
  %v1154 = vadd.f32 %v1152, %v1153
  %v1155 = vrot.slane %v1154, 1
  %v1156 = vadd.f32 %v1154, %v1155
  %v1157 = vld [vmem:[#allocation3] sm:$0x1]
  %v1158 = vadd.f32 %v1156, %v1157
  %vm1159 = vcmp.eq.s32.totalorder %v862, 0
  %1161 = vset.pattern.permute.xlu0 0
  %1162 = vperm.xlu0 %1161, %v1158
  %v1163 = vpop.permute.xlu0 %1162
  %v1165 = vlaneseq
  %v1166 = vshrl.u32 %v1165, 7
  %v1167 = vsub.s32 0, %v1166
  %v1168 = vrot.slane %v1163, %v1167
  %v1169 = vsel %vm1159, %v1168, 0.0
  %v1170 = vadd.f32 %v1169, 0.0
  %1171 = vrot.lane.b32.xlu0 %v871, 25
  %v1172 = vpop.permute.xlu0 %1171
  %1173 = vrot.lane.b32.xlu0 %v872, 25
  %v1174 = vpop.permute.xlu0 %1173
  %1175 = vrot.lane.b32.xlu0 %v873, 25
  %v1176 = vpop.permute.xlu0 %1175
  %1177 = vrot.lane.b32.xlu0 %v874, 25
  %v1178 = vpop.permute.xlu0 %1177
  %1179 = vrot.lane.b32.xlu0 %v875, 25
  %v1180 = vpop.permute.xlu0 %1179
  %1181 = vrot.lane.b32.xlu0 %v876, 25
  %v1182 = vpop.permute.xlu0 %1181
  %1183 = vrot.lane.b32.xlu0 %v877, 25
  %v1184 = vpop.permute.xlu0 %1183
  %1185 = vrot.lane.b32.xlu0 %v878, 25
  %v1186 = vpop.permute.xlu0 %1185
  %v1195 = vmul.f32 %v863, %v1172
  %v1196 = vmul.f32 %v864, %v1174
  %v1197 = vmul.f32 %v865, %v1176
  %v1198 = vmul.f32 %v866, %v1178
  %v1199 = vmul.f32 %v867, %v1180
  %v1200 = vmul.f32 %v868, %v1182
  %v1201 = vmul.f32 %v869, %v1184
  %v1202 = vmul.f32 %v870, %v1186
  %v1203 = vadd.f32 %v1195, 0.0
  %v1204 = vadd.f32 %v1196, 0.0
  %v1205 = vadd.f32 %v1197, 0.0
  %v1206 = vadd.f32 %v1198, 0.0
  %v1207 = vadd.f32 %v1199, 0.0
  %v1208 = vadd.f32 %v1200, 0.0
  %v1209 = vadd.f32 %v1201, 0.0
  %v1210 = vadd.f32 %v1202, 0.0
  %1211 = vrot.lane.b32.xlu0 %v871, 26
  %v1212 = vpop.permute.xlu0 %1211
  %1213 = vrot.lane.b32.xlu0 %v872, 26
  %v1214 = vpop.permute.xlu0 %1213
  %1215 = vrot.lane.b32.xlu0 %v873, 26
  %v1216 = vpop.permute.xlu0 %1215
  %1217 = vrot.lane.b32.xlu0 %v874, 26
  %v1218 = vpop.permute.xlu0 %1217
  %1219 = vrot.lane.b32.xlu0 %v875, 26
  %v1220 = vpop.permute.xlu0 %1219
  %1221 = vrot.lane.b32.xlu0 %v876, 26
  %v1222 = vpop.permute.xlu0 %1221
  %1223 = vrot.lane.b32.xlu0 %v877, 26
  %v1224 = vpop.permute.xlu0 %1223
  %1225 = vrot.lane.b32.xlu0 %v878, 26
  %v1226 = vpop.permute.xlu0 %1225
  %v1235 = vmul.f32 %v863, %v1212
  %v1236 = vmul.f32 %v864, %v1214
  %v1237 = vmul.f32 %v865, %v1216
  %v1238 = vmul.f32 %v866, %v1218
  %v1239 = vmul.f32 %v867, %v1220
  %v1240 = vmul.f32 %v868, %v1222
  %v1241 = vmul.f32 %v869, %v1224
  %v1242 = vmul.f32 %v870, %v1226
  %1251 = vrot.lane.b32.xlu0 %v1235, 123
  %v1252 = vpop.permute.xlu0 %1251
  %1253 = vrot.lane.b32.xlu0 %v1236, 123
  %v1254 = vpop.permute.xlu0 %1253
  %1255 = vrot.lane.b32.xlu0 %v1237, 123
  %v1256 = vpop.permute.xlu0 %1255
  %1257 = vrot.lane.b32.xlu0 %v1238, 123
  %v1258 = vpop.permute.xlu0 %1257
  %1259 = vrot.lane.b32.xlu0 %v1239, 123
  %v1260 = vpop.permute.xlu0 %1259
  %1261 = vrot.lane.b32.xlu0 %v1240, 123
  %v1262 = vpop.permute.xlu0 %1261
  %1263 = vrot.lane.b32.xlu0 %v1241, 123
  %v1264 = vpop.permute.xlu0 %1263
  %1265 = vrot.lane.b32.xlu0 %v1242, 123
  %v1266 = vpop.permute.xlu0 %1265
  %v1275 = vadd.f32 %v1203, %v1252
  %v1276 = vadd.f32 %v1204, %v1254
  %v1277 = vadd.f32 %v1205, %v1256
  %v1278 = vadd.f32 %v1206, %v1258
  %v1279 = vadd.f32 %v1207, %v1260
  %v1280 = vadd.f32 %v1208, %v1262
  %v1281 = vadd.f32 %v1209, %v1264
  %v1282 = vadd.f32 %v1210, %v1266
  %1283 = vrot.lane.b32.xlu0 %v871, 27
  %v1284 = vpop.permute.xlu0 %1283
  %1285 = vrot.lane.b32.xlu0 %v872, 27
  %v1286 = vpop.permute.xlu0 %1285
  %1287 = vrot.lane.b32.xlu0 %v873, 27
  %v1288 = vpop.permute.xlu0 %1287
  %1289 = vrot.lane.b32.xlu0 %v874, 27
  %v1290 = vpop.permute.xlu0 %1289
  %1291 = vrot.lane.b32.xlu0 %v875, 27
  %v1292 = vpop.permute.xlu0 %1291
  %1293 = vrot.lane.b32.xlu0 %v876, 27
  %v1294 = vpop.permute.xlu0 %1293
  %1295 = vrot.lane.b32.xlu0 %v877, 27
  %v1296 = vpop.permute.xlu0 %1295
  %1297 = vrot.lane.b32.xlu0 %v878, 27
  %v1298 = vpop.permute.xlu0 %1297
  %v1307 = vmul.f32 %v863, %v1284
  %v1308 = vmul.f32 %v864, %v1286
  %v1309 = vmul.f32 %v865, %v1288
  %v1310 = vmul.f32 %v866, %v1290
  %v1311 = vmul.f32 %v867, %v1292
  %v1312 = vmul.f32 %v868, %v1294
  %v1313 = vmul.f32 %v869, %v1296
  %v1314 = vmul.f32 %v870, %v1298
  %1323 = vrot.lane.b32.xlu0 %v1307, 118
  %v1324 = vpop.permute.xlu0 %1323
  %1325 = vrot.lane.b32.xlu0 %v1308, 118
  %v1326 = vpop.permute.xlu0 %1325
  %1327 = vrot.lane.b32.xlu0 %v1309, 118
  %v1328 = vpop.permute.xlu0 %1327
  %1329 = vrot.lane.b32.xlu0 %v1310, 118
  %v1330 = vpop.permute.xlu0 %1329
  %1331 = vrot.lane.b32.xlu0 %v1311, 118
  %v1332 = vpop.permute.xlu0 %1331
  %1333 = vrot.lane.b32.xlu0 %v1312, 118
  %v1334 = vpop.permute.xlu0 %1333
  %1335 = vrot.lane.b32.xlu0 %v1313, 118
  %v1336 = vpop.permute.xlu0 %1335
  %1337 = vrot.lane.b32.xlu0 %v1314, 118
  %v1338 = vpop.permute.xlu0 %1337
  %v1347 = vadd.f32 %v1275, %v1324
  %v1348 = vadd.f32 %v1276, %v1326
  %v1349 = vadd.f32 %v1277, %v1328
  %v1350 = vadd.f32 %v1278, %v1330
  %v1351 = vadd.f32 %v1279, %v1332
  %v1352 = vadd.f32 %v1280, %v1334
  %v1353 = vadd.f32 %v1281, %v1336
  %v1354 = vadd.f32 %v1282, %v1338
  %1355 = vrot.lane.b32.xlu0 %v871, 28
  %v1356 = vpop.permute.xlu0 %1355
  %1357 = vrot.lane.b32.xlu0 %v872, 28
  %v1358 = vpop.permute.xlu0 %1357
  %1359 = vrot.lane.b32.xlu0 %v873, 28
  %v1360 = vpop.permute.xlu0 %1359
  %1361 = vrot.lane.b32.xlu0 %v874, 28
  %v1362 = vpop.permute.xlu0 %1361
  %1363 = vrot.lane.b32.xlu0 %v875, 28
  %v1364 = vpop.permute.xlu0 %1363
  %1365 = vrot.lane.b32.xlu0 %v876, 28
  %v1366 = vpop.permute.xlu0 %1365
  %1367 = vrot.lane.b32.xlu0 %v877, 28
  %v1368 = vpop.permute.xlu0 %1367
  %1369 = vrot.lane.b32.xlu0 %v878, 28
  %v1370 = vpop.permute.xlu0 %1369
  %v1379 = vmul.f32 %v863, %v1356
  %v1380 = vmul.f32 %v864, %v1358
  %v1381 = vmul.f32 %v865, %v1360
  %v1382 = vmul.f32 %v866, %v1362
  %v1383 = vmul.f32 %v867, %v1364
  %v1384 = vmul.f32 %v868, %v1366
  %v1385 = vmul.f32 %v869, %v1368
  %v1386 = vmul.f32 %v870, %v1370
  %1395 = vrot.lane.b32.xlu0 %v1379, 113
  %v1396 = vpop.permute.xlu0 %1395
  %1397 = vrot.lane.b32.xlu0 %v1380, 113
  %v1398 = vpop.permute.xlu0 %1397
  %1399 = vrot.lane.b32.xlu0 %v1381, 113
  %v1400 = vpop.permute.xlu0 %1399
  %1401 = vrot.lane.b32.xlu0 %v1382, 113
  %v1402 = vpop.permute.xlu0 %1401
  %1403 = vrot.lane.b32.xlu0 %v1383, 113
  %v1404 = vpop.permute.xlu0 %1403
  %1405 = vrot.lane.b32.xlu0 %v1384, 113
  %v1406 = vpop.permute.xlu0 %1405
  %1407 = vrot.lane.b32.xlu0 %v1385, 113
  %v1408 = vpop.permute.xlu0 %1407
  %1409 = vrot.lane.b32.xlu0 %v1386, 113
  %v1410 = vpop.permute.xlu0 %1409
  %v1419 = vadd.f32 %v1347, %v1396
  %v1420 = vadd.f32 %v1348, %v1398
  %v1421 = vadd.f32 %v1349, %v1400
  %v1422 = vadd.f32 %v1350, %v1402
  %v1423 = vadd.f32 %v1351, %v1404
  %v1424 = vadd.f32 %v1352, %v1406
  %v1425 = vadd.f32 %v1353, %v1408
  %v1426 = vadd.f32 %v1354, %v1410
  %1435 = vrot.lane.b32.xlu0 %v1419, 103
  %v1436 = vpop.permute.xlu0 %1435
  %1437 = vrot.lane.b32.xlu0 %v1420, 103
  %v1438 = vpop.permute.xlu0 %1437
  %1439 = vrot.lane.b32.xlu0 %v1421, 103
  %v1440 = vpop.permute.xlu0 %1439
  %1441 = vrot.lane.b32.xlu0 %v1422, 103
  %v1442 = vpop.permute.xlu0 %1441
  %1443 = vrot.lane.b32.xlu0 %v1423, 103
  %v1444 = vpop.permute.xlu0 %1443
  %1445 = vrot.lane.b32.xlu0 %v1424, 103
  %v1446 = vpop.permute.xlu0 %1445
  %1447 = vrot.lane.b32.xlu0 %v1425, 103
  %v1448 = vpop.permute.xlu0 %1447
  %1449 = vrot.lane.b32.xlu0 %v1426, 103
  %v1450 = vpop.permute.xlu0 %1449
  %v1459 = vsel %vm1119, %v1436, 0.0
  %1460 = vadd.xlane.f32.xlu0 %v1459
  %v1461 = vpop.xlane.xlu0 %1460
  %v1462 = vsel %vm1119, %v1438, 0.0
  %1463 = vadd.xlane.f32.xlu0 %v1462
  %v1464 = vpop.xlane.xlu0 %1463
  %v1465 = vsel %vm1119, %v1440, 0.0
  %1466 = vadd.xlane.f32.xlu0 %v1465
  %v1467 = vpop.xlane.xlu0 %1466
  %v1468 = vsel %vm1119, %v1442, 0.0
  %1469 = vadd.xlane.f32.xlu0 %v1468
  %v1470 = vpop.xlane.xlu0 %1469
  %v1471 = vsel %vm1119, %v1444, 0.0
  %1472 = vadd.xlane.f32.xlu0 %v1471
  %v1473 = vpop.xlane.xlu0 %1472
  %v1474 = vsel %vm1119, %v1446, 0.0
  %1475 = vadd.xlane.f32.xlu0 %v1474
  %v1476 = vpop.xlane.xlu0 %1475
  %v1477 = vsel %vm1119, %v1448, 0.0
  %1478 = vadd.xlane.f32.xlu0 %v1477
  %v1479 = vpop.xlane.xlu0 %1478
  %v1480 = vsel %vm1119, %v1450, 0.0
  %1481 = vadd.xlane.f32.xlu0 %v1480
  %v1482 = vpop.xlane.xlu0 %1481
  %v1483 = vadd.f32 %v1461, %v1464
  %v1484 = vadd.f32 %v1483, %v1467
  %v1485 = vadd.f32 %v1484, %v1470
  %v1486 = vadd.f32 %v1485, %v1473
  %v1487 = vadd.f32 %v1486, %v1476
  %v1488 = vadd.f32 %v1487, %v1479
  %v1489 = vadd.f32 %v1488, %v1482
  %v1490 = vrot.slane %v1489, 4
  %v1491 = vadd.f32 %v1489, %v1490
  %v1492 = vrot.slane %v1491, 2
  %v1493 = vadd.f32 %v1491, %v1492
  %v1494 = vrot.slane %v1493, 1
  %v1495 = vadd.f32 %v1493, %v1494
  %v1496 = vadd.f32 %v1495, %v1157
  %vm1497 = vcmp.eq.s32.totalorder %v862, 1
  %1499 = vset.pattern.permute.xlu0 0
  %1500 = vperm.xlu0 %1499, %v1496
  %v1501 = vpop.permute.xlu0 %1500
  %v1503 = vlaneseq
  %v1504 = vshrl.u32 %v1503, 7
  %v1505 = vsub.s32 0, %v1504
  %v1506 = vrot.slane %v1501, %v1505
  %v1507 = vsel %vm1497, %v1506, 0.0
  %v1508 = vadd.f32 %v1170, %v1507
  %v1509 = vxor.u32 %v1508, 2147483648
  %v1510 = vmul.f32 %v1509, 1.442695
  %v1511 = vpow.pop %v1510
  %v1512 = vadd.f32 %v1511, 1.0
  %v1513 = vrcp.pop %v1512
  %v1514 = vmul.f32 1.0, %v1513
  %1515 = vst [vmem:[%s7] sm:$0x1] %v1514
  // Predicated region
  $region30: #{discriminator_forward.7} parent=0 // pred_check
    _
  $region31: #{discriminator_forward.7} parent=0 // pred_check_branch
    %1517 = sbr.rel (0) target = $region33
  $region32: #{discriminator_forward.7} parent=0 // pred_region
    _
  $region33: #{discriminator_forward.7} parent=0 // pred_fallthru
    _
  // Predicated region
  $region34: #{discriminator_forward.7} parent=0 // pred_check
    _
  $region35: #{discriminator_forward.7} parent=0 // pred_check_branch
    %1519 = sbr.rel (0) target = $region37
  $region36: #{discriminator_forward.7} parent=0 // pred_region
    _
  $region37: #{discriminator_forward.7} parent=0 // pred_fallthru
    _

</llo_original>
